<compile_context>
chip_gen: v7x
topology: tpu7x:2x2x1
jax: 0.10.0
libtpu: 0.0.40
codegen_flags: <defaults>
</compile_context>

<pallas_src>
import functools

import jax
import jax.numpy as jnp
from jax.experimental import pallas as pl
from jax.experimental.pallas import tpu as pltpu

# ----------------------- model config (small, synthetic) -----------------------
B = 2            # batch
IN_CH = 4        # RGBA, like the modified conv1
IMG = 16         # H = W
PATCH = 8        # patch size -> 2x2 = 4 patches
WIDTH = 32       # transformer width
HEADS = 4
HEAD_DIM = WIDTH // HEADS
LAYERS = 2
MLP_DIM = 4 * WIDTH
OUT_DIM = 32     # backbone.visual.output_dim
SEQ = 1 + (IMG // PATCH) ** 2      # 5 tokens (CLS + 4 patches)
PATCH_DIM = IN_CH * PATCH * PATCH  # 256 (flattened patch)
HEAD_PAD = 128                     # lane-dense padded width of fused head output


# ----------------------- the single fused Pallas kernel -----------------------

def _fused_vit_kernel(x_aug_ref, conv_w_ref, tab32_ref, tab128_ref,
                      w_qkv_ref, w_out_ref, w_fc_ref, w_proj_ref, w_final_ref,
                      out_ref, *, seq, heads):
    bs = x_aug_ref.shape[0]               # padded token-row count (16)
    width = conv_w_ref.shape[1]           # 32
    head_dim = width // heads
    n_layers = w_qkv_ref.shape[0]
    mlp = w_fc_ref.shape[2]

    def ln_noaff(v):                       # LayerNorm without affine (affine folded)
        mu = jnp.mean(v, axis=-1, keepdims=True)
        var = jnp.mean(jnp.square(v - mu), axis=-1, keepdims=True)
        return (v - mu) * jax.lax.rsqrt(var + 1e-5)

    # patch-embed matmul; class_emb + positional rows ride in the augmented
    # columns of x (identity block appended to conv_w), so no extra add.
    x = jnp.dot(x_aug_ref[...], conv_w_ref[...],
                preferred_element_type=jnp.float32)
    # ln_pre (keeps its affine: it feeds the residual stream, not a matmul)
    x = ln_noaff(x) * tab32_ref[0:1, :] + tab32_ref[1:2, :]

    # block-diagonal attention mask (built once, added to scores).
    # Image id is computed with threshold sums (no integer vector division);
    # pad rows (>= B*seq) land in their own segments and attend to themselves.
    r = jax.lax.broadcasted_iota(jnp.int32, (bs, bs), 0)
    c = jax.lax.broadcasted_iota(jnp.int32, (bs, bs), 1)
    n_seg = (bs + seq - 1) // seq
    row_img = jnp.zeros((bs, bs), jnp.int32)
    col_img = jnp.zeros((bs, bs), jnp.int32)
    for t in range(1, n_seg):
        row_img = row_img + (r >= t * seq).astype(jnp.int32)
        col_img = col_img + (c >= t * seq).astype(jnp.int32)
    mask_bias = jnp.where(row_img == col_img, 0.0, -1e30).astype(jnp.float32)

    for l in range(n_layers):              # static unroll (LAYERS = 2)
        # ---- multi-head self-attention (pre-LN residual block; ln1 folded) ----
        hn = ln_noaff(x)
        qkv = jnp.dot(hn, w_qkv_ref[l], preferred_element_type=jnp.float32) \
              + tab128_ref[l:l + 1, :3 * width]          # b_qkv (scale pre-folded)
        attn = jnp.zeros((bs, width), jnp.float32)
        for hd in range(heads):             # static unroll; merge fused into out-proj
            lo = hd * head_dim
            q_h = qkv[:, lo:lo + head_dim]
            k_h = qkv[:, width + lo:width + lo + head_dim]
            v_h = qkv[:, 2 * width + lo:2 * width + lo + head_dim]
            s = jax.lax.dot_general(q_h, k_h, (((1,), (1,)), ((), ())),
                                    preferred_element_type=jnp.float32)
            s = s + mask_bias
            s = s - jnp.max(s, axis=-1, keepdims=True)
            p = jnp.exp(s)
            p = p / jnp.sum(p, axis=-1, keepdims=True)    # exact reciprocal
            ctx = jnp.dot(p, v_h, preferred_element_type=jnp.float32)
            attn = attn + jnp.dot(ctx, w_out_ref[l, hd],
                                  preferred_element_type=jnp.float32)
        x = x + attn + tab32_ref[2 + l:3 + l, :]          # b_out

        # ---- MLP (pre-LN residual block; ln2 folded into w_fc) ----
        hn = ln_noaff(x)
        hm = jnp.dot(hn, w_fc_ref[l], preferred_element_type=jnp.float32) \
             + tab128_ref[n_layers + l:n_layers + l + 1, :mlp]   # b_fc
        # TODO(synk): open_clip backbones may use exact-erf GELU or QuickGELU;
        # tanh-approx GELU is used here (TPU-supported transcendental path).
        hm = jax.nn.gelu(hm, approximate=True)
        hm = jnp.dot(hm, w_proj_ref[l], preferred_element_type=jnp.float32)
        x = x + hm + tab32_ref[2 + n_layers + l:3 + n_layers + l, :]  # b_proj

    # ln_post + visual projection + task heads fused into a single matmul
    # (nn.Dropout(0.2) is identity at inference).
    # TODO(synk): training-mode dropout RNG not implemented (eval semantics used)
    x = ln_noaff(x)
    out_ref[...] = jnp.dot(x, w_final_ref[...],
                           preferred_element_type=jnp.float32) \
                   + tab128_ref[2 * n_layers:2 * n_layers + 1, :]     # b_final


# ----------------------- parameter init (deterministic, synthetic) -----------------------

def init_params(key):
    def nrm(k, shape, scale=0.02):
        return (scale * jax.random.normal(k, shape)).astype(jnp.float32)

    keys = iter(jax.random.split(key, 64))
    params = {}

    # conv1 weight surgery: "pretrained" 3-channel weights, 4th channel zeros
    old_w = nrm(next(keys), (WIDTH, 3, PATCH, PATCH))
    conv1_w = jnp.zeros((WIDTH, IN_CH, PATCH, PATCH), jnp.float32)
    conv1_w = conv1_w.at[:, :3].set(old_w)
    params["conv1_w"] = conv1_w                                   # conv1 has no bias in CLIP

    params["class_emb"] = nrm(next(keys), (WIDTH,))
    params["pos_emb"] = nrm(next(keys), (SEQ, WIDTH))
    params["ln_pre_g"] = jnp.ones((WIDTH,), jnp.float32)
    params["ln_pre_b"] = jnp.zeros((WIDTH,), jnp.float32)

    blocks = []
    for _ in range(LAYERS):
        blocks.append({
            "ln1_g": jnp.ones((WIDTH,), jnp.float32),
            "ln1_b": jnp.zeros((WIDTH,), jnp.float32),
            "w_qkv": nrm(next(keys), (WIDTH, 3 * WIDTH)),
            "b_qkv": jnp.zeros((3 * WIDTH,), jnp.float32),
            "w_out": nrm(next(keys), (WIDTH, WIDTH)),
            "b_out": jnp.zeros((WIDTH,), jnp.float32),
            "ln2_g": jnp.ones((WIDTH,), jnp.float32),
            "ln2_b": jnp.zeros((WIDTH,), jnp.float32),
            "w_fc": nrm(next(keys), (WIDTH, MLP_DIM)),
            "b_fc": jnp.zeros((MLP_DIM,), jnp.float32),
            "w_proj": nrm(next(keys), (MLP_DIM, WIDTH)),
            "b_proj": jnp.zeros((WIDTH,), jnp.float32),
        })
    params["blocks"] = blocks

    params["ln_post_g"] = jnp.ones((WIDTH,), jnp.float32)
    params["ln_post_b"] = jnp.zeros((WIDTH,), jnp.float32)
    params["proj"] = nrm(next(keys), (WIDTH, OUT_DIM))            # no bias

    params["wk"] = nrm(next(keys), (OUT_DIM, 3))
    params["bk"] = jnp.zeros((3,), jnp.float32)
    params["wg"] = nrm(next(keys), (OUT_DIM, 2))
    params["bg"] = jnp.zeros((2,), jnp.float32)
    params["wa"] = nrm(next(keys), (OUT_DIM, 1))
    params["ba"] = jnp.zeros((1,), jnp.float32)
    return params


def prepare_fused_params(params):
    """One-time host-side packing: fold LN affines + attention scale into the
    matmul weights, fuse proj with the task heads, append the identity block
    to the patch-embed weight, and pack all small bias/LN rows into two
    lane-dense tables.  Leaves only 9 kernel arguments."""
    n_layers = len(params["blocks"])
    scale = 1.0 / (HEAD_DIM ** 0.5)

    def fold(gamma, beta, W, b):
        # (nrm(x)*g + b) @ W + bias == nrm(x) @ (g[:,None]*W) + (b @ W + bias)
        return W * gamma[:, None], beta @ W + b

    # patch-embed weight + identity block (carries class_emb + positional rows)
    conv_w = params["conv1_w"].reshape(WIDTH, PATCH_DIM).T          # [256, 32]
    conv_w_aug = jnp.concatenate(
        [conv_w, jnp.eye(WIDTH, dtype=jnp.float32)], axis=0)        # [288, 32]

    seq_row = params["pos_emb"].at[0].add(params["class_emb"])      # [SEQ, 32]

    w_qkv_l, w_out_l, w_fc_l, w_proj_l = [], [], [], []
    b_qkv_l, b_fc_l, b_out_l, b_proj_l = [], [], [], []
    for blk in params["blocks"]:
        w_qkv, b_qkv = fold(blk["ln1_g"], blk["ln1_b"], blk["w_qkv"], blk["b_qkv"])
        # fold 1/sqrt(head_dim) into the Q projection columns
        w_qkv = w_qkv.at[:, :WIDTH].multiply(scale)
        b_qkv = b_qkv.at[:WIDTH].multiply(scale)
        w_fc, b_fc = fold(blk["ln2_g"], blk["ln2_b"], blk["w_fc"], blk["b_fc"])
        w_qkv_l.append(w_qkv); b_qkv_l.append(b_qkv)
        w_fc_l.append(w_fc); b_fc_l.append(b_fc)
        w_out_l.append(blk["w_out"].reshape(HEADS, HEAD_DIM, WIDTH))
        w_proj_l.append(blk["w_proj"])
        b_out_l.append(blk["b_out"]); b_proj_l.append(blk["b_proj"])

    # ln_post folded into proj, proj fused with the three heads (dropout = id)
    proj2 = params["proj"] * params["ln_post_g"][:, None]
    b_post = params["ln_post_b"] @ params["proj"]

    w_heads = jnp.zeros((OUT_DIM, HEAD_PAD), jnp.float32)
    w_heads = w_heads.at[:, 0:3].set(params["wk"])
    w_heads = w_heads.at[:, 3:5].set(params["wg"])
    w_heads = w_heads.at[:, 5:6].set(params["wa"])
    b_heads = jnp.zeros((HEAD_PAD,), jnp.float32)
    b_heads = b_heads.at[0:3].set(params["bk"])
    b_heads = b_heads.at[3:5].set(params["bg"])
    b_heads = b_heads.at[5:6].set(params["ba"])

    w_final = proj2 @ w_heads                                       # [32, 128]
    b_final = b_post @ w_heads + b_heads                            # [128]

    # width-32 row table: ln_pre affine + per-layer residual-branch biases
    tab32 = jnp.zeros((8, WIDTH), jnp.float32)
    tab32 = tab32.at[0].set(params["ln_pre_g"])
    tab32 = tab32.at[1].set(params["ln_pre_b"])
    for l in range(n_layers):
        tab32 = tab32.at[2 + l].set(b_out_l[l])
        tab32 = tab32.at[2 + n_layers + l].set(b_proj_l[l])

    # width-128 row table: qkv bias (96 lanes), fc bias (128), fused head bias
    tab128 = jnp.zeros((8, HEAD_PAD), jnp.float32)
    for l in range(n_layers):
        tab128 = tab128.at[l, :3 * WIDTH].set(b_qkv_l[l])
        tab128 = tab128.at[n_layers + l, :MLP_DIM].set(b_fc_l[l])
    tab128 = tab128.at[2 * n_layers].set(b_final)

    return {
        "conv_w_aug": conv_w_aug,                  # [288, 32]
        "seq_row": seq_row,                        # [SEQ, 32]
        "tab32": tab32,                            # [8, 32]
        "tab128": tab128,                          # [8, 128]
        "w_qkv": jnp.stack(w_qkv_l),               # [L, 32, 96]
        "w_out": jnp.stack(w_out_l),               # [L, 4, 8, 32]
        "w_fc": jnp.stack(w_fc_l),                 # [L, 32, 128]
        "w_proj": jnp.stack(w_proj_l),             # [L, 128, 32]
        "w_final": w_final,                        # [32, 128]
    }


# ----------------------- forward pass -----------------------

@jax.jit
def multitask_forward(images, fused):
    # layout: images NCHW float32 [B, 4, H, W]
    Bn, C, H, W_img = images.shape
    gh, gw = H // PATCH, W_img // PATCH
    n_patch = gh * gw
    S = n_patch + 1
    rows = Bn * S
    rows_pad = ((rows + 7) // 8) * 8          # pad token rows to a sublane multiple

    # im2col: each PATCH x PATCH block -> one row; the strided conv (bias=False)
    # becomes a matmul inside the kernel.  CLS rows have a zero patch part and
    # carry class_emb + pos via the augmented columns.
    patches = images.reshape(Bn, C, gh, PATCH, gw, PATCH)
    patches = patches.transpose(0, 2, 4, 1, 3, 5).reshape(Bn, n_patch, C * PATCH * PATCH)
    x_tok = jnp.concatenate(
        [jnp.zeros((Bn, 1, C * PATCH * PATCH), jnp.float32), patches], axis=1)
    x_tok = x_tok.reshape(rows, C * PATCH * PATCH)
    seq_add = jnp.tile(fused["seq_row"], (Bn, 1))                  # [rows, WIDTH]
    x_aug = jnp.concatenate([x_tok, seq_add], axis=1)              # [rows, 288]
    x_aug = jnp.pad(x_aug, ((0, rows_pad - rows), (0, 0)))         # pad rows stay zero

    kern = functools.partial(_fused_vit_kernel, seq=S, heads=HEADS)
    vmem = pl.BlockSpec(memory_space=pltpu.MemorySpace.VMEM)       # whole array, VMEM-resident
    out = pl.pallas_call(
        kern,
        out_shape=jax.ShapeDtypeStruct((rows_pad, HEAD_PAD), jnp.float32),
        in_specs=[vmem] * 9,
        out_specs=vmem,
    )(x_aug, fused["conv_w_aug"], fused["tab32"], fused["tab128"],
      fused["w_qkv"], fused["w_out"], fused["w_fc"], fused["w_proj"],
      fused["w_final"])

    # keep only CLS rows, then split the lane-padded fused head output.
    cls_out = out[:rows].reshape(Bn, S, HEAD_PAD)[:, 0, :]
    kind_logits = cls_out[:, 0:3]
    gender_logits = cls_out[:, 3:5]
    age_output = cls_out[:, 5:6]
    return kind_logits, gender_logits, age_output


# ----------------------- main -----------------------

if __name__ == "__main__":
    key = jax.random.PRNGKey(0)
    k_img, k_par = jax.random.split(key)
    images = jax.random.normal(k_img, (B, IN_CH, IMG, IMG), dtype=jnp.float32)
    params = init_params(k_par)
    fused = prepare_fused_params(params)

    kind_logits, gender_logits, age_output = multitask_forward(images, fused)
    jax.block_until_ready((kind_logits, gender_logits, age_output))

    assert kind_logits.shape == (B, 3)
    assert gender_logits.shape == (B, 2)
    assert age_output.shape == (B, 1)
    print("KERNEL_OK")
</pallas_src>

<mosaic_0001>
module attributes {stable_mosaic.version = 11 : i64} {
  func.func @_fused_vit_kernel(%arg0: memref<16x288xf32, #tpu.memory_space<vmem>>, %arg1: memref<288x32xf32, #tpu.memory_space<vmem>>, %arg2: memref<8x32xf32, #tpu.memory_space<vmem>>, %arg3: memref<8x128xf32, #tpu.memory_space<vmem>>, %arg4: memref<2x32x96xf32, #tpu.memory_space<vmem>>, %arg5: memref<2x4x8x32xf32, #tpu.memory_space<vmem>>, %arg6: memref<2x32x128xf32, #tpu.memory_space<vmem>>, %arg7: memref<2x128x32xf32, #tpu.memory_space<vmem>>, %arg8: memref<32x128xf32, #tpu.memory_space<vmem>>, %arg9: memref<16x128xf32, #tpu.memory_space<vmem>>) attributes {dimension_semantics = [], scalar_prefetch = 0 : i64, scratch_operands = 0 : i64, tpu.core_type = #tpu.core_type<tc>} {
    %c0 = arith.constant 0 : index
    %c0_0 = arith.constant 0 : index
    %0 = vector.load %arg0[%c0, %c0_0] : memref<16x288xf32, #tpu.memory_space<vmem>>, vector<16x288xf32>
    %c0_1 = arith.constant 0 : index
    %c0_2 = arith.constant 0 : index
    %1 = vector.load %arg1[%c0_1, %c0_2] : memref<288x32xf32, #tpu.memory_space<vmem>>, vector<288x32xf32>
    %cst = arith.constant dense<0.000000e+00> : vector<16x32xf32>
    %2 = tpu.matmul %0, %1, %cst {dimension_numbers = #tpu.dot_dimension_numbers<[1], [0], [0], [1], [0, 0, 1, 1], [], []>} : vector<16x288xf32>, vector<288x32xf32>, vector<16x32xf32> -> vector<16x32xf32>
    %cst_3 = arith.constant dense<0.000000e+00> : vector<16xf32>
    %3 = vector.multi_reduction <add>, %2, %cst_3 [1] : vector<16x32xf32> to vector<16xf32>
    %4 = vector.shape_cast %3 : vector<16xf32> to vector<16x1xf32>
    %cst_4 = arith.constant 3.200000e+01 : f32
    %5 = vector.broadcast %cst_4 : f32 to vector<16x1xf32>
    %6 = arith.divf %4, %5 : vector<16x1xf32>
    %7 = vector.broadcast %6 : vector<16x1xf32> to vector<16x32xf32>
    %8 = arith.subf %2, %7 : vector<16x32xf32>
    %9 = arith.mulf %8, %8 : vector<16x32xf32>
    %cst_5 = arith.constant dense<0.000000e+00> : vector<16xf32>
    %10 = vector.multi_reduction <add>, %9, %cst_5 [1] : vector<16x32xf32> to vector<16xf32>
    %11 = vector.shape_cast %10 : vector<16xf32> to vector<16x1xf32>
    %cst_6 = arith.constant 3.200000e+01 : f32
    %12 = vector.broadcast %cst_6 : f32 to vector<16x1xf32>
    %13 = arith.divf %11, %12 : vector<16x1xf32>
    %14 = vector.broadcast %6 : vector<16x1xf32> to vector<16x32xf32>
    %15 = arith.subf %2, %14 : vector<16x32xf32>
    %cst_7 = arith.constant 9.99999974E-6 : f32
    %16 = vector.broadcast %cst_7 : f32 to vector<16x1xf32>
    %17 = arith.addf %13, %16 : vector<16x1xf32>
    %18 = math.rsqrt %17 : vector<16x1xf32>
    %19 = vector.broadcast %18 : vector<16x1xf32> to vector<16x32xf32>
    %20 = arith.mulf %15, %19 : vector<16x32xf32>
    %c0_8 = arith.constant 0 : index
    %c0_9 = arith.constant 0 : index
    %21 = vector.load %arg2[%c0_8, %c0_9] : memref<8x32xf32, #tpu.memory_space<vmem>>, vector<1x32xf32>
    %22 = vector.broadcast %21 : vector<1x32xf32> to vector<16x32xf32>
    %23 = arith.mulf %20, %22 : vector<16x32xf32>
    %c1 = arith.constant 1 : index
    %c0_10 = arith.constant 0 : index
    %24 = vector.load %arg2[%c1, %c0_10] : memref<8x32xf32, #tpu.memory_space<vmem>>, vector<1x32xf32>
    %25 = vector.broadcast %24 : vector<1x32xf32> to vector<16x32xf32>
    %26 = arith.addf %23, %25 : vector<16x32xf32>
    %27 = tpu.iota {dimensions = array<i32: 0>} : vector<16x16xi32>
    %28 = tpu.iota {dimensions = array<i32: 1>} : vector<16x16xi32>
    %c0_i32 = arith.constant 0 : i32
    %29 = vector.broadcast %c0_i32 : i32 to vector<16x16xi32>
    %c0_i32_11 = arith.constant 0 : i32
    %30 = vector.broadcast %c0_i32_11 : i32 to vector<16x16xi32>
    %c5_i32 = arith.constant 5 : i32
    %31 = vector.broadcast %c5_i32 : i32 to vector<16x16xi32>
    %32 = arith.cmpi sge, %27, %31 : vector<16x16xi32>
    %33 = arith.extui %32 : vector<16x16xi1> to vector<16x16xi32>
    %34 = arith.addi %29, %33 : vector<16x16xi32>
    %c5_i32_12 = arith.constant 5 : i32
    %35 = vector.broadcast %c5_i32_12 : i32 to vector<16x16xi32>
    %36 = arith.cmpi sge, %28, %35 : vector<16x16xi32>
    %37 = arith.extui %36 : vector<16x16xi1> to vector<16x16xi32>
    %38 = arith.addi %30, %37 : vector<16x16xi32>
    %c10_i32 = arith.constant 10 : i32
    %39 = vector.broadcast %c10_i32 : i32 to vector<16x16xi32>
    %40 = arith.cmpi sge, %27, %39 : vector<16x16xi32>
    %41 = arith.extui %40 : vector<16x16xi1> to vector<16x16xi32>
    %42 = arith.addi %34, %41 : vector<16x16xi32>
    %c10_i32_13 = arith.constant 10 : i32
    %43 = vector.broadcast %c10_i32_13 : i32 to vector<16x16xi32>
    %44 = arith.cmpi sge, %28, %43 : vector<16x16xi32>
    %45 = arith.extui %44 : vector<16x16xi1> to vector<16x16xi32>
    %46 = arith.addi %38, %45 : vector<16x16xi32>
    %c15_i32 = arith.constant 15 : i32
    %47 = vector.broadcast %c15_i32 : i32 to vector<16x16xi32>
    %48 = arith.cmpi sge, %27, %47 : vector<16x16xi32>
    %49 = arith.extui %48 : vector<16x16xi1> to vector<16x16xi32>
    %50 = arith.addi %42, %49 : vector<16x16xi32>
    %c15_i32_14 = arith.constant 15 : i32
    %51 = vector.broadcast %c15_i32_14 : i32 to vector<16x16xi32>
    %52 = arith.cmpi sge, %28, %51 : vector<16x16xi32>
    %53 = arith.extui %52 : vector<16x16xi1> to vector<16x16xi32>
    %54 = arith.addi %46, %53 : vector<16x16xi32>
    %55 = arith.cmpi eq, %50, %54 : vector<16x16xi32>
    %cst_15 = arith.constant 0.000000e+00 : f32
    %cst_16 = arith.constant -1.000000e+30 : f32
    %56 = vector.broadcast %cst_15 : f32 to vector<16x16xf32>
    %57 = vector.broadcast %cst_16 : f32 to vector<16x16xf32>
    %58 = arith.select %55, %56, %57 : vector<16x16xi1>, vector<16x16xf32>
    %cst_17 = arith.constant dense<0.000000e+00> : vector<16xf32>
    %59 = vector.multi_reduction <add>, %26, %cst_17 [1] : vector<16x32xf32> to vector<16xf32>
    %60 = vector.shape_cast %59 : vector<16xf32> to vector<16x1xf32>
    %cst_18 = arith.constant 3.200000e+01 : f32
    %61 = vector.broadcast %cst_18 : f32 to vector<16x1xf32>
    %62 = arith.divf %60, %61 : vector<16x1xf32>
    %63 = vector.broadcast %62 : vector<16x1xf32> to vector<16x32xf32>
    %64 = arith.subf %26, %63 : vector<16x32xf32>
    %65 = arith.mulf %64, %64 : vector<16x32xf32>
    %cst_19 = arith.constant dense<0.000000e+00> : vector<16xf32>
    %66 = vector.multi_reduction <add>, %65, %cst_19 [1] : vector<16x32xf32> to vector<16xf32>
    %67 = vector.shape_cast %66 : vector<16xf32> to vector<16x1xf32>
    %cst_20 = arith.constant 3.200000e+01 : f32
    %68 = vector.broadcast %cst_20 : f32 to vector<16x1xf32>
    %69 = arith.divf %67, %68 : vector<16x1xf32>
    %70 = vector.broadcast %62 : vector<16x1xf32> to vector<16x32xf32>
    %71 = arith.subf %26, %70 : vector<16x32xf32>
    %cst_21 = arith.constant 9.99999974E-6 : f32
    %72 = vector.broadcast %cst_21 : f32 to vector<16x1xf32>
    %73 = arith.addf %69, %72 : vector<16x1xf32>
    %74 = math.rsqrt %73 : vector<16x1xf32>
    %75 = vector.broadcast %74 : vector<16x1xf32> to vector<16x32xf32>
    %76 = arith.mulf %71, %75 : vector<16x32xf32>
    %c0_22 = arith.constant 0 : index
    %c0_23 = arith.constant 0 : index
    %c0_24 = arith.constant 0 : index
    %77 = vector.load %arg4[%c0_22, %c0_23, %c0_24] : memref<2x32x96xf32, #tpu.memory_space<vmem>>, vector<1x32x96xf32>
    %78 = vector.shape_cast %77 : vector<1x32x96xf32> to vector<32x96xf32>
    %cst_25 = arith.constant dense<0.000000e+00> : vector<16x96xf32>
    %79 = tpu.matmul %76, %78, %cst_25 {dimension_numbers = #tpu.dot_dimension_numbers<[1], [0], [0], [1], [0, 0, 1, 1], [], []>} : vector<16x32xf32>, vector<32x96xf32>, vector<16x96xf32> -> vector<16x96xf32>
    %c0_26 = arith.constant 0 : index
    %c0_27 = arith.constant 0 : index
    %80 = vector.load %arg3[%c0_26, %c0_27] : memref<8x128xf32, #tpu.memory_space<vmem>>, vector<1x96xf32>
    %81 = vector.broadcast %80 : vector<1x96xf32> to vector<16x96xf32>
    %82 = arith.addf %79, %81 : vector<16x96xf32>
    %cst_28 = arith.constant 0.000000e+00 : f32
    %83 = vector.broadcast %cst_28 : f32 to vector<16x32xf32>
    %84 = vector.extract_strided_slice %82 {offsets = [0, 0], sizes = [16, 8], strides = [1, 1]} : vector<16x96xf32> to vector<16x8xf32>
    %85 = vector.extract_strided_slice %82 {offsets = [0, 32], sizes = [16, 8], strides = [1, 1]} : vector<16x96xf32> to vector<16x8xf32>
    %86 = vector.extract_strided_slice %82 {offsets = [0, 64], sizes = [16, 8], strides = [1, 1]} : vector<16x96xf32> to vector<16x8xf32>
    %cst_29 = arith.constant dense<0.000000e+00> : vector<16x16xf32>
    %87 = tpu.matmul %84, %85, %cst_29 {dimension_numbers = #tpu.dot_dimension_numbers<[1], [1], [0], [0], [0, 0, 1, 0], [], []>} : vector<16x8xf32>, vector<16x8xf32>, vector<16x16xf32> -> vector<16x16xf32>
    %88 = arith.addf %87, %58 : vector<16x16xf32>
    %cst_30 = arith.constant dense<0xFF800000> : vector<16xf32>
    %89 = vector.multi_reduction <maximumf>, %88, %cst_30 [1] : vector<16x16xf32> to vector<16xf32>
    %90 = vector.shape_cast %89 : vector<16xf32> to vector<16x1xf32>
    %91 = vector.broadcast %90 : vector<16x1xf32> to vector<16x16xf32>
    %92 = arith.subf %88, %91 : vector<16x16xf32>
    %93 = math.exp %92 : vector<16x16xf32>
    %cst_31 = arith.constant dense<0.000000e+00> : vector<16xf32>
    %94 = vector.multi_reduction <add>, %93, %cst_31 [1] : vector<16x16xf32> to vector<16xf32>
    %95 = vector.shape_cast %94 : vector<16xf32> to vector<16x1xf32>
    %96 = vector.broadcast %95 : vector<16x1xf32> to vector<16x16xf32>
    %97 = arith.divf %93, %96 : vector<16x16xf32>
    %cst_32 = arith.constant dense<0.000000e+00> : vector<16x8xf32>
    %98 = tpu.matmul %97, %86, %cst_32 {dimension_numbers = #tpu.dot_dimension_numbers<[1], [0], [0], [1], [0, 0, 1, 1], [], []>} : vector<16x16xf32>, vector<16x8xf32>, vector<16x8xf32> -> vector<16x8xf32>
    %c0_33 = arith.constant 0 : index
    %c0_34 = arith.constant 0 : index
    %c0_35 = arith.constant 0 : index
    %c0_36 = arith.constant 0 : index
    %99 = vector.load %arg5[%c0_33, %c0_34, %c0_35, %c0_36] : memref<2x4x8x32xf32, #tpu.memory_space<vmem>>, vector<1x1x8x32xf32>
    %100 = vector.shape_cast %99 : vector<1x1x8x32xf32> to vector<8x32xf32>
    %cst_37 = arith.constant dense<0.000000e+00> : vector<16x32xf32>
    %101 = tpu.matmul %98, %100, %cst_37 {dimension_numbers = #tpu.dot_dimension_numbers<[1], [0], [0], [1], [0, 0, 1, 1], [], []>} : vector<16x8xf32>, vector<8x32xf32>, vector<16x32xf32> -> vector<16x32xf32>
    %102 = arith.addf %83, %101 : vector<16x32xf32>
    %103 = vector.extract_strided_slice %82 {offsets = [0, 8], sizes = [16, 8], strides = [1, 1]} : vector<16x96xf32> to vector<16x8xf32>
    %104 = vector.extract_strided_slice %82 {offsets = [0, 40], sizes = [16, 8], strides = [1, 1]} : vector<16x96xf32> to vector<16x8xf32>
    %105 = vector.extract_strided_slice %82 {offsets = [0, 72], sizes = [16, 8], strides = [1, 1]} : vector<16x96xf32> to vector<16x8xf32>
    %cst_38 = arith.constant dense<0.000000e+00> : vector<16x16xf32>
    %106 = tpu.matmul %103, %104, %cst_38 {dimension_numbers = #tpu.dot_dimension_numbers<[1], [1], [0], [0], [0, 0, 1, 0], [], []>} : vector<16x8xf32>, vector<16x8xf32>, vector<16x16xf32> -> vector<16x16xf32>
    %107 = arith.addf %106, %58 : vector<16x16xf32>
    %cst_39 = arith.constant dense<0xFF800000> : vector<16xf32>
    %108 = vector.multi_reduction <maximumf>, %107, %cst_39 [1] : vector<16x16xf32> to vector<16xf32>
    %109 = vector.shape_cast %108 : vector<16xf32> to vector<16x1xf32>
    %110 = vector.broadcast %109 : vector<16x1xf32> to vector<16x16xf32>
    %111 = arith.subf %107, %110 : vector<16x16xf32>
    %112 = math.exp %111 : vector<16x16xf32>
    %cst_40 = arith.constant dense<0.000000e+00> : vector<16xf32>
    %113 = vector.multi_reduction <add>, %112, %cst_40 [1] : vector<16x16xf32> to vector<16xf32>
    %114 = vector.shape_cast %113 : vector<16xf32> to vector<16x1xf32>
    %115 = vector.broadcast %114 : vector<16x1xf32> to vector<16x16xf32>
    %116 = arith.divf %112, %115 : vector<16x16xf32>
    %cst_41 = arith.constant dense<0.000000e+00> : vector<16x8xf32>
    %117 = tpu.matmul %116, %105, %cst_41 {dimension_numbers = #tpu.dot_dimension_numbers<[1], [0], [0], [1], [0, 0, 1, 1], [], []>} : vector<16x16xf32>, vector<16x8xf32>, vector<16x8xf32> -> vector<16x8xf32>
    %c0_42 = arith.constant 0 : index
    %c1_43 = arith.constant 1 : index
    %c0_44 = arith.constant 0 : index
    %c0_45 = arith.constant 0 : index
    %118 = vector.load %arg5[%c0_42, %c1_43, %c0_44, %c0_45] : memref<2x4x8x32xf32, #tpu.memory_space<vmem>>, vector<1x1x8x32xf32>
    %119 = vector.shape_cast %118 : vector<1x1x8x32xf32> to vector<8x32xf32>
    %cst_46 = arith.constant dense<0.000000e+00> : vector<16x32xf32>
    %120 = tpu.matmul %117, %119, %cst_46 {dimension_numbers = #tpu.dot_dimension_numbers<[1], [0], [0], [1], [0, 0, 1, 1], [], []>} : vector<16x8xf32>, vector<8x32xf32>, vector<16x32xf32> -> vector<16x32xf32>
    %121 = arith.addf %102, %120 : vector<16x32xf32>
    %122 = vector.extract_strided_slice %82 {offsets = [0, 16], sizes = [16, 8], strides = [1, 1]} : vector<16x96xf32> to vector<16x8xf32>
    %123 = vector.extract_strided_slice %82 {offsets = [0, 48], sizes = [16, 8], strides = [1, 1]} : vector<16x96xf32> to vector<16x8xf32>
    %124 = vector.extract_strided_slice %82 {offsets = [0, 80], sizes = [16, 8], strides = [1, 1]} : vector<16x96xf32> to vector<16x8xf32>
    %cst_47 = arith.constant dense<0.000000e+00> : vector<16x16xf32>
    %125 = tpu.matmul %122, %123, %cst_47 {dimension_numbers = #tpu.dot_dimension_numbers<[1], [1], [0], [0], [0, 0, 1, 0], [], []>} : vector<16x8xf32>, vector<16x8xf32>, vector<16x16xf32> -> vector<16x16xf32>
    %126 = arith.addf %125, %58 : vector<16x16xf32>
    %cst_48 = arith.constant dense<0xFF800000> : vector<16xf32>
    %127 = vector.multi_reduction <maximumf>, %126, %cst_48 [1] : vector<16x16xf32> to vector<16xf32>
    %128 = vector.shape_cast %127 : vector<16xf32> to vector<16x1xf32>
    %129 = vector.broadcast %128 : vector<16x1xf32> to vector<16x16xf32>
    %130 = arith.subf %126, %129 : vector<16x16xf32>
    %131 = math.exp %130 : vector<16x16xf32>
    %cst_49 = arith.constant dense<0.000000e+00> : vector<16xf32>
    %132 = vector.multi_reduction <add>, %131, %cst_49 [1] : vector<16x16xf32> to vector<16xf32>
    %133 = vector.shape_cast %132 : vector<16xf32> to vector<16x1xf32>
    %134 = vector.broadcast %133 : vector<16x1xf32> to vector<16x16xf32>
    %135 = arith.divf %131, %134 : vector<16x16xf32>
    %cst_50 = arith.constant dense<0.000000e+00> : vector<16x8xf32>
    %136 = tpu.matmul %135, %124, %cst_50 {dimension_numbers = #tpu.dot_dimension_numbers<[1], [0], [0], [1], [0, 0, 1, 1], [], []>} : vector<16x16xf32>, vector<16x8xf32>, vector<16x8xf32> -> vector<16x8xf32>
    %c0_51 = arith.constant 0 : index
    %c2 = arith.constant 2 : index
    %c0_52 = arith.constant 0 : index
    %c0_53 = arith.constant 0 : index
    %137 = vector.load %arg5[%c0_51, %c2, %c0_52, %c0_53] : memref<2x4x8x32xf32, #tpu.memory_space<vmem>>, vector<1x1x8x32xf32>
    %138 = vector.shape_cast %137 : vector<1x1x8x32xf32> to vector<8x32xf32>
    %cst_54 = arith.constant dense<0.000000e+00> : vector<16x32xf32>
    %139 = tpu.matmul %136, %138, %cst_54 {dimension_numbers = #tpu.dot_dimension_numbers<[1], [0], [0], [1], [0, 0, 1, 1], [], []>} : vector<16x8xf32>, vector<8x32xf32>, vector<16x32xf32> -> vector<16x32xf32>
    %140 = arith.addf %121, %139 : vector<16x32xf32>
    %141 = vector.extract_strided_slice %82 {offsets = [0, 24], sizes = [16, 8], strides = [1, 1]} : vector<16x96xf32> to vector<16x8xf32>
    %142 = vector.extract_strided_slice %82 {offsets = [0, 56], sizes = [16, 8], strides = [1, 1]} : vector<16x96xf32> to vector<16x8xf32>
    %143 = vector.extract_strided_slice %82 {offsets = [0, 88], sizes = [16, 8], strides = [1, 1]} : vector<16x96xf32> to vector<16x8xf32>
    %cst_55 = arith.constant dense<0.000000e+00> : vector<16x16xf32>
    %144 = tpu.matmul %141, %142, %cst_55 {dimension_numbers = #tpu.dot_dimension_numbers<[1], [1], [0], [0], [0, 0, 1, 0], [], []>} : vector<16x8xf32>, vector<16x8xf32>, vector<16x16xf32> -> vector<16x16xf32>
    %145 = arith.addf %144, %58 : vector<16x16xf32>
    %cst_56 = arith.constant dense<0xFF800000> : vector<16xf32>
    %146 = vector.multi_reduction <maximumf>, %145, %cst_56 [1] : vector<16x16xf32> to vector<16xf32>
    %147 = vector.shape_cast %146 : vector<16xf32> to vector<16x1xf32>
    %148 = vector.broadcast %147 : vector<16x1xf32> to vector<16x16xf32>
    %149 = arith.subf %145, %148 : vector<16x16xf32>
    %150 = math.exp %149 : vector<16x16xf32>
    %cst_57 = arith.constant dense<0.000000e+00> : vector<16xf32>
    %151 = vector.multi_reduction <add>, %150, %cst_57 [1] : vector<16x16xf32> to vector<16xf32>
    %152 = vector.shape_cast %151 : vector<16xf32> to vector<16x1xf32>
    %153 = vector.broadcast %152 : vector<16x1xf32> to vector<16x16xf32>
    %154 = arith.divf %150, %153 : vector<16x16xf32>
    %cst_58 = arith.constant dense<0.000000e+00> : vector<16x8xf32>
    %155 = tpu.matmul %154, %143, %cst_58 {dimension_numbers = #tpu.dot_dimension_numbers<[1], [0], [0], [1], [0, 0, 1, 1], [], []>} : vector<16x16xf32>, vector<16x8xf32>, vector<16x8xf32> -> vector<16x8xf32>
    %c0_59 = arith.constant 0 : index
    %c3 = arith.constant 3 : index
    %c0_60 = arith.constant 0 : index
    %c0_61 = arith.constant 0 : index
    %156 = vector.load %arg5[%c0_59, %c3, %c0_60, %c0_61] : memref<2x4x8x32xf32, #tpu.memory_space<vmem>>, vector<1x1x8x32xf32>
    %157 = vector.shape_cast %156 : vector<1x1x8x32xf32> to vector<8x32xf32>
    %cst_62 = arith.constant dense<0.000000e+00> : vector<16x32xf32>
    %158 = tpu.matmul %155, %157, %cst_62 {dimension_numbers = #tpu.dot_dimension_numbers<[1], [0], [0], [1], [0, 0, 1, 1], [], []>} : vector<16x8xf32>, vector<8x32xf32>, vector<16x32xf32> -> vector<16x32xf32>
    %159 = arith.addf %140, %158 : vector<16x32xf32>
    %160 = arith.addf %26, %159 : vector<16x32xf32>
    %c2_63 = arith.constant 2 : index
    %c0_64 = arith.constant 0 : index
    %161 = vector.load %arg2[%c2_63, %c0_64] : memref<8x32xf32, #tpu.memory_space<vmem>>, vector<1x32xf32>
    %162 = vector.broadcast %161 : vector<1x32xf32> to vector<16x32xf32>
    %163 = arith.addf %160, %162 : vector<16x32xf32>
    %cst_65 = arith.constant dense<0.000000e+00> : vector<16xf32>
    %164 = vector.multi_reduction <add>, %163, %cst_65 [1] : vector<16x32xf32> to vector<16xf32>
    %165 = vector.shape_cast %164 : vector<16xf32> to vector<16x1xf32>
    %cst_66 = arith.constant 3.200000e+01 : f32
    %166 = vector.broadcast %cst_66 : f32 to vector<16x1xf32>
    %167 = arith.divf %165, %166 : vector<16x1xf32>
    %168 = vector.broadcast %167 : vector<16x1xf32> to vector<16x32xf32>
    %169 = arith.subf %163, %168 : vector<16x32xf32>
    %170 = arith.mulf %169, %169 : vector<16x32xf32>
    %cst_67 = arith.constant dense<0.000000e+00> : vector<16xf32>
    %171 = vector.multi_reduction <add>, %170, %cst_67 [1] : vector<16x32xf32> to vector<16xf32>
    %172 = vector.shape_cast %171 : vector<16xf32> to vector<16x1xf32>
    %cst_68 = arith.constant 3.200000e+01 : f32
    %173 = vector.broadcast %cst_68 : f32 to vector<16x1xf32>
    %174 = arith.divf %172, %173 : vector<16x1xf32>
    %175 = vector.broadcast %167 : vector<16x1xf32> to vector<16x32xf32>
    %176 = arith.subf %163, %175 : vector<16x32xf32>
    %cst_69 = arith.constant 9.99999974E-6 : f32
    %177 = vector.broadcast %cst_69 : f32 to vector<16x1xf32>
    %178 = arith.addf %174, %177 : vector<16x1xf32>
    %179 = math.rsqrt %178 : vector<16x1xf32>
    %180 = vector.broadcast %179 : vector<16x1xf32> to vector<16x32xf32>
    %181 = arith.mulf %176, %180 : vector<16x32xf32>
    %c0_70 = arith.constant 0 : index
    %c0_71 = arith.constant 0 : index
    %c0_72 = arith.constant 0 : index
    %182 = vector.load %arg6[%c0_70, %c0_71, %c0_72] : memref<2x32x128xf32, #tpu.memory_space<vmem>>, vector<1x32x128xf32>
    %183 = vector.shape_cast %182 : vector<1x32x128xf32> to vector<32x128xf32>
    %cst_73 = arith.constant dense<0.000000e+00> : vector<16x128xf32>
    %184 = tpu.matmul %181, %183, %cst_73 {dimension_numbers = #tpu.dot_dimension_numbers<[1], [0], [0], [1], [0, 0, 1, 1], [], []>} : vector<16x32xf32>, vector<32x128xf32>, vector<16x128xf32> -> vector<16x128xf32>
    %c2_74 = arith.constant 2 : index
    %c0_75 = arith.constant 0 : index
    %185 = vector.load %arg3[%c2_74, %c0_75] : memref<8x128xf32, #tpu.memory_space<vmem>>, vector<1x128xf32>
    %186 = vector.broadcast %185 : vector<1x128xf32> to vector<16x128xf32>
    %187 = arith.addf %184, %186 : vector<16x128xf32>
    %188 = arith.mulf %187, %187 : vector<16x128xf32>
    %189 = arith.mulf %187, %188 : vector<16x128xf32>
    %cst_76 = arith.constant 4.471500e-02 : f32
    %190 = vector.broadcast %cst_76 : f32 to vector<16x128xf32>
    %191 = arith.mulf %190, %189 : vector<16x128xf32>
    %192 = arith.addf %187, %191 : vector<16x128xf32>
    %cst_77 = arith.constant 0.797884583 : f32
    %193 = vector.broadcast %cst_77 : f32 to vector<16x128xf32>
    %194 = arith.mulf %193, %192 : vector<16x128xf32>
    %195 = math.tanh %194 : vector<16x128xf32>
    %cst_78 = arith.constant 1.000000e+00 : f32
    %196 = vector.broadcast %cst_78 : f32 to vector<16x128xf32>
    %197 = arith.addf %196, %195 : vector<16x128xf32>
    %cst_79 = arith.constant 5.000000e-01 : f32
    %198 = vector.broadcast %cst_79 : f32 to vector<16x128xf32>
    %199 = arith.mulf %198, %197 : vector<16x128xf32>
    %200 = arith.mulf %187, %199 : vector<16x128xf32>
    %c0_80 = arith.constant 0 : index
    %c0_81 = arith.constant 0 : index
    %c0_82 = arith.constant 0 : index
    %201 = vector.load %arg7[%c0_80, %c0_81, %c0_82] : memref<2x128x32xf32, #tpu.memory_space<vmem>>, vector<1x128x32xf32>
    %202 = vector.shape_cast %201 : vector<1x128x32xf32> to vector<128x32xf32>
    %cst_83 = arith.constant dense<0.000000e+00> : vector<16x32xf32>
    %203 = tpu.matmul %200, %202, %cst_83 {dimension_numbers = #tpu.dot_dimension_numbers<[1], [0], [0], [1], [0, 0, 1, 1], [], []>} : vector<16x128xf32>, vector<128x32xf32>, vector<16x32xf32> -> vector<16x32xf32>
    %204 = arith.addf %163, %203 : vector<16x32xf32>
    %c4 = arith.constant 4 : index
    %c0_84 = arith.constant 0 : index
    %205 = vector.load %arg2[%c4, %c0_84] : memref<8x32xf32, #tpu.memory_space<vmem>>, vector<1x32xf32>
    %206 = vector.broadcast %205 : vector<1x32xf32> to vector<16x32xf32>
    %207 = arith.addf %204, %206 : vector<16x32xf32>
    %cst_85 = arith.constant dense<0.000000e+00> : vector<16xf32>
    %208 = vector.multi_reduction <add>, %207, %cst_85 [1] : vector<16x32xf32> to vector<16xf32>
    %209 = vector.shape_cast %208 : vector<16xf32> to vector<16x1xf32>
    %cst_86 = arith.constant 3.200000e+01 : f32
    %210 = vector.broadcast %cst_86 : f32 to vector<16x1xf32>
    %211 = arith.divf %209, %210 : vector<16x1xf32>
    %212 = vector.broadcast %211 : vector<16x1xf32> to vector<16x32xf32>
    %213 = arith.subf %207, %212 : vector<16x32xf32>
    %214 = arith.mulf %213, %213 : vector<16x32xf32>
    %cst_87 = arith.constant dense<0.000000e+00> : vector<16xf32>
    %215 = vector.multi_reduction <add>, %214, %cst_87 [1] : vector<16x32xf32> to vector<16xf32>
    %216 = vector.shape_cast %215 : vector<16xf32> to vector<16x1xf32>
    %cst_88 = arith.constant 3.200000e+01 : f32
    %217 = vector.broadcast %cst_88 : f32 to vector<16x1xf32>
    %218 = arith.divf %216, %217 : vector<16x1xf32>
    %219 = vector.broadcast %211 : vector<16x1xf32> to vector<16x32xf32>
    %220 = arith.subf %207, %219 : vector<16x32xf32>
    %cst_89 = arith.constant 9.99999974E-6 : f32
    %221 = vector.broadcast %cst_89 : f32 to vector<16x1xf32>
    %222 = arith.addf %218, %221 : vector<16x1xf32>
    %223 = math.rsqrt %222 : vector<16x1xf32>
    %224 = vector.broadcast %223 : vector<16x1xf32> to vector<16x32xf32>
    %225 = arith.mulf %220, %224 : vector<16x32xf32>
    %c1_90 = arith.constant 1 : index
    %c0_91 = arith.constant 0 : index
    %c0_92 = arith.constant 0 : index
    %226 = vector.load %arg4[%c1_90, %c0_91, %c0_92] : memref<2x32x96xf32, #tpu.memory_space<vmem>>, vector<1x32x96xf32>
    %227 = vector.shape_cast %226 : vector<1x32x96xf32> to vector<32x96xf32>
    %cst_93 = arith.constant dense<0.000000e+00> : vector<16x96xf32>
    %228 = tpu.matmul %225, %227, %cst_93 {dimension_numbers = #tpu.dot_dimension_numbers<[1], [0], [0], [1], [0, 0, 1, 1], [], []>} : vector<16x32xf32>, vector<32x96xf32>, vector<16x96xf32> -> vector<16x96xf32>
    %c1_94 = arith.constant 1 : index
    %c0_95 = arith.constant 0 : index
    %229 = vector.load %arg3[%c1_94, %c0_95] : memref<8x128xf32, #tpu.memory_space<vmem>>, vector<1x96xf32>
    %230 = vector.broadcast %229 : vector<1x96xf32> to vector<16x96xf32>
    %231 = arith.addf %228, %230 : vector<16x96xf32>
    %cst_96 = arith.constant 0.000000e+00 : f32
    %232 = vector.broadcast %cst_96 : f32 to vector<16x32xf32>
    %233 = vector.extract_strided_slice %231 {offsets = [0, 0], sizes = [16, 8], strides = [1, 1]} : vector<16x96xf32> to vector<16x8xf32>
    %234 = vector.extract_strided_slice %231 {offsets = [0, 32], sizes = [16, 8], strides = [1, 1]} : vector<16x96xf32> to vector<16x8xf32>
    %235 = vector.extract_strided_slice %231 {offsets = [0, 64], sizes = [16, 8], strides = [1, 1]} : vector<16x96xf32> to vector<16x8xf32>
    %cst_97 = arith.constant dense<0.000000e+00> : vector<16x16xf32>
    %236 = tpu.matmul %233, %234, %cst_97 {dimension_numbers = #tpu.dot_dimension_numbers<[1], [1], [0], [0], [0, 0, 1, 0], [], []>} : vector<16x8xf32>, vector<16x8xf32>, vector<16x16xf32> -> vector<16x16xf32>
    %237 = arith.addf %236, %58 : vector<16x16xf32>
    %cst_98 = arith.constant dense<0xFF800000> : vector<16xf32>
    %238 = vector.multi_reduction <maximumf>, %237, %cst_98 [1] : vector<16x16xf32> to vector<16xf32>
    %239 = vector.shape_cast %238 : vector<16xf32> to vector<16x1xf32>
    %240 = vector.broadcast %239 : vector<16x1xf32> to vector<16x16xf32>
    %241 = arith.subf %237, %240 : vector<16x16xf32>
    %242 = math.exp %241 : vector<16x16xf32>
    %cst_99 = arith.constant dense<0.000000e+00> : vector<16xf32>
    %243 = vector.multi_reduction <add>, %242, %cst_99 [1] : vector<16x16xf32> to vector<16xf32>
    %244 = vector.shape_cast %243 : vector<16xf32> to vector<16x1xf32>
    %245 = vector.broadcast %244 : vector<16x1xf32> to vector<16x16xf32>
    %246 = arith.divf %242, %245 : vector<16x16xf32>
    %cst_100 = arith.constant dense<0.000000e+00> : vector<16x8xf32>
    %247 = tpu.matmul %246, %235, %cst_100 {dimension_numbers = #tpu.dot_dimension_numbers<[1], [0], [0], [1], [0, 0, 1, 1], [], []>} : vector<16x16xf32>, vector<16x8xf32>, vector<16x8xf32> -> vector<16x8xf32>
    %c1_101 = arith.constant 1 : index
    %c0_102 = arith.constant 0 : index
    %c0_103 = arith.constant 0 : index
    %c0_104 = arith.constant 0 : index
    %248 = vector.load %arg5[%c1_101, %c0_102, %c0_103, %c0_104] : memref<2x4x8x32xf32, #tpu.memory_space<vmem>>, vector<1x1x8x32xf32>
    %249 = vector.shape_cast %248 : vector<1x1x8x32xf32> to vector<8x32xf32>
    %cst_105 = arith.constant dense<0.000000e+00> : vector<16x32xf32>
    %250 = tpu.matmul %247, %249, %cst_105 {dimension_numbers = #tpu.dot_dimension_numbers<[1], [0], [0], [1], [0, 0, 1, 1], [], []>} : vector<16x8xf32>, vector<8x32xf32>, vector<16x32xf32> -> vector<16x32xf32>
    %251 = arith.addf %232, %250 : vector<16x32xf32>
    %252 = vector.extract_strided_slice %231 {offsets = [0, 8], sizes = [16, 8], strides = [1, 1]} : vector<16x96xf32> to vector<16x8xf32>
    %253 = vector.extract_strided_slice %231 {offsets = [0, 40], sizes = [16, 8], strides = [1, 1]} : vector<16x96xf32> to vector<16x8xf32>
    %254 = vector.extract_strided_slice %231 {offsets = [0, 72], sizes = [16, 8], strides = [1, 1]} : vector<16x96xf32> to vector<16x8xf32>
    %cst_106 = arith.constant dense<0.000000e+00> : vector<16x16xf32>
    %255 = tpu.matmul %252, %253, %cst_106 {dimension_numbers = #tpu.dot_dimension_numbers<[1], [1], [0], [0], [0, 0, 1, 0], [], []>} : vector<16x8xf32>, vector<16x8xf32>, vector<16x16xf32> -> vector<16x16xf32>
    %256 = arith.addf %255, %58 : vector<16x16xf32>
    %cst_107 = arith.constant dense<0xFF800000> : vector<16xf32>
    %257 = vector.multi_reduction <maximumf>, %256, %cst_107 [1] : vector<16x16xf32> to vector<16xf32>
    %258 = vector.shape_cast %257 : vector<16xf32> to vector<16x1xf32>
    %259 = vector.broadcast %258 : vector<16x1xf32> to vector<16x16xf32>
    %260 = arith.subf %256, %259 : vector<16x16xf32>
    %261 = math.exp %260 : vector<16x16xf32>
    %cst_108 = arith.constant dense<0.000000e+00> : vector<16xf32>
    %262 = vector.multi_reduction <add>, %261, %cst_108 [1] : vector<16x16xf32> to vector<16xf32>
    %263 = vector.shape_cast %262 : vector<16xf32> to vector<16x1xf32>
    %264 = vector.broadcast %263 : vector<16x1xf32> to vector<16x16xf32>
    %265 = arith.divf %261, %264 : vector<16x16xf32>
    %cst_109 = arith.constant dense<0.000000e+00> : vector<16x8xf32>
    %266 = tpu.matmul %265, %254, %cst_109 {dimension_numbers = #tpu.dot_dimension_numbers<[1], [0], [0], [1], [0, 0, 1, 1], [], []>} : vector<16x16xf32>, vector<16x8xf32>, vector<16x8xf32> -> vector<16x8xf32>
    %c1_110 = arith.constant 1 : index
    %c1_111 = arith.constant 1 : index
    %c0_112 = arith.constant 0 : index
    %c0_113 = arith.constant 0 : index
    %267 = vector.load %arg5[%c1_110, %c1_111, %c0_112, %c0_113] : memref<2x4x8x32xf32, #tpu.memory_space<vmem>>, vector<1x1x8x32xf32>
    %268 = vector.shape_cast %267 : vector<1x1x8x32xf32> to vector<8x32xf32>
    %cst_114 = arith.constant dense<0.000000e+00> : vector<16x32xf32>
    %269 = tpu.matmul %266, %268, %cst_114 {dimension_numbers = #tpu.dot_dimension_numbers<[1], [0], [0], [1], [0, 0, 1, 1], [], []>} : vector<16x8xf32>, vector<8x32xf32>, vector<16x32xf32> -> vector<16x32xf32>
    %270 = arith.addf %251, %269 : vector<16x32xf32>
    %271 = vector.extract_strided_slice %231 {offsets = [0, 16], sizes = [16, 8], strides = [1, 1]} : vector<16x96xf32> to vector<16x8xf32>
    %272 = vector.extract_strided_slice %231 {offsets = [0, 48], sizes = [16, 8], strides = [1, 1]} : vector<16x96xf32> to vector<16x8xf32>
    %273 = vector.extract_strided_slice %231 {offsets = [0, 80], sizes = [16, 8], strides = [1, 1]} : vector<16x96xf32> to vector<16x8xf32>
    %cst_115 = arith.constant dense<0.000000e+00> : vector<16x16xf32>
    %274 = tpu.matmul %271, %272, %cst_115 {dimension_numbers = #tpu.dot_dimension_numbers<[1], [1], [0], [0], [0, 0, 1, 0], [], []>} : vector<16x8xf32>, vector<16x8xf32>, vector<16x16xf32> -> vector<16x16xf32>
    %275 = arith.addf %274, %58 : vector<16x16xf32>
    %cst_116 = arith.constant dense<0xFF800000> : vector<16xf32>
    %276 = vector.multi_reduction <maximumf>, %275, %cst_116 [1] : vector<16x16xf32> to vector<16xf32>
    %277 = vector.shape_cast %276 : vector<16xf32> to vector<16x1xf32>
    %278 = vector.broadcast %277 : vector<16x1xf32> to vector<16x16xf32>
    %279 = arith.subf %275, %278 : vector<16x16xf32>
    %280 = math.exp %279 : vector<16x16xf32>
    %cst_117 = arith.constant dense<0.000000e+00> : vector<16xf32>
    %281 = vector.multi_reduction <add>, %280, %cst_117 [1] : vector<16x16xf32> to vector<16xf32>
    %282 = vector.shape_cast %281 : vector<16xf32> to vector<16x1xf32>
    %283 = vector.broadcast %282 : vector<16x1xf32> to vector<16x16xf32>
    %284 = arith.divf %280, %283 : vector<16x16xf32>
    %cst_118 = arith.constant dense<0.000000e+00> : vector<16x8xf32>
    %285 = tpu.matmul %284, %273, %cst_118 {dimension_numbers = #tpu.dot_dimension_numbers<[1], [0], [0], [1], [0, 0, 1, 1], [], []>} : vector<16x16xf32>, vector<16x8xf32>, vector<16x8xf32> -> vector<16x8xf32>
    %c1_119 = arith.constant 1 : index
    %c2_120 = arith.constant 2 : index
    %c0_121 = arith.constant 0 : index
    %c0_122 = arith.constant 0 : index
    %286 = vector.load %arg5[%c1_119, %c2_120, %c0_121, %c0_122] : memref<2x4x8x32xf32, #tpu.memory_space<vmem>>, vector<1x1x8x32xf32>
    %287 = vector.shape_cast %286 : vector<1x1x8x32xf32> to vector<8x32xf32>
    %cst_123 = arith.constant dense<0.000000e+00> : vector<16x32xf32>
    %288 = tpu.matmul %285, %287, %cst_123 {dimension_numbers = #tpu.dot_dimension_numbers<[1], [0], [0], [1], [0, 0, 1, 1], [], []>} : vector<16x8xf32>, vector<8x32xf32>, vector<16x32xf32> -> vector<16x32xf32>
    %289 = arith.addf %270, %288 : vector<16x32xf32>
    %290 = vector.extract_strided_slice %231 {offsets = [0, 24], sizes = [16, 8], strides = [1, 1]} : vector<16x96xf32> to vector<16x8xf32>
    %291 = vector.extract_strided_slice %231 {offsets = [0, 56], sizes = [16, 8], strides = [1, 1]} : vector<16x96xf32> to vector<16x8xf32>
    %292 = vector.extract_strided_slice %231 {offsets = [0, 88], sizes = [16, 8], strides = [1, 1]} : vector<16x96xf32> to vector<16x8xf32>
    %cst_124 = arith.constant dense<0.000000e+00> : vector<16x16xf32>
    %293 = tpu.matmul %290, %291, %cst_124 {dimension_numbers = #tpu.dot_dimension_numbers<[1], [1], [0], [0], [0, 0, 1, 0], [], []>} : vector<16x8xf32>, vector<16x8xf32>, vector<16x16xf32> -> vector<16x16xf32>
    %294 = arith.addf %293, %58 : vector<16x16xf32>
    %cst_125 = arith.constant dense<0xFF800000> : vector<16xf32>
    %295 = vector.multi_reduction <maximumf>, %294, %cst_125 [1] : vector<16x16xf32> to vector<16xf32>
    %296 = vector.shape_cast %295 : vector<16xf32> to vector<16x1xf32>
    %297 = vector.broadcast %296 : vector<16x1xf32> to vector<16x16xf32>
    %298 = arith.subf %294, %297 : vector<16x16xf32>
    %299 = math.exp %298 : vector<16x16xf32>
    %cst_126 = arith.constant dense<0.000000e+00> : vector<16xf32>
    %300 = vector.multi_reduction <add>, %299, %cst_126 [1] : vector<16x16xf32> to vector<16xf32>
    %301 = vector.shape_cast %300 : vector<16xf32> to vector<16x1xf32>
    %302 = vector.broadcast %301 : vector<16x1xf32> to vector<16x16xf32>
    %303 = arith.divf %299, %302 : vector<16x16xf32>
    %cst_127 = arith.constant dense<0.000000e+00> : vector<16x8xf32>
    %304 = tpu.matmul %303, %292, %cst_127 {dimension_numbers = #tpu.dot_dimension_numbers<[1], [0], [0], [1], [0, 0, 1, 1], [], []>} : vector<16x16xf32>, vector<16x8xf32>, vector<16x8xf32> -> vector<16x8xf32>
    %c1_128 = arith.constant 1 : index
    %c3_129 = arith.constant 3 : index
    %c0_130 = arith.constant 0 : index
    %c0_131 = arith.constant 0 : index
    %305 = vector.load %arg5[%c1_128, %c3_129, %c0_130, %c0_131] : memref<2x4x8x32xf32, #tpu.memory_space<vmem>>, vector<1x1x8x32xf32>
    %306 = vector.shape_cast %305 : vector<1x1x8x32xf32> to vector<8x32xf32>
    %cst_132 = arith.constant dense<0.000000e+00> : vector<16x32xf32>
    %307 = tpu.matmul %304, %306, %cst_132 {dimension_numbers = #tpu.dot_dimension_numbers<[1], [0], [0], [1], [0, 0, 1, 1], [], []>} : vector<16x8xf32>, vector<8x32xf32>, vector<16x32xf32> -> vector<16x32xf32>
    %308 = arith.addf %289, %307 : vector<16x32xf32>
    %309 = arith.addf %207, %308 : vector<16x32xf32>
    %c3_133 = arith.constant 3 : index
    %c0_134 = arith.constant 0 : index
    %310 = vector.load %arg2[%c3_133, %c0_134] : memref<8x32xf32, #tpu.memory_space<vmem>>, vector<1x32xf32>
    %311 = vector.broadcast %310 : vector<1x32xf32> to vector<16x32xf32>
    %312 = arith.addf %309, %311 : vector<16x32xf32>
    %cst_135 = arith.constant dense<0.000000e+00> : vector<16xf32>
    %313 = vector.multi_reduction <add>, %312, %cst_135 [1] : vector<16x32xf32> to vector<16xf32>
    %314 = vector.shape_cast %313 : vector<16xf32> to vector<16x1xf32>
    %cst_136 = arith.constant 3.200000e+01 : f32
    %315 = vector.broadcast %cst_136 : f32 to vector<16x1xf32>
    %316 = arith.divf %314, %315 : vector<16x1xf32>
    %317 = vector.broadcast %316 : vector<16x1xf32> to vector<16x32xf32>
    %318 = arith.subf %312, %317 : vector<16x32xf32>
    %319 = arith.mulf %318, %318 : vector<16x32xf32>
    %cst_137 = arith.constant dense<0.000000e+00> : vector<16xf32>
    %320 = vector.multi_reduction <add>, %319, %cst_137 [1] : vector<16x32xf32> to vector<16xf32>
    %321 = vector.shape_cast %320 : vector<16xf32> to vector<16x1xf32>
    %cst_138 = arith.constant 3.200000e+01 : f32
    %322 = vector.broadcast %cst_138 : f32 to vector<16x1xf32>
    %323 = arith.divf %321, %322 : vector<16x1xf32>
    %324 = vector.broadcast %316 : vector<16x1xf32> to vector<16x32xf32>
    %325 = arith.subf %312, %324 : vector<16x32xf32>
    %cst_139 = arith.constant 9.99999974E-6 : f32
    %326 = vector.broadcast %cst_139 : f32 to vector<16x1xf32>
    %327 = arith.addf %323, %326 : vector<16x1xf32>
    %328 = math.rsqrt %327 : vector<16x1xf32>
    %329 = vector.broadcast %328 : vector<16x1xf32> to vector<16x32xf32>
    %330 = arith.mulf %325, %329 : vector<16x32xf32>
    %c1_140 = arith.constant 1 : index
    %c0_141 = arith.constant 0 : index
    %c0_142 = arith.constant 0 : index
    %331 = vector.load %arg6[%c1_140, %c0_141, %c0_142] : memref<2x32x128xf32, #tpu.memory_space<vmem>>, vector<1x32x128xf32>
    %332 = vector.shape_cast %331 : vector<1x32x128xf32> to vector<32x128xf32>
    %cst_143 = arith.constant dense<0.000000e+00> : vector<16x128xf32>
    %333 = tpu.matmul %330, %332, %cst_143 {dimension_numbers = #tpu.dot_dimension_numbers<[1], [0], [0], [1], [0, 0, 1, 1], [], []>} : vector<16x32xf32>, vector<32x128xf32>, vector<16x128xf32> -> vector<16x128xf32>
    %c3_144 = arith.constant 3 : index
    %c0_145 = arith.constant 0 : index
    %334 = vector.load %arg3[%c3_144, %c0_145] : memref<8x128xf32, #tpu.memory_space<vmem>>, vector<1x128xf32>
    %335 = vector.broadcast %334 : vector<1x128xf32> to vector<16x128xf32>
    %336 = arith.addf %333, %335 : vector<16x128xf32>
    %337 = arith.mulf %336, %336 : vector<16x128xf32>
    %338 = arith.mulf %336, %337 : vector<16x128xf32>
    %cst_146 = arith.constant 4.471500e-02 : f32
    %339 = vector.broadcast %cst_146 : f32 to vector<16x128xf32>
    %340 = arith.mulf %339, %338 : vector<16x128xf32>
    %341 = arith.addf %336, %340 : vector<16x128xf32>
    %cst_147 = arith.constant 0.797884583 : f32
    %342 = vector.broadcast %cst_147 : f32 to vector<16x128xf32>
    %343 = arith.mulf %342, %341 : vector<16x128xf32>
    %344 = math.tanh %343 : vector<16x128xf32>
    %cst_148 = arith.constant 1.000000e+00 : f32
    %345 = vector.broadcast %cst_148 : f32 to vector<16x128xf32>
    %346 = arith.addf %345, %344 : vector<16x128xf32>
    %cst_149 = arith.constant 5.000000e-01 : f32
    %347 = vector.broadcast %cst_149 : f32 to vector<16x128xf32>
    %348 = arith.mulf %347, %346 : vector<16x128xf32>
    %349 = arith.mulf %336, %348 : vector<16x128xf32>
    %c1_150 = arith.constant 1 : index
    %c0_151 = arith.constant 0 : index
    %c0_152 = arith.constant 0 : index
    %350 = vector.load %arg7[%c1_150, %c0_151, %c0_152] : memref<2x128x32xf32, #tpu.memory_space<vmem>>, vector<1x128x32xf32>
    %351 = vector.shape_cast %350 : vector<1x128x32xf32> to vector<128x32xf32>
    %cst_153 = arith.constant dense<0.000000e+00> : vector<16x32xf32>
    %352 = tpu.matmul %349, %351, %cst_153 {dimension_numbers = #tpu.dot_dimension_numbers<[1], [0], [0], [1], [0, 0, 1, 1], [], []>} : vector<16x128xf32>, vector<128x32xf32>, vector<16x32xf32> -> vector<16x32xf32>
    %353 = arith.addf %312, %352 : vector<16x32xf32>
    %c5 = arith.constant 5 : index
    %c0_154 = arith.constant 0 : index
    %354 = vector.load %arg2[%c5, %c0_154] : memref<8x32xf32, #tpu.memory_space<vmem>>, vector<1x32xf32>
    %355 = vector.broadcast %354 : vector<1x32xf32> to vector<16x32xf32>
    %356 = arith.addf %353, %355 : vector<16x32xf32>
    %cst_155 = arith.constant dense<0.000000e+00> : vector<16xf32>
    %357 = vector.multi_reduction <add>, %356, %cst_155 [1] : vector<16x32xf32> to vector<16xf32>
    %358 = vector.shape_cast %357 : vector<16xf32> to vector<16x1xf32>
    %cst_156 = arith.constant 3.200000e+01 : f32
    %359 = vector.broadcast %cst_156 : f32 to vector<16x1xf32>
    %360 = arith.divf %358, %359 : vector<16x1xf32>
    %361 = vector.broadcast %360 : vector<16x1xf32> to vector<16x32xf32>
    %362 = arith.subf %356, %361 : vector<16x32xf32>
    %363 = arith.mulf %362, %362 : vector<16x32xf32>
    %cst_157 = arith.constant dense<0.000000e+00> : vector<16xf32>
    %364 = vector.multi_reduction <add>, %363, %cst_157 [1] : vector<16x32xf32> to vector<16xf32>
    %365 = vector.shape_cast %364 : vector<16xf32> to vector<16x1xf32>
    %cst_158 = arith.constant 3.200000e+01 : f32
    %366 = vector.broadcast %cst_158 : f32 to vector<16x1xf32>
    %367 = arith.divf %365, %366 : vector<16x1xf32>
    %368 = vector.broadcast %360 : vector<16x1xf32> to vector<16x32xf32>
    %369 = arith.subf %356, %368 : vector<16x32xf32>
    %cst_159 = arith.constant 9.99999974E-6 : f32
    %370 = vector.broadcast %cst_159 : f32 to vector<16x1xf32>
    %371 = arith.addf %367, %370 : vector<16x1xf32>
    %372 = math.rsqrt %371 : vector<16x1xf32>
    %373 = vector.broadcast %372 : vector<16x1xf32> to vector<16x32xf32>
    %374 = arith.mulf %369, %373 : vector<16x32xf32>
    %c0_160 = arith.constant 0 : index
    %c0_161 = arith.constant 0 : index
    %375 = vector.load %arg8[%c0_160, %c0_161] : memref<32x128xf32, #tpu.memory_space<vmem>>, vector<32x128xf32>
    %cst_162 = arith.constant dense<0.000000e+00> : vector<16x128xf32>
    %376 = tpu.matmul %374, %375, %cst_162 {dimension_numbers = #tpu.dot_dimension_numbers<[1], [0], [0], [1], [0, 0, 1, 1], [], []>} : vector<16x32xf32>, vector<32x128xf32>, vector<16x128xf32> -> vector<16x128xf32>
    %c4_163 = arith.constant 4 : index
    %c0_164 = arith.constant 0 : index
    %377 = vector.load %arg3[%c4_163, %c0_164] : memref<8x128xf32, #tpu.memory_space<vmem>>, vector<1x128xf32>
    %378 = vector.broadcast %377 : vector<1x128xf32> to vector<16x128xf32>
    %379 = arith.addf %376, %378 : vector<16x128xf32>
    %c0_165 = arith.constant 0 : index
    %c0_166 = arith.constant 0 : index
    %380 = vector.load %arg9[%c0_165, %c0_166] : memref<16x128xf32, #tpu.memory_space<vmem>>, vector<16x128xf32>
    tpu.vector_store %arg9[%c0_165, %c0_166], %379 {strides = array<i32>} : memref<16x128xf32, #tpu.memory_space<vmem>>, vector<16x128xf32>,
    return
  }
}

</mosaic_0001>

<llo_original>
// kernel: tile.9
$region0: #{tile.9}
  %s0 = inlined_call_operand.vmem [shape: f32[2,5,32], index: 0, kind: input, shape index: {}]
  %s1 = inlined_call_operand.vmem [shape: f32[10,32], index: 1, kind: output, shape index: {}]
  %v2 = vld [vmem:[%s0] sm:$0x1f]
  %vm3 = vcmask 261120
  %4 = vst.msk [vmem:[%s1] sm:$0x1f] %vm3, %v2
  %s5 = scalar_lea.vmem %s0, 8
  %v6 = vld [vmem:[%s5] sm:$0x1f]
  %vm7 = vcmask 261120
  %s8 = scalar_lea.vmem %s1, 5
  %9 = vst.msk [vmem:[%s8] sm:$0x1f] %vm7, %v6

// kernel: multitask_forward.1
$region0: #{multitask_forward.1}
  #allocation0 [shape = 'u32[]', space=smem, size = 0x4, offset = 0x4, fixed_abs, tag = 'smem constant byte address 0x4 - core index']
  #allocation1 [shape = 'u32[144,128]{1,0:T(1,128)}', space=vmem, size = 0x12000, scoped, tag = 'internal scratch']
  %s0 = inlined_call_operand.vmem [shape: f32[16,288], index: 0, kind: input, shape index: {}]
  %s1 = inlined_call_operand.vmem [shape: f32[288,32], index: 1, kind: input, shape index: {}]
  %s2 = inlined_call_operand.vmem [shape: f32[8,32], index: 2, kind: input, shape index: {}]
  %s3 = inlined_call_operand.vmem [shape: f32[8,128], index: 3, kind: input, shape index: {}]
  %s4 = inlined_call_operand.vmem [shape: f32[2,32,96], index: 4, kind: input, shape index: {}]
  %s5 = inlined_call_operand.vmem [shape: f32[2,4,8,32], index: 5, kind: input, shape index: {}]
  %s6 = inlined_call_operand.vmem [shape: f32[2,32,128], index: 6, kind: input, shape index: {}]
  %s7 = inlined_call_operand.vmem [shape: f32[2,128,32], index: 7, kind: input, shape index: {}]
  %s8 = inlined_call_operand.vmem [shape: f32[32,128], index: 8, kind: input, shape index: {}]
  %s9 = inlined_call_operand.vmem [shape: f32[16,128], index: 9, kind: output, shape index: {}]
  %s10 = sld [smem:[#allocation0]]
  $region46: #{multitask_forward.1} parent=0
    _
  %s12 = ssub.s32 1, %s10
  %s13 = scalar_select 0, %s12, %s10
  // Predicated region
  $region2: #{multitask_forward.1} parent=0 // pred_check
    _
  $region3: #{multitask_forward.1} parent=0 // pred_check_branch
    %15 = sbr.rel (0) target = $region5
  $region4: #{multitask_forward.1} parent=0 // pred_region
    _
  $region5: #{multitask_forward.1} parent=0 // pred_fallthru
    _
  // Predicated region
  $region6: #{multitask_forward.1} parent=0 // pred_check
    _
  $region7: #{multitask_forward.1} parent=0 // pred_check_branch
    %17 = sbr.rel (0) target = $region9
  $region8: #{multitask_forward.1} parent=0 // pred_region
    _
  $region9: #{multitask_forward.1} parent=0 // pred_fallthru
    _
  // Predicated region
  $region10: #{multitask_forward.1} parent=0 // pred_check
    _
  $region11: #{multitask_forward.1} parent=0 // pred_check_branch
    %19 = sbr.rel (0) target = $region13
  $region12: #{multitask_forward.1} parent=0 // pred_region
    _
  $region13: #{multitask_forward.1} parent=0 // pred_fallthru
    _
  // Predicated region
  $region14: #{multitask_forward.1} parent=0 // pred_check
    _
  $region15: #{multitask_forward.1} parent=0 // pred_check_branch
    %21 = sbr.rel (0) target = $region17
  $region16: #{multitask_forward.1} parent=0 // pred_region
    _
  $region17: #{multitask_forward.1} parent=0 // pred_fallthru
    _
  // Predicated region
  $region18: #{multitask_forward.1} parent=0 // pred_check
    _
  $region19: #{multitask_forward.1} parent=0 // pred_check_branch
    %23 = sbr.rel (0) target = $region21
  $region20: #{multitask_forward.1} parent=0 // pred_region
    _
  $region21: #{multitask_forward.1} parent=0 // pred_fallthru
    _
  // Predicated region
  $region22: #{multitask_forward.1} parent=0 // pred_check
    _
  $region23: #{multitask_forward.1} parent=0 // pred_check_branch
    %25 = sbr.rel (0) target = $region25
  $region24: #{multitask_forward.1} parent=0 // pred_region
    _
  $region25: #{multitask_forward.1} parent=0 // pred_fallthru
    _
  // Predicated region
  $region26: #{multitask_forward.1} parent=0 // pred_check
    _
  $region27: #{multitask_forward.1} parent=0 // pred_check_branch
    %27 = sbr.rel (0) target = $region29
  $region28: #{multitask_forward.1} parent=0 // pred_region
    _
  $region29: #{multitask_forward.1} parent=0 // pred_fallthru
    _
  // Predicated region
  $region30: #{multitask_forward.1} parent=0 // pred_check
    _
  $region31: #{multitask_forward.1} parent=0 // pred_check_branch
    %29 = sbr.rel (0) target = $region33
  $region32: #{multitask_forward.1} parent=0 // pred_region
    _
  $region33: #{multitask_forward.1} parent=0 // pred_fallthru
    _
  // Predicated region
  $region34: #{multitask_forward.1} parent=0 // pred_check
    _
  $region35: #{multitask_forward.1} parent=0 // pred_check_branch
    %31 = sbr.rel (0) target = $region37
  $region36: #{multitask_forward.1} parent=0 // pred_region
    _
  $region37: #{multitask_forward.1} parent=0 // pred_fallthru
    _
  %v32 = vld [vmem:[%s0] sm:$0xff]
  %v33 = vld [vmem:[%s0 + $0x8] sm:$0xff]
  %v34 = vld [vmem:[%s0 + $0x10] sm:$0xff]
  %v35 = vld [vmem:[%s0 + $0x18] sm:$0xff]
  %v36 = vld [vmem:[%s0 + $0x20] sm:$0xff]
  %v37 = vld [vmem:[%s0 + $0x28] sm:$0xff]
  %v38 = vld [vmem:[%s1] sm:$0xff]
  %v39 = vld [vmem:[%s1 + $0x8] sm:$0xff]
  %v40 = vld [vmem:[%s1 + $0x10] sm:$0xff]
  %v41 = vld [vmem:[%s1 + $0x18] sm:$0xff]
  %v42 = vld [vmem:[%s1 + $0x20] sm:$0xff]
  %v43 = vld [vmem:[%s1 + $0x28] sm:$0xff]
  %v44 = vld [vmem:[%s1 + $0x30] sm:$0xff]
  %v45 = vld [vmem:[%s1 + $0x38] sm:$0xff]
  %v46 = vld [vmem:[%s1 + $0x40] sm:$0xff]
  %v47 = vld [vmem:[%s1 + $0x48] sm:$0xff]
  %v48 = vld [vmem:[%s1 + $0x50] sm:$0xff]
  %v49 = vld [vmem:[%s1 + $0x58] sm:$0xff]
  %v50 = vld [vmem:[%s1 + $0x60] sm:$0xff]
  %v51 = vld [vmem:[%s1 + $0x68] sm:$0xff]
  %v52 = vld [vmem:[%s1 + $0x70] sm:$0xff]
  %v53 = vld [vmem:[%s1 + $0x78] sm:$0xff]
  %v54 = vld [vmem:[%s1 + $0x80] sm:$0xff]
  %v55 = vld [vmem:[%s1 + $0x88] sm:$0xff]
  %v56 = vld [vmem:[%s1 + $0x90] sm:$0xff]
  %v57 = vld [vmem:[%s1 + $0x98] sm:$0xff]
  %v58 = vld [vmem:[%s1 + $0xa0] sm:$0xff]
  %v59 = vld [vmem:[%s1 + $0xa8] sm:$0xff]
  %v60 = vld [vmem:[%s1 + $0xb0] sm:$0xff]
  %v61 = vld [vmem:[%s1 + $0xb8] sm:$0xff]
  %v62 = vld [vmem:[%s1 + $0xc0] sm:$0xff]
  %v63 = vld [vmem:[%s1 + $0xc8] sm:$0xff]
  %v64 = vld [vmem:[%s1 + $0xd0] sm:$0xff]
  %v65 = vld [vmem:[%s1 + $0xd8] sm:$0xff]
  %v66 = vld [vmem:[%s1 + $0xe0] sm:$0xff]
  %v67 = vld [vmem:[%s1 + $0xe8] sm:$0xff]
  %v68 = vld [vmem:[%s1 + $0xf0] sm:$0xff]
  %v69 = vld [vmem:[%s1 + $0xf8] sm:$0xff]
  %v70 = vld [vmem:[%s1 + $0x100] sm:$0xff]
  %v71 = vld [vmem:[%s1 + $0x108] sm:$0xff]
  %v72 = vld [vmem:[%s1 + $0x110] sm:$0xff]
  %v73 = vld [vmem:[%s1 + $0x118] sm:$0xff]
  %vm74 = vcmask 261120
  %v76 = vsel %vm74, %v34, 0
  %v79 = vsel %vm74, %v37, 0
  %81 = vmatprep.subr.mxu0 0.0
  %82 = vmatpush1.msra.mxu0 %v38
  %83 = vmatprep.subr.mxu0 0.0
  %84 = vmatpush1.msra.mxu0 %v39
  %85 = vmatprep.subr.mxu0 0.0
  %86 = vmatpush1.msra.mxu0 %v40
  %87 = vmatprep.subr.mxu0 0.0
  %88 = vmatpush1.msra.mxu0 %v41
  %89 = vmatprep.subr.mxu0 0.0
  %90 = vmatpush1.msra.mxu0 %v42
  %91 = vmatprep.subr.mxu0 0.0
  %92 = vmatpush1.msra.mxu0 %v43
  %93 = vmatprep.subr.mxu0 0.0
  %94 = vmatpush1.msra.mxu0 %v44
  %95 = vmatprep.subr.mxu0 0.0
  %96 = vmatpush1.msra.mxu0 %v45
  %97 = vmatprep.subr.mxu0 0.0
  %98 = vmatpush1.msra.mxu0 %v46
  %99 = vmatprep.subr.mxu0 0.0
  %100 = vmatpush1.msra.mxu0 %v47
  %101 = vmatprep.subr.mxu0 0.0
  %102 = vmatpush1.msra.mxu0 %v48
  %103 = vmatprep.subr.mxu0 0.0
  %104 = vmatpush1.msra.mxu0 %v49
  %105 = vmatprep.subr.mxu0 0.0
  %106 = vmatpush1.msra.mxu0 %v50
  %107 = vmatprep.subr.mxu0 0.0
  %108 = vmatpush1.msra.mxu0 %v51
  %109 = vmatprep.subr.mxu0 0.0
  %110 = vmatpush1.msra.mxu0 %v52
  %111 = vmatprep.subr.mxu0 0.0
  %112 = vmatpush1.msra.mxu0 %v53
  %113 = vmatprep.subr.mxu0 0.0
  %114 = vmatpush1.msra.mxu0 %v54
  %115 = vmatprep.subr.mxu0 0.0
  %116 = vmatpush1.msra.mxu0 %v55
  %117 = vmatprep.subr.mxu0 0.0
  %118 = vmatpush1.msra.mxu0 %v56
  %119 = vmatprep.subr.mxu0 0.0
  %120 = vmatpush1.msra.mxu0 %v57
  %121 = vmatprep.subr.mxu0 0.0
  %122 = vmatpush1.msra.mxu0 %v58
  %123 = vmatprep.subr.mxu0 0.0
  %124 = vmatpush1.msra.mxu0 %v59
  %125 = vmatprep.subr.mxu0 0.0
  %126 = vmatpush1.msra.mxu0 %v60
  %127 = vmatprep.subr.mxu0 0.0
  %128 = vmatpush1.msra.mxu0 %v61
  %129 = vmatprep.subr.mxu0 0.0
  %130 = vmatpush1.msra.mxu0 %v62
  %131 = vmatprep.subr.mxu0 0.0
  %132 = vmatpush1.msra.mxu0 %v63
  %133 = vmatprep.subr.mxu0 0.0
  %134 = vmatpush1.msra.mxu0 %v64
  %135 = vmatprep.subr.mxu0 0.0
  %136 = vmatpush1.msra.mxu0 %v65
  %137 = vmatprep.subr.mxu0 0.0
  %138 = vmatpush1.msra.mxu0 %v66
  %139 = vmatprep.subr.mxu0 0.0
  %140 = vmatpush1.msra.mxu0 %v67
  %141 = vmatprep.subr.mxu0 0.0
  %142 = vmatpush1.msra.mxu0 %v68
  %143 = vmatprep.subr.mxu0 0.0
  %144 = vmatpush1.msra.mxu0 %v69
  %145 = vmatprep.mubr.f32.mxu0 %v33
  %146 = vmatmul.mubr.f32.gmra.mrb[0].mxu0 %v32
  %v147 = vpop.f32.mrb[0].mxu0
  %v148 = vadd.f32 0.0, %v147
  %v149 = vpop.f32.mrb[0].mxu0
  %150 = vmatprep.mubr.f32.mxu0 %v36
  %151 = vmatmul.mubr.f32.gmra.mrb[0].mxu0 %v35
  %v152 = vpop.f32.mrb[0].mxu0
  %v153 = vadd.f32 0.0, %v152
  %v154 = vpop.f32.mrb[0].mxu0
  %155 = vdwg.mxu0
  %156 = vmatprep.subr.mxu0 0.0
  %157 = vmatpush1.msra.mxu0 %v70
  %158 = vmatprep.subr.mxu0 0.0
  %159 = vmatpush1.msra.mxu0 %v71
  %160 = vmatprep.subr.mxu0 0.0
  %161 = vmatpush1.msra.mxu0 %v72
  %162 = vmatprep.subr.mxu0 0.0
  %163 = vmatpush1.msra.mxu0 %v73
  %164 = vmatprep.subr.mxu0 0.0
  %165 = vmatpush1.msra.mxu0 0.0
  %166 = vmatprep.subr.mxu0 0.0
  %167 = vmatpush1.msra.mxu0 0.0
  %168 = vmatprep.subr.mxu0 0.0
  %169 = vmatpush1.msra.mxu0 0.0
  %170 = vmatprep.subr.mxu0 0.0
  %171 = vmatpush1.msra.mxu0 0.0
  %172 = vmatprep.subr.mxu0 0.0
  %173 = vmatpush1.msra.mxu0 0.0
  %174 = vmatprep.subr.mxu0 0.0
  %175 = vmatpush1.msra.mxu0 0.0
  %176 = vmatprep.subr.mxu0 0.0
  %177 = vmatpush1.msra.mxu0 0.0
  %178 = vmatprep.subr.mxu0 0.0
  %179 = vmatpush1.msra.mxu0 0.0
  %180 = vmatprep.subr.mxu0 0.0
  %181 = vmatpush1.msra.mxu0 0.0
  %182 = vmatprep.subr.mxu0 0.0
  %183 = vmatpush1.msra.mxu0 0.0
  %184 = vmatprep.subr.mxu0 0.0
  %185 = vmatpush1.msra.mxu0 0.0
  %186 = vmatprep.subr.mxu0 0.0
  %187 = vmatpush1.msra.mxu0 0.0
  %188 = vmatprep.subr.mxu0 0.0
  %189 = vmatpush1.msra.mxu0 0.0
  %190 = vmatprep.subr.mxu0 0.0
  %191 = vmatpush1.msra.mxu0 0.0
  %192 = vmatprep.subr.mxu0 0.0
  %193 = vmatpush1.msra.mxu0 0.0
  %194 = vmatprep.subr.mxu0 0.0
  %195 = vmatpush1.msra.mxu0 0.0
  %196 = vmatprep.subr.mxu0 0.0
  %197 = vmatpush1.msra.mxu0 0.0
  %198 = vmatprep.subr.mxu0 0.0
  %199 = vmatpush1.msra.mxu0 0.0
  %200 = vmatprep.subr.mxu0 0.0
  %201 = vmatpush1.msra.mxu0 0.0
  %202 = vmatprep.subr.mxu0 0.0
  %203 = vmatpush1.msra.mxu0 0.0
  %204 = vmatprep.subr.mxu0 0.0
  %205 = vmatpush1.msra.mxu0 0.0
  %206 = vmatprep.subr.mxu0 0.0
  %207 = vmatpush1.msra.mxu0 0.0
  %208 = vmatprep.subr.mxu0 0.0
  %209 = vmatpush1.msra.mxu0 0.0
  %210 = vmatprep.subr.mxu0 0.0
  %211 = vmatpush1.msra.mxu0 0.0
  %212 = vmatprep.subr.mxu0 0.0
  %213 = vmatpush1.msra.mxu0 0.0
  %214 = vmatprep.subr.mxu0 0.0
  %215 = vmatpush1.msra.mxu0 0.0
  %216 = vmatprep.subr.mxu0 0.0
  %217 = vmatpush1.msra.mxu0 0.0
  %218 = vmatprep.subr.mxu0 0.0
  %219 = vmatpush1.msra.mxu0 0.0
  %220 = vmatprep.mubr.f32.mxu0 0.0
  %221 = vmatmul.mubr.f32.gmra.mrb[0].mxu0 %v76
  %v222 = vpop.f32.mrb[0].mxu0
  %v223 = vadd.f32 %v148, %v222
  %v224 = vpop.f32.mrb[0].mxu0
  %225 = vmatprep.mubr.f32.mxu0 0.0
  %226 = vmatmul.mubr.f32.gmra.mrb[0].mxu0 %v79
  %v227 = vpop.f32.mrb[0].mxu0
  %v228 = vadd.f32 %v153, %v227
  %v229 = vpop.f32.mrb[0].mxu0
  %230 = vdwg.mxu0
  %v231 = vsel %vm74, %v223, 0.0
  %232 = vadd.xlane.f32.xlu0 %v231
  %v233 = vpop.xlane.xlu0 %232
  %v234 = vsel %vm74, %v228, 0.0
  %235 = vadd.xlane.f32.xlu0 %v234
  %v236 = vpop.xlane.xlu0 %235
  %v237 = vrcp.pop 32.0
  %v238 = vmul.f32 %v233, %v237
  %v239 = vmul.f32 %v236, %v237
  %v240 = vsub.f32 %v223, %v238
  %v241 = vsub.f32 %v228, %v239
  %v242 = vmul.f32 %v240, %v240
  %v243 = vmul.f32 %v241, %v241
  %v244 = vsel %vm74, %v242, 0.0
  %245 = vadd.xlane.f32.xlu0 %v244
  %v246 = vpop.xlane.xlu0 %245
  %v247 = vsel %vm74, %v243, 0.0
  %248 = vadd.xlane.f32.xlu0 %v247
  %v249 = vpop.xlane.xlu0 %248
  %v250 = vmul.f32 %v246, %v237
  %v251 = vmul.f32 %v249, %v237
  %v252 = vadd.f32 %v250, 1e-05
  %v253 = vadd.f32 %v251, 1e-05
  %v254 = vrsqrt.pop %v252
  %v255 = vrsqrt.pop %v253
  %v256 = vmul.f32 %v240, %v254
  %v257 = vmul.f32 %v241, %v255
  %v258 = vld [vmem:[%s2] sm:$0x1]
  %v259 = vlaneseq
  %v260 = vshrl.u32 %v259, 7
  %v261 = vsub.s32 0, %v260
  %v262 = vrot.slane %v258, %v261
  %v263 = vmul.f32 %v256, %v262
  %v264 = vmul.f32 %v257, %v262
  %v265 = vld [vmem:[%s2 + $0x1] sm:$0x1]
  %v266 = vlaneseq
  %v267 = vshrl.u32 %v266, 7
  %v268 = vsub.s32 0, %v267
  %v269 = vrot.slane %v265, %v268
  %v270 = vadd.f32 %v263, %v269
  %v271 = vadd.f32 %v264, %v269
  %v272 = vlaneseq
  %v273 = vshrl.u32 %v272, 7
  %v274 = vadd.s32 %v273, 8
  %v275 = vlaneseq
  %v276 = vand.u32 %v275, 127
  %vm277 = vcmp.ge.s32.totalorder %v273, 5
  %vm278 = vcmp.ge.s32.totalorder %v274, 5
  %v279 = vsel %vm277, 1, 0
  %v280 = vsel %vm278, 1, 0
  %vm281 = vcmp.ge.s32.totalorder %v276, 5
  %v282 = vsel %vm281, 1, 0
  %vm283 = vcmp.ge.s32.totalorder %v273, 10
  %vm284 = vcmp.ge.s32.totalorder %v274, 10
  %v285 = vsel %vm283, 1, 0
  %v286 = vsel %vm284, 1, 0
  %v287 = vadd.s32 %v279, %v285
  %v288 = vadd.s32 %v280, %v286
  %vm289 = vcmp.ge.s32.totalorder %v276, 10
  %v290 = vsel %vm289, 1, 0
  %v291 = vadd.s32 %v282, %v290
  %vm292 = vcmp.ge.s32.totalorder %v273, 15
  %vm293 = vcmp.ge.s32.totalorder %v274, 15
  %v294 = vsel %vm292, 1, 0
  %v295 = vsel %vm293, 1, 0
  %v296 = vadd.s32 %v287, %v294
  %v297 = vadd.s32 %v288, %v295
  %vm298 = vcmp.ge.s32.totalorder %v276, 15
  %v299 = vsel %vm298, 1, 0
  %v300 = vadd.s32 %v291, %v299
  %vm301 = vcmp.eq.s32.totalorder %v296, %v300
  %vm302 = vcmp.eq.s32.totalorder %v297, %v300
  %v303 = vsel %vm301, 0.0, -1e+30
  %v304 = vsel %vm302, 0.0, -1e+30
  %v305 = vsel %vm74, %v270, 0.0
  %306 = vadd.xlane.f32.xlu0 %v305
  %v307 = vpop.xlane.xlu0 %306
  %v308 = vsel %vm74, %v271, 0.0
  %309 = vadd.xlane.f32.xlu0 %v308
  %v310 = vpop.xlane.xlu0 %309
  %v311 = vmul.f32 %v307, %v237
  %v312 = vmul.f32 %v310, %v237
  %v313 = vsub.f32 %v270, %v311
  %v314 = vsub.f32 %v271, %v312
  %v315 = vmul.f32 %v313, %v313
  %v316 = vmul.f32 %v314, %v314
  %v317 = vsel %vm74, %v315, 0.0
  %318 = vadd.xlane.f32.xlu0 %v317
  %v319 = vpop.xlane.xlu0 %318
  %v320 = vsel %vm74, %v316, 0.0
  %321 = vadd.xlane.f32.xlu0 %v320
  %v322 = vpop.xlane.xlu0 %321
  %v323 = vmul.f32 %v319, %v237
  %v324 = vmul.f32 %v322, %v237
  %v325 = vadd.f32 %v323, 1e-05
  %v326 = vadd.f32 %v324, 1e-05
  %v327 = vrsqrt.pop %v325
  %v328 = vrsqrt.pop %v326
  %v329 = vmul.f32 %v313, %v327
  %v330 = vmul.f32 %v314, %v328
  %v331 = vld [vmem:[%s4] sm:$0xff]
  %v332 = vld [vmem:[%s4 + $0x8] sm:$0xff]
  %v333 = vld [vmem:[%s4 + $0x10] sm:$0xff]
  %v334 = vld [vmem:[%s4 + $0x18] sm:$0xff]
  %v335 = vld [vmem:[%s3] sm:$0x1]
  %v336 = vlaneseq
  %v337 = vshrl.u32 %v336, 7
  %v338 = vsub.s32 0, %v337
  %v339 = vrot.slane %v335, %v338
  %v341 = vsel %vm74, %v329, 0
  %v344 = vsel %vm74, %v330, 0
  %346 = vmatprep.subr.mxu0 0.0
  %347 = vmatpush1.msra.mxu0 %v331
  %348 = vmatprep.subr.mxu0 0.0
  %349 = vmatpush1.msra.mxu0 %v332
  %350 = vmatprep.subr.mxu0 0.0
  %351 = vmatpush1.msra.mxu0 %v333
  %352 = vmatprep.subr.mxu0 0.0
  %353 = vmatpush1.msra.mxu0 %v334
  %354 = vmatprep.subr.mxu0 0.0
  %355 = vmatpush1.msra.mxu0 0.0
  %356 = vmatprep.subr.mxu0 0.0
  %357 = vmatpush1.msra.mxu0 0.0
  %358 = vmatprep.subr.mxu0 0.0
  %359 = vmatpush1.msra.mxu0 0.0
  %360 = vmatprep.subr.mxu0 0.0
  %361 = vmatpush1.msra.mxu0 0.0
  %362 = vmatprep.subr.mxu0 0.0
  %363 = vmatpush1.msra.mxu0 0.0
  %364 = vmatprep.subr.mxu0 0.0
  %365 = vmatpush1.msra.mxu0 0.0
  %366 = vmatprep.subr.mxu0 0.0
  %367 = vmatpush1.msra.mxu0 0.0
  %368 = vmatprep.subr.mxu0 0.0
  %369 = vmatpush1.msra.mxu0 0.0
  %370 = vmatprep.subr.mxu0 0.0
  %371 = vmatpush1.msra.mxu0 0.0
  %372 = vmatprep.subr.mxu0 0.0
  %373 = vmatpush1.msra.mxu0 0.0
  %374 = vmatprep.subr.mxu0 0.0
  %375 = vmatpush1.msra.mxu0 0.0
  %376 = vmatprep.subr.mxu0 0.0
  %377 = vmatpush1.msra.mxu0 0.0
  %378 = vmatprep.subr.mxu0 0.0
  %379 = vmatpush1.msra.mxu0 0.0
  %380 = vmatprep.subr.mxu0 0.0
  %381 = vmatpush1.msra.mxu0 0.0
  %382 = vmatprep.subr.mxu0 0.0
  %383 = vmatpush1.msra.mxu0 0.0
  %384 = vmatprep.subr.mxu0 0.0
  %385 = vmatpush1.msra.mxu0 0.0
  %386 = vmatprep.subr.mxu0 0.0
  %387 = vmatpush1.msra.mxu0 0.0
  %388 = vmatprep.subr.mxu0 0.0
  %389 = vmatpush1.msra.mxu0 0.0
  %390 = vmatprep.subr.mxu0 0.0
  %391 = vmatpush1.msra.mxu0 0.0
  %392 = vmatprep.subr.mxu0 0.0
  %393 = vmatpush1.msra.mxu0 0.0
  %394 = vmatprep.subr.mxu0 0.0
  %395 = vmatpush1.msra.mxu0 0.0
  %396 = vmatprep.subr.mxu0 0.0
  %397 = vmatpush1.msra.mxu0 0.0
  %398 = vmatprep.subr.mxu0 0.0
  %399 = vmatpush1.msra.mxu0 0.0
  %400 = vmatprep.subr.mxu0 0.0
  %401 = vmatpush1.msra.mxu0 0.0
  %402 = vmatprep.subr.mxu0 0.0
  %403 = vmatpush1.msra.mxu0 0.0
  %404 = vmatprep.subr.mxu0 0.0
  %405 = vmatpush1.msra.mxu0 0.0
  %406 = vmatprep.subr.mxu0 0.0
  %407 = vmatpush1.msra.mxu0 0.0
  %408 = vmatprep.subr.mxu0 0.0
  %409 = vmatpush1.msra.mxu0 0.0
  %410 = vmatprep.mubr.f32.mxu0 0.0
  %411 = vmatmul.mubr.f32.gmra.mrb[0].mxu0 %v341
  %v412 = vpop.f32.mrb[0].mxu0
  %v413 = vadd.f32 %v339, %v412
  %v414 = vpop.f32.mrb[0].mxu0
  %415 = vmatprep.mubr.f32.mxu0 0.0
  %416 = vmatmul.mubr.f32.gmra.mrb[0].mxu0 %v344
  %v417 = vpop.f32.mrb[0].mxu0
  %v418 = vadd.f32 %v339, %v417
  %v419 = vpop.f32.mrb[0].mxu0
  %420 = vdwg.mxu0
  %423 = vrot.lane.b32.xlu0 %v413, 96
  %v424 = vpop.permute.xlu0 %423
  %425 = vrot.lane.b32.xlu0 %v418, 96
  %v426 = vpop.permute.xlu0 %425
  %vm427 = vcmask 64512
  %v428 = vsel %vm427, %v413, 0
  %v430 = vsel %vm427, %v418, 0
  %v432 = vsel %vm427, %v424, 0
  %v434 = vsel %vm427, %v426, 0
  %436 = vmatprep.subr.mxu0 0.0
  %437 = vmatpush1.xpose.msra.mxu0 %v432
  %438 = vmatprep.subr.mxu0 0.0
  %439 = vmatpush1.xpose.msra.mxu0 %v434
  %440 = vmatprep.subr.mxu0 0.0
  %441 = vmatpush1.xpose.msra.mxu0 0.0
  %442 = vmatprep.subr.mxu0 0.0
  %443 = vmatpush1.xpose.msra.mxu0 0.0
  %444 = vmatprep.subr.mxu0 0.0
  %445 = vmatpush1.xpose.msra.mxu0 0.0
  %446 = vmatprep.subr.mxu0 0.0
  %447 = vmatpush1.xpose.msra.mxu0 0.0
  %448 = vmatprep.subr.mxu0 0.0
  %449 = vmatpush1.xpose.msra.mxu0 0.0
  %450 = vmatprep.subr.mxu0 0.0
  %451 = vmatpush1.xpose.msra.mxu0 0.0
  %452 = vmatprep.subr.mxu0 0.0
  %453 = vmatpush1.xpose.msra.mxu0 0.0
  %454 = vmatprep.subr.mxu0 0.0
  %455 = vmatpush1.xpose.msra.mxu0 0.0
  %456 = vmatprep.subr.mxu0 0.0
  %457 = vmatpush1.xpose.msra.mxu0 0.0
  %458 = vmatprep.subr.mxu0 0.0
  %459 = vmatpush1.xpose.msra.mxu0 0.0
  %460 = vmatprep.subr.mxu0 0.0
  %461 = vmatpush1.xpose.msra.mxu0 0.0
  %462 = vmatprep.subr.mxu0 0.0
  %463 = vmatpush1.xpose.msra.mxu0 0.0
  %464 = vmatprep.subr.mxu0 0.0
  %465 = vmatpush1.xpose.msra.mxu0 0.0
  %466 = vmatprep.subr.mxu0 0.0
  %467 = vmatpush1.xpose.msra.mxu0 0.0
  %468 = vmatprep.subr.mxu0 0.0
  %469 = vmatpush1.xpose.msra.mxu0 0.0
  %470 = vmatprep.subr.mxu0 0.0
  %471 = vmatpush1.xpose.msra.mxu0 0.0
  %472 = vmatprep.subr.mxu0 0.0
  %473 = vmatpush1.xpose.msra.mxu0 0.0
  %474 = vmatprep.subr.mxu0 0.0
  %475 = vmatpush1.xpose.msra.mxu0 0.0
  %476 = vmatprep.subr.mxu0 0.0
  %477 = vmatpush1.xpose.msra.mxu0 0.0
  %478 = vmatprep.subr.mxu0 0.0
  %479 = vmatpush1.xpose.msra.mxu0 0.0
  %480 = vmatprep.subr.mxu0 0.0
  %481 = vmatpush1.xpose.msra.mxu0 0.0
  %482 = vmatprep.subr.mxu0 0.0
  %483 = vmatpush1.xpose.msra.mxu0 0.0
  %484 = vmatprep.subr.mxu0 0.0
  %485 = vmatpush1.xpose.msra.mxu0 0.0
  %486 = vmatprep.subr.mxu0 0.0
  %487 = vmatpush1.xpose.msra.mxu0 0.0
  %488 = vmatprep.subr.mxu0 0.0
  %489 = vmatpush1.xpose.msra.mxu0 0.0
  %490 = vmatprep.subr.mxu0 0.0
  %491 = vmatpush1.xpose.msra.mxu0 0.0
  %492 = vmatprep.subr.mxu0 0.0
  %493 = vmatpush1.xpose.msra.mxu0 0.0
  %494 = vmatprep.subr.mxu0 0.0
  %495 = vmatpush1.xpose.msra.mxu0 0.0
  %496 = vmatprep.subr.mxu0 0.0
  %497 = vmatpush1.xpose.msra.mxu0 0.0
  %498 = vmatprep.subr.mxu0 0.0
  %499 = vmatpush1.xpose.msra.mxu0 0.0
  %500 = vmatprep.mubr.f32.mxu0 0.0
  %501 = vmatmul.mubr.f32.gmra.mrb[0].mxu0 %v428
  %v502 = vpop.f32.mrb[0].mxu0
  %v503 = vadd.f32 %v303, %v502
  %v504 = vpop.f32.mrb[0].mxu0
  %505 = vmatprep.mubr.f32.mxu0 0.0
  %506 = vmatmul.mubr.f32.gmra.mrb[0].mxu0 %v430
  %v507 = vpop.f32.mrb[0].mxu0
  %v508 = vadd.f32 %v304, %v507
  %v509 = vpop.f32.mrb[0].mxu0
  %510 = vdwg.mxu0
  %vm511 = vcmask 130048
  %v512 = vsel %vm511, %v503, -inf
  %513 = vmax.xlane.f32.xlu0 %v512
  %v514 = vpop.xlane.xlu0 %513
  %v515 = vsel %vm511, %v508, -inf
  %516 = vmax.xlane.f32.xlu0 %v515
  %v517 = vpop.xlane.xlu0 %516
  %v518 = vsub.f32 %v503, %v514
  %v519 = vsub.f32 %v508, %v517
  %v520 = vmul.f32 %v518, 1.442695
  %v521 = vpow.pop %v520
  %v522 = vmul.f32 %v519, 1.442695
  %v523 = vpow.pop %v522
  %v524 = vsel %vm511, %v521, 0.0
  %525 = vadd.xlane.f32.xlu0 %v524
  %v526 = vpop.xlane.xlu0 %525
  %v527 = vsel %vm511, %v523, 0.0
  %528 = vadd.xlane.f32.xlu0 %v527
  %v529 = vpop.xlane.xlu0 %528
  %v530 = vrcp.pop %v526
  %v531 = vmul.f32 %v521, %v530
  %v532 = vrcp.pop %v529
  %v533 = vmul.f32 %v523, %v532
  %534 = vrot.lane.b32.xlu0 %v413, 64
  %v535 = vpop.permute.xlu0 %534
  %536 = vrot.lane.b32.xlu0 %v418, 64
  %v537 = vpop.permute.xlu0 %536
  %v541 = vsel %vm511, %v531, 0
  %v544 = vsel %vm511, %v533, 0
  %546 = vmatprep.subr.mxu0 0.0
  %547 = vmatpush1.msra.mxu0 %v535
  %548 = vmatprep.subr.mxu0 0.0
  %549 = vmatpush1.msra.mxu0 %v537
  %550 = vmatprep.subr.mxu0 0.0
  %551 = vmatpush1.msra.mxu0 0.0
  %552 = vmatprep.subr.mxu0 0.0
  %553 = vmatpush1.msra.mxu0 0.0
  %554 = vmatprep.subr.mxu0 0.0
  %555 = vmatpush1.msra.mxu0 0.0
  %556 = vmatprep.subr.mxu0 0.0
  %557 = vmatpush1.msra.mxu0 0.0
  %558 = vmatprep.subr.mxu0 0.0
  %559 = vmatpush1.msra.mxu0 0.0
  %560 = vmatprep.subr.mxu0 0.0
  %561 = vmatpush1.msra.mxu0 0.0
  %562 = vmatprep.subr.mxu0 0.0
  %563 = vmatpush1.msra.mxu0 0.0
  %564 = vmatprep.subr.mxu0 0.0
  %565 = vmatpush1.msra.mxu0 0.0
  %566 = vmatprep.subr.mxu0 0.0
  %567 = vmatpush1.msra.mxu0 0.0
  %568 = vmatprep.subr.mxu0 0.0
  %569 = vmatpush1.msra.mxu0 0.0
  %570 = vmatprep.subr.mxu0 0.0
  %571 = vmatpush1.msra.mxu0 0.0
  %572 = vmatprep.subr.mxu0 0.0
  %573 = vmatpush1.msra.mxu0 0.0
  %574 = vmatprep.subr.mxu0 0.0
  %575 = vmatpush1.msra.mxu0 0.0
  %576 = vmatprep.subr.mxu0 0.0
  %577 = vmatpush1.msra.mxu0 0.0
  %578 = vmatprep.subr.mxu0 0.0
  %579 = vmatpush1.msra.mxu0 0.0
  %580 = vmatprep.subr.mxu0 0.0
  %581 = vmatpush1.msra.mxu0 0.0
  %582 = vmatprep.subr.mxu0 0.0
  %583 = vmatpush1.msra.mxu0 0.0
  %584 = vmatprep.subr.mxu0 0.0
  %585 = vmatpush1.msra.mxu0 0.0
  %586 = vmatprep.subr.mxu0 0.0
  %587 = vmatpush1.msra.mxu0 0.0
  %588 = vmatprep.subr.mxu0 0.0
  %589 = vmatpush1.msra.mxu0 0.0
  %590 = vmatprep.subr.mxu0 0.0
  %591 = vmatpush1.msra.mxu0 0.0
  %592 = vmatprep.subr.mxu0 0.0
  %593 = vmatpush1.msra.mxu0 0.0
  %594 = vmatprep.subr.mxu0 0.0
  %595 = vmatpush1.msra.mxu0 0.0
  %596 = vmatprep.subr.mxu0 0.0
  %597 = vmatpush1.msra.mxu0 0.0
  %598 = vmatprep.subr.mxu0 0.0
  %599 = vmatpush1.msra.mxu0 0.0
  %600 = vmatprep.subr.mxu0 0.0
  %601 = vmatpush1.msra.mxu0 0.0
  %602 = vmatprep.subr.mxu0 0.0
  %603 = vmatpush1.msra.mxu0 0.0
  %604 = vmatprep.subr.mxu0 0.0
  %605 = vmatpush1.msra.mxu0 0.0
  %606 = vmatprep.subr.mxu0 0.0
  %607 = vmatpush1.msra.mxu0 0.0
  %608 = vmatprep.subr.mxu0 0.0
  %609 = vmatpush1.msra.mxu0 0.0
  %610 = vmatprep.mubr.f32.mxu0 0.0
  %611 = vmatmul.mubr.f32.gmra.mrb[0].mxu0 %v541
  %v612 = vpop.f32.mrb[0].mxu0
  %v613 = vadd.f32 0.0, %v612
  %v614 = vpop.f32.mrb[0].mxu0
  %615 = vmatprep.mubr.f32.mxu0 0.0
  %616 = vmatmul.mubr.f32.gmra.mrb[0].mxu0 %v544
  %v617 = vpop.f32.mrb[0].mxu0
  %v618 = vadd.f32 0.0, %v617
  %v619 = vpop.f32.mrb[0].mxu0
  %620 = vdwg.mxu0
  %v621 = vld [vmem:[%s5] sm:$0xff]
  %622 = vrot.lane.b32.xlu0 %v413, 120
  %v623 = vpop.permute.xlu0 %622
  %624 = vrot.lane.b32.xlu0 %v418, 120
  %v625 = vpop.permute.xlu0 %624
  %626 = vrot.lane.b32.xlu0 %v413, 88
  %v627 = vpop.permute.xlu0 %626
  %628 = vrot.lane.b32.xlu0 %v418, 88
  %v629 = vpop.permute.xlu0 %628
  %v630 = vsel %vm427, %v623, 0
  %v632 = vsel %vm427, %v625, 0
  %v634 = vsel %vm427, %v627, 0
  %v636 = vsel %vm427, %v629, 0
  %638 = vmatprep.subr.mxu0 0.0
  %639 = vmatpush1.xpose.msra.mxu0 %v634
  %640 = vmatprep.subr.mxu0 0.0
  %641 = vmatpush1.xpose.msra.mxu0 %v636
  %642 = vmatprep.subr.mxu0 0.0
  %643 = vmatpush1.xpose.msra.mxu0 0.0
  %644 = vmatprep.subr.mxu0 0.0
  %645 = vmatpush1.xpose.msra.mxu0 0.0
  %646 = vmatprep.subr.mxu0 0.0
  %647 = vmatpush1.xpose.msra.mxu0 0.0
  %648 = vmatprep.subr.mxu0 0.0
  %649 = vmatpush1.xpose.msra.mxu0 0.0
  %650 = vmatprep.subr.mxu0 0.0
  %651 = vmatpush1.xpose.msra.mxu0 0.0
  %652 = vmatprep.subr.mxu0 0.0
  %653 = vmatpush1.xpose.msra.mxu0 0.0
  %654 = vmatprep.subr.mxu0 0.0
  %655 = vmatpush1.xpose.msra.mxu0 0.0
  %656 = vmatprep.subr.mxu0 0.0
  %657 = vmatpush1.xpose.msra.mxu0 0.0
  %658 = vmatprep.subr.mxu0 0.0
  %659 = vmatpush1.xpose.msra.mxu0 0.0
  %660 = vmatprep.subr.mxu0 0.0
  %661 = vmatpush1.xpose.msra.mxu0 0.0
  %662 = vmatprep.subr.mxu0 0.0
  %663 = vmatpush1.xpose.msra.mxu0 0.0
  %664 = vmatprep.subr.mxu0 0.0
  %665 = vmatpush1.xpose.msra.mxu0 0.0
  %666 = vmatprep.subr.mxu0 0.0
  %667 = vmatpush1.xpose.msra.mxu0 0.0
  %668 = vmatprep.subr.mxu0 0.0
  %669 = vmatpush1.xpose.msra.mxu0 0.0
  %670 = vmatprep.subr.mxu0 0.0
  %671 = vmatpush1.xpose.msra.mxu0 0.0
  %672 = vmatprep.subr.mxu0 0.0
  %673 = vmatpush1.xpose.msra.mxu0 0.0
  %674 = vmatprep.subr.mxu0 0.0
  %675 = vmatpush1.xpose.msra.mxu0 0.0
  %676 = vmatprep.subr.mxu0 0.0
  %677 = vmatpush1.xpose.msra.mxu0 0.0
  %678 = vmatprep.subr.mxu0 0.0
  %679 = vmatpush1.xpose.msra.mxu0 0.0
  %680 = vmatprep.subr.mxu0 0.0
  %681 = vmatpush1.xpose.msra.mxu0 0.0
  %682 = vmatprep.subr.mxu0 0.0
  %683 = vmatpush1.xpose.msra.mxu0 0.0
  %684 = vmatprep.subr.mxu0 0.0
  %685 = vmatpush1.xpose.msra.mxu0 0.0
  %686 = vmatprep.subr.mxu0 0.0
  %687 = vmatpush1.xpose.msra.mxu0 0.0
  %688 = vmatprep.subr.mxu0 0.0
  %689 = vmatpush1.xpose.msra.mxu0 0.0
  %690 = vmatprep.subr.mxu0 0.0
  %691 = vmatpush1.xpose.msra.mxu0 0.0
  %692 = vmatprep.subr.mxu0 0.0
  %693 = vmatpush1.xpose.msra.mxu0 0.0
  %694 = vmatprep.subr.mxu0 0.0
  %695 = vmatpush1.xpose.msra.mxu0 0.0
  %696 = vmatprep.subr.mxu0 0.0
  %697 = vmatpush1.xpose.msra.mxu0 0.0
  %698 = vmatprep.subr.mxu0 0.0
  %699 = vmatpush1.xpose.msra.mxu0 0.0
  %700 = vmatprep.subr.mxu0 0.0
  %701 = vmatpush1.xpose.msra.mxu0 0.0
  %702 = vmatprep.mubr.f32.mxu0 0.0
  %703 = vmatmul.mubr.f32.gmra.mrb[0].mxu0 %v630
  %v704 = vpop.f32.mrb[0].mxu0
  %v705 = vadd.f32 %v303, %v704
  %v706 = vpop.f32.mrb[0].mxu0
  %707 = vmatprep.mubr.f32.mxu0 0.0
  %708 = vmatmul.mubr.f32.gmra.mrb[0].mxu0 %v632
  %v709 = vpop.f32.mrb[0].mxu0
  %v710 = vadd.f32 %v304, %v709
  %v711 = vpop.f32.mrb[0].mxu0
  %712 = vdwg.mxu0
  %v713 = vsel %vm511, %v705, -inf
  %714 = vmax.xlane.f32.xlu0 %v713
  %v715 = vpop.xlane.xlu0 %714
  %v716 = vsel %vm511, %v710, -inf
  %717 = vmax.xlane.f32.xlu0 %v716
  %v718 = vpop.xlane.xlu0 %717
  %v719 = vsub.f32 %v705, %v715
  %v720 = vsub.f32 %v710, %v718
  %v721 = vmul.f32 %v719, 1.442695
  %v722 = vpow.pop %v721
  %v723 = vmul.f32 %v720, 1.442695
  %v724 = vpow.pop %v723
  %v725 = vsel %vm511, %v722, 0.0
  %726 = vadd.xlane.f32.xlu0 %v725
  %v727 = vpop.xlane.xlu0 %726
  %v728 = vsel %vm511, %v724, 0.0
  %729 = vadd.xlane.f32.xlu0 %v728
  %v730 = vpop.xlane.xlu0 %729
  %v731 = vrcp.pop %v727
  %v732 = vmul.f32 %v722, %v731
  %v733 = vrcp.pop %v730
  %v734 = vmul.f32 %v724, %v733
  %735 = vrot.lane.b32.xlu0 %v413, 56
  %v736 = vpop.permute.xlu0 %735
  %737 = vrot.lane.b32.xlu0 %v418, 56
  %v738 = vpop.permute.xlu0 %737
  %v742 = vsel %vm511, %v732, 0
  %v745 = vsel %vm511, %v734, 0
  %747 = vmatprep.subr.mxu0 0.0
  %748 = vmatpush1.msra.mxu0 %v736
  %749 = vmatprep.subr.mxu0 0.0
  %750 = vmatpush1.msra.mxu0 %v738
  %751 = vmatprep.subr.mxu0 0.0
  %752 = vmatpush1.msra.mxu0 0.0
  %753 = vmatprep.subr.mxu0 0.0
  %754 = vmatpush1.msra.mxu0 0.0
  %755 = vmatprep.subr.mxu0 0.0
  %756 = vmatpush1.msra.mxu0 0.0
  %757 = vmatprep.subr.mxu0 0.0
  %758 = vmatpush1.msra.mxu0 0.0
  %759 = vmatprep.subr.mxu0 0.0
  %760 = vmatpush1.msra.mxu0 0.0
  %761 = vmatprep.subr.mxu0 0.0
  %762 = vmatpush1.msra.mxu0 0.0
  %763 = vmatprep.subr.mxu0 0.0
  %764 = vmatpush1.msra.mxu0 0.0
  %765 = vmatprep.subr.mxu0 0.0
  %766 = vmatpush1.msra.mxu0 0.0
  %767 = vmatprep.subr.mxu0 0.0
  %768 = vmatpush1.msra.mxu0 0.0
  %769 = vmatprep.subr.mxu0 0.0
  %770 = vmatpush1.msra.mxu0 0.0
  %771 = vmatprep.subr.mxu0 0.0
  %772 = vmatpush1.msra.mxu0 0.0
  %773 = vmatprep.subr.mxu0 0.0
  %774 = vmatpush1.msra.mxu0 0.0
  %775 = vmatprep.subr.mxu0 0.0
  %776 = vmatpush1.msra.mxu0 0.0
  %777 = vmatprep.subr.mxu0 0.0
  %778 = vmatpush1.msra.mxu0 0.0
  %779 = vmatprep.subr.mxu0 0.0
  %780 = vmatpush1.msra.mxu0 0.0
  %781 = vmatprep.subr.mxu0 0.0
  %782 = vmatpush1.msra.mxu0 0.0
  %783 = vmatprep.subr.mxu0 0.0
  %784 = vmatpush1.msra.mxu0 0.0
  %785 = vmatprep.subr.mxu0 0.0
  %786 = vmatpush1.msra.mxu0 0.0
  %787 = vmatprep.subr.mxu0 0.0
  %788 = vmatpush1.msra.mxu0 0.0
  %789 = vmatprep.subr.mxu0 0.0
  %790 = vmatpush1.msra.mxu0 0.0
  %791 = vmatprep.subr.mxu0 0.0
  %792 = vmatpush1.msra.mxu0 0.0
  %793 = vmatprep.subr.mxu0 0.0
  %794 = vmatpush1.msra.mxu0 0.0
  %795 = vmatprep.subr.mxu0 0.0
  %796 = vmatpush1.msra.mxu0 0.0
  %797 = vmatprep.subr.mxu0 0.0
  %798 = vmatpush1.msra.mxu0 0.0
  %799 = vmatprep.subr.mxu0 0.0
  %800 = vmatpush1.msra.mxu0 0.0
  %801 = vmatprep.subr.mxu0 0.0
  %802 = vmatpush1.msra.mxu0 0.0
  %803 = vmatprep.subr.mxu0 0.0
  %804 = vmatpush1.msra.mxu0 0.0
  %805 = vmatprep.subr.mxu0 0.0
  %806 = vmatpush1.msra.mxu0 0.0
  %807 = vmatprep.subr.mxu0 0.0
  %808 = vmatpush1.msra.mxu0 0.0
  %809 = vmatprep.subr.mxu0 0.0
  %810 = vmatpush1.msra.mxu0 0.0
  %811 = vmatprep.mubr.f32.mxu0 0.0
  %812 = vmatmul.mubr.f32.gmra.mrb[0].mxu0 %v742
  %v813 = vpop.f32.mrb[0].mxu0
  %v814 = vadd.f32 0.0, %v813
  %v815 = vpop.f32.mrb[0].mxu0
  %816 = vmatprep.mubr.f32.mxu0 0.0
  %817 = vmatmul.mubr.f32.gmra.mrb[0].mxu0 %v745
  %v818 = vpop.f32.mrb[0].mxu0
  %v819 = vadd.f32 0.0, %v818
  %v820 = vpop.f32.mrb[0].mxu0
  %821 = vdwg.mxu0
  %s822 = scalar_lea.vmem %s5, 8
  %v823 = vld [vmem:[%s822] sm:$0xff]
  %v825 = vsel %vm427, %v814, 0
  %v828 = vsel %vm427, %v819, 0
  %830 = vmatprep.subr.mxu0 0.0
  %831 = vmatpush1.msra.mxu0 %v823
  %832 = vmatprep.subr.mxu0 0.0
  %833 = vmatpush1.msra.mxu0 0.0
  %834 = vmatprep.subr.mxu0 0.0
  %835 = vmatpush1.msra.mxu0 0.0
  %836 = vmatprep.subr.mxu0 0.0
  %837 = vmatpush1.msra.mxu0 0.0
  %838 = vmatprep.subr.mxu0 0.0
  %839 = vmatpush1.msra.mxu0 0.0
  %840 = vmatprep.subr.mxu0 0.0
  %841 = vmatpush1.msra.mxu0 0.0
  %842 = vmatprep.subr.mxu0 0.0
  %843 = vmatpush1.msra.mxu0 0.0
  %844 = vmatprep.subr.mxu0 0.0
  %845 = vmatpush1.msra.mxu0 0.0
  %846 = vmatprep.subr.mxu0 0.0
  %847 = vmatpush1.msra.mxu0 0.0
  %848 = vmatprep.subr.mxu0 0.0
  %849 = vmatpush1.msra.mxu0 0.0
  %850 = vmatprep.subr.mxu0 0.0
  %851 = vmatpush1.msra.mxu0 0.0
  %852 = vmatprep.subr.mxu0 0.0
  %853 = vmatpush1.msra.mxu0 0.0
  %854 = vmatprep.subr.mxu0 0.0
  %855 = vmatpush1.msra.mxu0 0.0
  %856 = vmatprep.subr.mxu0 0.0
  %857 = vmatpush1.msra.mxu0 0.0
  %858 = vmatprep.subr.mxu0 0.0
  %859 = vmatpush1.msra.mxu0 0.0
  %860 = vmatprep.subr.mxu0 0.0
  %861 = vmatpush1.msra.mxu0 0.0
  %862 = vmatprep.subr.mxu0 0.0
  %863 = vmatpush1.msra.mxu0 0.0
  %864 = vmatprep.subr.mxu0 0.0
  %865 = vmatpush1.msra.mxu0 0.0
  %866 = vmatprep.subr.mxu0 0.0
  %867 = vmatpush1.msra.mxu0 0.0
  %868 = vmatprep.subr.mxu0 0.0
  %869 = vmatpush1.msra.mxu0 0.0
  %870 = vmatprep.subr.mxu0 0.0
  %871 = vmatpush1.msra.mxu0 0.0
  %872 = vmatprep.subr.mxu0 0.0
  %873 = vmatpush1.msra.mxu0 0.0
  %874 = vmatprep.subr.mxu0 0.0
  %875 = vmatpush1.msra.mxu0 0.0
  %876 = vmatprep.subr.mxu0 0.0
  %877 = vmatpush1.msra.mxu0 0.0
  %878 = vmatprep.subr.mxu0 0.0
  %879 = vmatpush1.msra.mxu0 0.0
  %880 = vmatprep.subr.mxu0 0.0
  %881 = vmatpush1.msra.mxu0 0.0
  %882 = vmatprep.subr.mxu0 0.0
  %883 = vmatpush1.msra.mxu0 0.0
  %884 = vmatprep.subr.mxu0 0.0
  %885 = vmatpush1.msra.mxu0 0.0
  %886 = vmatprep.subr.mxu0 0.0
  %887 = vmatpush1.msra.mxu0 0.0
  %888 = vmatprep.subr.mxu0 0.0
  %889 = vmatpush1.msra.mxu0 0.0
  %890 = vmatprep.subr.mxu0 0.0
  %891 = vmatpush1.msra.mxu0 0.0
  %892 = vmatprep.subr.mxu0 0.0
  %893 = vmatpush1.msra.mxu0 0.0
  %894 = vmatprep.mubr.f32.mxu0 0.0
  %895 = vmatmul.mubr.f32.gmra.mrb[0].mxu0 %v825
  %v896 = vpop.f32.mrb[0].mxu0
  %v897 = vadd.f32 0.0, %v896
  %v898 = vpop.f32.mrb[0].mxu0
  %899 = vmatprep.mubr.f32.mxu0 0.0
  %900 = vmatmul.mubr.f32.gmra.mrb[0].mxu0 %v828
  %v901 = vpop.f32.mrb[0].mxu0
  %v902 = vadd.f32 0.0, %v901
  %v903 = vpop.f32.mrb[0].mxu0
  %904 = vdwg.mxu0
  %v906 = vsel %vm427, %v613, 0
  %v909 = vsel %vm427, %v618, 0
  %911 = vmatprep.subr.mxu0 0.0
  %912 = vmatpush1.msra.mxu0 %v621
  %913 = vmatprep.subr.mxu0 0.0
  %914 = vmatpush1.msra.mxu0 0.0
  %915 = vmatprep.subr.mxu0 0.0
  %916 = vmatpush1.msra.mxu0 0.0
  %917 = vmatprep.subr.mxu0 0.0
  %918 = vmatpush1.msra.mxu0 0.0
  %919 = vmatprep.subr.mxu0 0.0
  %920 = vmatpush1.msra.mxu0 0.0
  %921 = vmatprep.subr.mxu0 0.0
  %922 = vmatpush1.msra.mxu0 0.0
  %923 = vmatprep.subr.mxu0 0.0
  %924 = vmatpush1.msra.mxu0 0.0
  %925 = vmatprep.subr.mxu0 0.0
  %926 = vmatpush1.msra.mxu0 0.0
  %927 = vmatprep.subr.mxu0 0.0
  %928 = vmatpush1.msra.mxu0 0.0
  %929 = vmatprep.subr.mxu0 0.0
  %930 = vmatpush1.msra.mxu0 0.0
  %931 = vmatprep.subr.mxu0 0.0
  %932 = vmatpush1.msra.mxu0 0.0
  %933 = vmatprep.subr.mxu0 0.0
  %934 = vmatpush1.msra.mxu0 0.0
  %935 = vmatprep.subr.mxu0 0.0
  %936 = vmatpush1.msra.mxu0 0.0
  %937 = vmatprep.subr.mxu0 0.0
  %938 = vmatpush1.msra.mxu0 0.0
  %939 = vmatprep.subr.mxu0 0.0
  %940 = vmatpush1.msra.mxu0 0.0
  %941 = vmatprep.subr.mxu0 0.0
  %942 = vmatpush1.msra.mxu0 0.0
  %943 = vmatprep.subr.mxu0 0.0
  %944 = vmatpush1.msra.mxu0 0.0
  %945 = vmatprep.subr.mxu0 0.0
  %946 = vmatpush1.msra.mxu0 0.0
  %947 = vmatprep.subr.mxu0 0.0
  %948 = vmatpush1.msra.mxu0 0.0
  %949 = vmatprep.subr.mxu0 0.0
  %950 = vmatpush1.msra.mxu0 0.0
  %951 = vmatprep.subr.mxu0 0.0
  %952 = vmatpush1.msra.mxu0 0.0
  %953 = vmatprep.subr.mxu0 0.0
  %954 = vmatpush1.msra.mxu0 0.0
  %955 = vmatprep.subr.mxu0 0.0
  %956 = vmatpush1.msra.mxu0 0.0
  %957 = vmatprep.subr.mxu0 0.0
  %958 = vmatpush1.msra.mxu0 0.0
  %959 = vmatprep.subr.mxu0 0.0
  %960 = vmatpush1.msra.mxu0 0.0
  %961 = vmatprep.subr.mxu0 0.0
  %962 = vmatpush1.msra.mxu0 0.0
  %963 = vmatprep.subr.mxu0 0.0
  %964 = vmatpush1.msra.mxu0 0.0
  %965 = vmatprep.subr.mxu0 0.0
  %966 = vmatpush1.msra.mxu0 0.0
  %967 = vmatprep.subr.mxu0 0.0
  %968 = vmatpush1.msra.mxu0 0.0
  %969 = vmatprep.subr.mxu0 0.0
  %970 = vmatpush1.msra.mxu0 0.0
  %971 = vmatprep.subr.mxu0 0.0
  %972 = vmatpush1.msra.mxu0 0.0
  %973 = vmatprep.subr.mxu0 0.0
  %974 = vmatpush1.msra.mxu0 0.0
  %975 = vmatprep.mubr.f32.mxu0 0.0
  %976 = vmatmul.mubr.f32.gmra.mrb[0].mxu0 %v906
  %v977 = vpop.f32.mrb[0].mxu0
  %v978 = vadd.f32 %v897, %v977
  %v979 = vpop.f32.mrb[0].mxu0
  %980 = vmatprep.mubr.f32.mxu0 0.0
  %981 = vmatmul.mubr.f32.gmra.mrb[0].mxu0 %v909
  %v982 = vpop.f32.mrb[0].mxu0
  %v983 = vadd.f32 %v902, %v982
  %v984 = vpop.f32.mrb[0].mxu0
  %985 = vdwg.mxu0
  %986 = vrot.lane.b32.xlu0 %v413, 112
  %v987 = vpop.permute.xlu0 %986
  %988 = vrot.lane.b32.xlu0 %v418, 112
  %v989 = vpop.permute.xlu0 %988
  %990 = vrot.lane.b32.xlu0 %v413, 80
  %v991 = vpop.permute.xlu0 %990
  %992 = vrot.lane.b32.xlu0 %v418, 80
  %v993 = vpop.permute.xlu0 %992
  %v994 = vsel %vm427, %v987, 0
  %v996 = vsel %vm427, %v989, 0
  %v998 = vsel %vm427, %v991, 0
  %v1000 = vsel %vm427, %v993, 0
  %1002 = vmatprep.subr.mxu0 0.0
  %1003 = vmatpush1.xpose.msra.mxu0 %v998
  %1004 = vmatprep.subr.mxu0 0.0
  %1005 = vmatpush1.xpose.msra.mxu0 %v1000
  %1006 = vmatprep.subr.mxu0 0.0
  %1007 = vmatpush1.xpose.msra.mxu0 0.0
  %1008 = vmatprep.subr.mxu0 0.0
  %1009 = vmatpush1.xpose.msra.mxu0 0.0
  %1010 = vmatprep.subr.mxu0 0.0
  %1011 = vmatpush1.xpose.msra.mxu0 0.0
  %1012 = vmatprep.subr.mxu0 0.0
  %1013 = vmatpush1.xpose.msra.mxu0 0.0
  %1014 = vmatprep.subr.mxu0 0.0
  %1015 = vmatpush1.xpose.msra.mxu0 0.0
  %1016 = vmatprep.subr.mxu0 0.0
  %1017 = vmatpush1.xpose.msra.mxu0 0.0
  %1018 = vmatprep.subr.mxu0 0.0
  %1019 = vmatpush1.xpose.msra.mxu0 0.0
  %1020 = vmatprep.subr.mxu0 0.0
  %1021 = vmatpush1.xpose.msra.mxu0 0.0
  %1022 = vmatprep.subr.mxu0 0.0
  %1023 = vmatpush1.xpose.msra.mxu0 0.0
  %1024 = vmatprep.subr.mxu0 0.0
  %1025 = vmatpush1.xpose.msra.mxu0 0.0
  %1026 = vmatprep.subr.mxu0 0.0
  %1027 = vmatpush1.xpose.msra.mxu0 0.0
  %1028 = vmatprep.subr.mxu0 0.0
  %1029 = vmatpush1.xpose.msra.mxu0 0.0
  %1030 = vmatprep.subr.mxu0 0.0
  %1031 = vmatpush1.xpose.msra.mxu0 0.0
  %1032 = vmatprep.subr.mxu0 0.0
  %1033 = vmatpush1.xpose.msra.mxu0 0.0
  %1034 = vmatprep.subr.mxu0 0.0
  %1035 = vmatpush1.xpose.msra.mxu0 0.0
  %1036 = vmatprep.subr.mxu0 0.0
  %1037 = vmatpush1.xpose.msra.mxu0 0.0
  %1038 = vmatprep.subr.mxu0 0.0
  %1039 = vmatpush1.xpose.msra.mxu0 0.0
  %1040 = vmatprep.subr.mxu0 0.0
  %1041 = vmatpush1.xpose.msra.mxu0 0.0
  %1042 = vmatprep.subr.mxu0 0.0
  %1043 = vmatpush1.xpose.msra.mxu0 0.0
  %1044 = vmatprep.subr.mxu0 0.0
  %1045 = vmatpush1.xpose.msra.mxu0 0.0
  %1046 = vmatprep.subr.mxu0 0.0
  %1047 = vmatpush1.xpose.msra.mxu0 0.0
  %1048 = vmatprep.subr.mxu0 0.0
  %1049 = vmatpush1.xpose.msra.mxu0 0.0
  %1050 = vmatprep.subr.mxu0 0.0
  %1051 = vmatpush1.xpose.msra.mxu0 0.0
  %1052 = vmatprep.subr.mxu0 0.0
  %1053 = vmatpush1.xpose.msra.mxu0 0.0
  %1054 = vmatprep.subr.mxu0 0.0
  %1055 = vmatpush1.xpose.msra.mxu0 0.0
  %1056 = vmatprep.subr.mxu0 0.0
  %1057 = vmatpush1.xpose.msra.mxu0 0.0
  %1058 = vmatprep.subr.mxu0 0.0
  %1059 = vmatpush1.xpose.msra.mxu0 0.0
  %1060 = vmatprep.subr.mxu0 0.0
  %1061 = vmatpush1.xpose.msra.mxu0 0.0
  %1062 = vmatprep.subr.mxu0 0.0
  %1063 = vmatpush1.xpose.msra.mxu0 0.0
  %1064 = vmatprep.subr.mxu0 0.0
  %1065 = vmatpush1.xpose.msra.mxu0 0.0
  %1066 = vmatprep.mubr.f32.mxu0 0.0
  %1067 = vmatmul.mubr.f32.gmra.mrb[0].mxu0 %v994
  %v1068 = vpop.f32.mrb[0].mxu0
  %v1069 = vadd.f32 %v303, %v1068
  %v1070 = vpop.f32.mrb[0].mxu0
  %1071 = vmatprep.mubr.f32.mxu0 0.0
  %1072 = vmatmul.mubr.f32.gmra.mrb[0].mxu0 %v996
  %v1073 = vpop.f32.mrb[0].mxu0
  %v1074 = vadd.f32 %v304, %v1073
  %v1075 = vpop.f32.mrb[0].mxu0
  %1076 = vdwg.mxu0
  %v1077 = vsel %vm511, %v1069, -inf
  %1078 = vmax.xlane.f32.xlu0 %v1077
  %v1079 = vpop.xlane.xlu0 %1078
  %v1080 = vsel %vm511, %v1074, -inf
  %1081 = vmax.xlane.f32.xlu0 %v1080
  %v1082 = vpop.xlane.xlu0 %1081
  %v1083 = vsub.f32 %v1069, %v1079
  %v1084 = vsub.f32 %v1074, %v1082
  %v1085 = vmul.f32 %v1083, 1.442695
  %v1086 = vpow.pop %v1085
  %v1087 = vmul.f32 %v1084, 1.442695
  %v1088 = vpow.pop %v1087
  %v1089 = vsel %vm511, %v1086, 0.0
  %1090 = vadd.xlane.f32.xlu0 %v1089
  %v1091 = vpop.xlane.xlu0 %1090
  %v1092 = vsel %vm511, %v1088, 0.0
  %1093 = vadd.xlane.f32.xlu0 %v1092
  %v1094 = vpop.xlane.xlu0 %1093
  %v1095 = vrcp.pop %v1091
  %v1096 = vmul.f32 %v1086, %v1095
  %v1097 = vrcp.pop %v1094
  %v1098 = vmul.f32 %v1088, %v1097
  %1099 = vrot.lane.b32.xlu0 %v413, 48
  %v1100 = vpop.permute.xlu0 %1099
  %1101 = vrot.lane.b32.xlu0 %v418, 48
  %v1102 = vpop.permute.xlu0 %1101
  %v1106 = vsel %vm511, %v1096, 0
  %v1109 = vsel %vm511, %v1098, 0
  %1111 = vmatprep.subr.mxu0 0.0
  %1112 = vmatpush1.msra.mxu0 %v1100
  %1113 = vmatprep.subr.mxu0 0.0
  %1114 = vmatpush1.msra.mxu0 %v1102
  %1115 = vmatprep.subr.mxu0 0.0
  %1116 = vmatpush1.msra.mxu0 0.0
  %1117 = vmatprep.subr.mxu0 0.0
  %1118 = vmatpush1.msra.mxu0 0.0
  %1119 = vmatprep.subr.mxu0 0.0
  %1120 = vmatpush1.msra.mxu0 0.0
  %1121 = vmatprep.subr.mxu0 0.0
  %1122 = vmatpush1.msra.mxu0 0.0
  %1123 = vmatprep.subr.mxu0 0.0
  %1124 = vmatpush1.msra.mxu0 0.0
  %1125 = vmatprep.subr.mxu0 0.0
  %1126 = vmatpush1.msra.mxu0 0.0
  %1127 = vmatprep.subr.mxu0 0.0
  %1128 = vmatpush1.msra.mxu0 0.0
  %1129 = vmatprep.subr.mxu0 0.0
  %1130 = vmatpush1.msra.mxu0 0.0
  %1131 = vmatprep.subr.mxu0 0.0
  %1132 = vmatpush1.msra.mxu0 0.0
  %1133 = vmatprep.subr.mxu0 0.0
  %1134 = vmatpush1.msra.mxu0 0.0
  %1135 = vmatprep.subr.mxu0 0.0
  %1136 = vmatpush1.msra.mxu0 0.0
  %1137 = vmatprep.subr.mxu0 0.0
  %1138 = vmatpush1.msra.mxu0 0.0
  %1139 = vmatprep.subr.mxu0 0.0
  %1140 = vmatpush1.msra.mxu0 0.0
  %1141 = vmatprep.subr.mxu0 0.0
  %1142 = vmatpush1.msra.mxu0 0.0
  %1143 = vmatprep.subr.mxu0 0.0
  %1144 = vmatpush1.msra.mxu0 0.0
  %1145 = vmatprep.subr.mxu0 0.0
  %1146 = vmatpush1.msra.mxu0 0.0
  %1147 = vmatprep.subr.mxu0 0.0
  %1148 = vmatpush1.msra.mxu0 0.0
  %1149 = vmatprep.subr.mxu0 0.0
  %1150 = vmatpush1.msra.mxu0 0.0
  %1151 = vmatprep.subr.mxu0 0.0
  %1152 = vmatpush1.msra.mxu0 0.0
  %1153 = vmatprep.subr.mxu0 0.0
  %1154 = vmatpush1.msra.mxu0 0.0
  %1155 = vmatprep.subr.mxu0 0.0
  %1156 = vmatpush1.msra.mxu0 0.0
  %1157 = vmatprep.subr.mxu0 0.0
  %1158 = vmatpush1.msra.mxu0 0.0
  %1159 = vmatprep.subr.mxu0 0.0
  %1160 = vmatpush1.msra.mxu0 0.0
  %1161 = vmatprep.subr.mxu0 0.0
  %1162 = vmatpush1.msra.mxu0 0.0
  %1163 = vmatprep.subr.mxu0 0.0
  %1164 = vmatpush1.msra.mxu0 0.0
  %1165 = vmatprep.subr.mxu0 0.0
  %1166 = vmatpush1.msra.mxu0 0.0
  %1167 = vmatprep.subr.mxu0 0.0
  %1168 = vmatpush1.msra.mxu0 0.0
  %1169 = vmatprep.subr.mxu0 0.0
  %1170 = vmatpush1.msra.mxu0 0.0
  %1171 = vmatprep.subr.mxu0 0.0
  %1172 = vmatpush1.msra.mxu0 0.0
  %1173 = vmatprep.subr.mxu0 0.0
  %1174 = vmatpush1.msra.mxu0 0.0
  %1175 = vmatprep.mubr.f32.mxu0 0.0
  %1176 = vmatmul.mubr.f32.gmra.mrb[0].mxu0 %v1106
  %v1177 = vpop.f32.mrb[0].mxu0
  %v1178 = vadd.f32 0.0, %v1177
  %v1179 = vpop.f32.mrb[0].mxu0
  %1180 = vmatprep.mubr.f32.mxu0 0.0
  %1181 = vmatmul.mubr.f32.gmra.mrb[0].mxu0 %v1109
  %v1182 = vpop.f32.mrb[0].mxu0
  %v1183 = vadd.f32 0.0, %v1182
  %v1184 = vpop.f32.mrb[0].mxu0
  %1185 = vdwg.mxu0
  %s1186 = scalar_lea.vmem %s5, 16
  %v1187 = vld [vmem:[%s1186] sm:$0xff]
  %v1189 = vsel %vm427, %v1178, 0
  %v1192 = vsel %vm427, %v1183, 0
  %1194 = vmatprep.subr.mxu0 0.0
  %1195 = vmatpush1.msra.mxu0 %v1187
  %1196 = vmatprep.subr.mxu0 0.0
  %1197 = vmatpush1.msra.mxu0 0.0
  %1198 = vmatprep.subr.mxu0 0.0
  %1199 = vmatpush1.msra.mxu0 0.0
  %1200 = vmatprep.subr.mxu0 0.0
  %1201 = vmatpush1.msra.mxu0 0.0
  %1202 = vmatprep.subr.mxu0 0.0
  %1203 = vmatpush1.msra.mxu0 0.0
  %1204 = vmatprep.subr.mxu0 0.0
  %1205 = vmatpush1.msra.mxu0 0.0
  %1206 = vmatprep.subr.mxu0 0.0
  %1207 = vmatpush1.msra.mxu0 0.0
  %1208 = vmatprep.subr.mxu0 0.0
  %1209 = vmatpush1.msra.mxu0 0.0
  %1210 = vmatprep.subr.mxu0 0.0
  %1211 = vmatpush1.msra.mxu0 0.0
  %1212 = vmatprep.subr.mxu0 0.0
  %1213 = vmatpush1.msra.mxu0 0.0
  %1214 = vmatprep.subr.mxu0 0.0
  %1215 = vmatpush1.msra.mxu0 0.0
  %1216 = vmatprep.subr.mxu0 0.0
  %1217 = vmatpush1.msra.mxu0 0.0
  %1218 = vmatprep.subr.mxu0 0.0
  %1219 = vmatpush1.msra.mxu0 0.0
  %1220 = vmatprep.subr.mxu0 0.0
  %1221 = vmatpush1.msra.mxu0 0.0
  %1222 = vmatprep.subr.mxu0 0.0
  %1223 = vmatpush1.msra.mxu0 0.0
  %1224 = vmatprep.subr.mxu0 0.0
  %1225 = vmatpush1.msra.mxu0 0.0
  %1226 = vmatprep.subr.mxu0 0.0
  %1227 = vmatpush1.msra.mxu0 0.0
  %1228 = vmatprep.subr.mxu0 0.0
  %1229 = vmatpush1.msra.mxu0 0.0
  %1230 = vmatprep.subr.mxu0 0.0
  %1231 = vmatpush1.msra.mxu0 0.0
  %1232 = vmatprep.subr.mxu0 0.0
  %1233 = vmatpush1.msra.mxu0 0.0
  %1234 = vmatprep.subr.mxu0 0.0
  %1235 = vmatpush1.msra.mxu0 0.0
  %1236 = vmatprep.subr.mxu0 0.0
  %1237 = vmatpush1.msra.mxu0 0.0
  %1238 = vmatprep.subr.mxu0 0.0
  %1239 = vmatpush1.msra.mxu0 0.0
  %1240 = vmatprep.subr.mxu0 0.0
  %1241 = vmatpush1.msra.mxu0 0.0
  %1242 = vmatprep.subr.mxu0 0.0
  %1243 = vmatpush1.msra.mxu0 0.0
  %1244 = vmatprep.subr.mxu0 0.0
  %1245 = vmatpush1.msra.mxu0 0.0
  %1246 = vmatprep.subr.mxu0 0.0
  %1247 = vmatpush1.msra.mxu0 0.0
  %1248 = vmatprep.subr.mxu0 0.0
  %1249 = vmatpush1.msra.mxu0 0.0
  %1250 = vmatprep.subr.mxu0 0.0
  %1251 = vmatpush1.msra.mxu0 0.0
  %1252 = vmatprep.subr.mxu0 0.0
  %1253 = vmatpush1.msra.mxu0 0.0
  %1254 = vmatprep.subr.mxu0 0.0
  %1255 = vmatpush1.msra.mxu0 0.0
  %1256 = vmatprep.subr.mxu0 0.0
  %1257 = vmatpush1.msra.mxu0 0.0
  %1258 = vmatprep.mubr.f32.mxu0 0.0
  %1259 = vmatmul.mubr.f32.gmra.mrb[0].mxu0 %v1189
  %v1260 = vpop.f32.mrb[0].mxu0
  %v1261 = vadd.f32 0.0, %v1260
  %v1262 = vpop.f32.mrb[0].mxu0
  %1263 = vmatprep.mubr.f32.mxu0 0.0
  %1264 = vmatmul.mubr.f32.gmra.mrb[0].mxu0 %v1192
  %v1265 = vpop.f32.mrb[0].mxu0
  %v1266 = vadd.f32 0.0, %v1265
  %v1267 = vpop.f32.mrb[0].mxu0
  %1268 = vdwg.mxu0
  %v1269 = vadd.f32 %v978, %v1261
  %v1270 = vadd.f32 %v983, %v1266
  %1271 = vrot.lane.b32.xlu0 %v413, 104
  %v1272 = vpop.permute.xlu0 %1271
  %1273 = vrot.lane.b32.xlu0 %v418, 104
  %v1274 = vpop.permute.xlu0 %1273
  %1275 = vrot.lane.b32.xlu0 %v413, 72
  %v1276 = vpop.permute.xlu0 %1275
  %1277 = vrot.lane.b32.xlu0 %v418, 72
  %v1278 = vpop.permute.xlu0 %1277
  %v1279 = vsel %vm427, %v1272, 0
  %v1281 = vsel %vm427, %v1274, 0
  %v1283 = vsel %vm427, %v1276, 0
  %v1285 = vsel %vm427, %v1278, 0
  %1287 = vmatprep.subr.mxu0 0.0
  %1288 = vmatpush1.xpose.msra.mxu0 %v1283
  %1289 = vmatprep.subr.mxu0 0.0
  %1290 = vmatpush1.xpose.msra.mxu0 %v1285
  %1291 = vmatprep.subr.mxu0 0.0
  %1292 = vmatpush1.xpose.msra.mxu0 0.0
  %1293 = vmatprep.subr.mxu0 0.0
  %1294 = vmatpush1.xpose.msra.mxu0 0.0
  %1295 = vmatprep.subr.mxu0 0.0
  %1296 = vmatpush1.xpose.msra.mxu0 0.0
  %1297 = vmatprep.subr.mxu0 0.0
  %1298 = vmatpush1.xpose.msra.mxu0 0.0
  %1299 = vmatprep.subr.mxu0 0.0
  %1300 = vmatpush1.xpose.msra.mxu0 0.0
  %1301 = vmatprep.subr.mxu0 0.0
  %1302 = vmatpush1.xpose.msra.mxu0 0.0
  %1303 = vmatprep.subr.mxu0 0.0
  %1304 = vmatpush1.xpose.msra.mxu0 0.0
  %1305 = vmatprep.subr.mxu0 0.0
  %1306 = vmatpush1.xpose.msra.mxu0 0.0
  %1307 = vmatprep.subr.mxu0 0.0
  %1308 = vmatpush1.xpose.msra.mxu0 0.0
  %1309 = vmatprep.subr.mxu0 0.0
  %1310 = vmatpush1.xpose.msra.mxu0 0.0
  %1311 = vmatprep.subr.mxu0 0.0
  %1312 = vmatpush1.xpose.msra.mxu0 0.0
  %1313 = vmatprep.subr.mxu0 0.0
  %1314 = vmatpush1.xpose.msra.mxu0 0.0
  %1315 = vmatprep.subr.mxu0 0.0
  %1316 = vmatpush1.xpose.msra.mxu0 0.0
  %1317 = vmatprep.subr.mxu0 0.0
  %1318 = vmatpush1.xpose.msra.mxu0 0.0
  %1319 = vmatprep.subr.mxu0 0.0
  %1320 = vmatpush1.xpose.msra.mxu0 0.0
  %1321 = vmatprep.subr.mxu0 0.0
  %1322 = vmatpush1.xpose.msra.mxu0 0.0
  %1323 = vmatprep.subr.mxu0 0.0
  %1324 = vmatpush1.xpose.msra.mxu0 0.0
  %1325 = vmatprep.subr.mxu0 0.0
  %1326 = vmatpush1.xpose.msra.mxu0 0.0
  %1327 = vmatprep.subr.mxu0 0.0
  %1328 = vmatpush1.xpose.msra.mxu0 0.0
  %1329 = vmatprep.subr.mxu0 0.0
  %1330 = vmatpush1.xpose.msra.mxu0 0.0
  %1331 = vmatprep.subr.mxu0 0.0
  %1332 = vmatpush1.xpose.msra.mxu0 0.0
  %1333 = vmatprep.subr.mxu0 0.0
  %1334 = vmatpush1.xpose.msra.mxu0 0.0
  %1335 = vmatprep.subr.mxu0 0.0
  %1336 = vmatpush1.xpose.msra.mxu0 0.0
  %1337 = vmatprep.subr.mxu0 0.0
  %1338 = vmatpush1.xpose.msra.mxu0 0.0
  %1339 = vmatprep.subr.mxu0 0.0
  %1340 = vmatpush1.xpose.msra.mxu0 0.0
  %1341 = vmatprep.subr.mxu0 0.0
  %1342 = vmatpush1.xpose.msra.mxu0 0.0
  %1343 = vmatprep.subr.mxu0 0.0
  %1344 = vmatpush1.xpose.msra.mxu0 0.0
  %1345 = vmatprep.subr.mxu0 0.0
  %1346 = vmatpush1.xpose.msra.mxu0 0.0
  %1347 = vmatprep.subr.mxu0 0.0
  %1348 = vmatpush1.xpose.msra.mxu0 0.0
  %1349 = vmatprep.subr.mxu0 0.0
  %1350 = vmatpush1.xpose.msra.mxu0 0.0
  %1351 = vmatprep.mubr.f32.mxu0 0.0
  %1352 = vmatmul.mubr.f32.gmra.mrb[0].mxu0 %v1279
  %v1353 = vpop.f32.mrb[0].mxu0
  %v1354 = vadd.f32 %v303, %v1353
  %v1355 = vpop.f32.mrb[0].mxu0
  %1356 = vmatprep.mubr.f32.mxu0 0.0
  %1357 = vmatmul.mubr.f32.gmra.mrb[0].mxu0 %v1281
  %v1358 = vpop.f32.mrb[0].mxu0
  %v1359 = vadd.f32 %v304, %v1358
  %v1360 = vpop.f32.mrb[0].mxu0
  %1361 = vdwg.mxu0
  %v1362 = vsel %vm511, %v1354, -inf
  %1363 = vmax.xlane.f32.xlu0 %v1362
  %v1364 = vpop.xlane.xlu0 %1363
  %v1365 = vsel %vm511, %v1359, -inf
  %1366 = vmax.xlane.f32.xlu0 %v1365
  %v1367 = vpop.xlane.xlu0 %1366
  %v1368 = vsub.f32 %v1354, %v1364
  %v1369 = vsub.f32 %v1359, %v1367
  %v1370 = vmul.f32 %v1368, 1.442695
  %v1371 = vpow.pop %v1370
  %v1372 = vmul.f32 %v1369, 1.442695
  %v1373 = vpow.pop %v1372
  %v1374 = vsel %vm511, %v1371, 0.0
  %1375 = vadd.xlane.f32.xlu0 %v1374
  %v1376 = vpop.xlane.xlu0 %1375
  %v1377 = vsel %vm511, %v1373, 0.0
  %1378 = vadd.xlane.f32.xlu0 %v1377
  %v1379 = vpop.xlane.xlu0 %1378
  %v1380 = vrcp.pop %v1376
  %v1381 = vmul.f32 %v1371, %v1380
  %v1382 = vrcp.pop %v1379
  %v1383 = vmul.f32 %v1373, %v1382
  %1384 = vrot.lane.b32.xlu0 %v413, 40
  %v1385 = vpop.permute.xlu0 %1384
  %1386 = vrot.lane.b32.xlu0 %v418, 40
  %v1387 = vpop.permute.xlu0 %1386
  %v1391 = vsel %vm511, %v1381, 0
  %v1394 = vsel %vm511, %v1383, 0
  %1396 = vmatprep.subr.mxu0 0.0
  %1397 = vmatpush1.msra.mxu0 %v1385
  %1398 = vmatprep.subr.mxu0 0.0
  %1399 = vmatpush1.msra.mxu0 %v1387
  %1400 = vmatprep.subr.mxu0 0.0
  %1401 = vmatpush1.msra.mxu0 0.0
  %1402 = vmatprep.subr.mxu0 0.0
  %1403 = vmatpush1.msra.mxu0 0.0
  %1404 = vmatprep.subr.mxu0 0.0
  %1405 = vmatpush1.msra.mxu0 0.0
  %1406 = vmatprep.subr.mxu0 0.0
  %1407 = vmatpush1.msra.mxu0 0.0
  %1408 = vmatprep.subr.mxu0 0.0
  %1409 = vmatpush1.msra.mxu0 0.0
  %1410 = vmatprep.subr.mxu0 0.0
  %1411 = vmatpush1.msra.mxu0 0.0
  %1412 = vmatprep.subr.mxu0 0.0
  %1413 = vmatpush1.msra.mxu0 0.0
  %1414 = vmatprep.subr.mxu0 0.0
  %1415 = vmatpush1.msra.mxu0 0.0
  %1416 = vmatprep.subr.mxu0 0.0
  %1417 = vmatpush1.msra.mxu0 0.0
  %1418 = vmatprep.subr.mxu0 0.0
  %1419 = vmatpush1.msra.mxu0 0.0
  %1420 = vmatprep.subr.mxu0 0.0
  %1421 = vmatpush1.msra.mxu0 0.0
  %1422 = vmatprep.subr.mxu0 0.0
  %1423 = vmatpush1.msra.mxu0 0.0
  %1424 = vmatprep.subr.mxu0 0.0
  %1425 = vmatpush1.msra.mxu0 0.0
  %1426 = vmatprep.subr.mxu0 0.0
  %1427 = vmatpush1.msra.mxu0 0.0
  %1428 = vmatprep.subr.mxu0 0.0
  %1429 = vmatpush1.msra.mxu0 0.0
  %1430 = vmatprep.subr.mxu0 0.0
  %1431 = vmatpush1.msra.mxu0 0.0
  %1432 = vmatprep.subr.mxu0 0.0
  %1433 = vmatpush1.msra.mxu0 0.0
  %1434 = vmatprep.subr.mxu0 0.0
  %1435 = vmatpush1.msra.mxu0 0.0
  %1436 = vmatprep.subr.mxu0 0.0
  %1437 = vmatpush1.msra.mxu0 0.0
  %1438 = vmatprep.subr.mxu0 0.0
  %1439 = vmatpush1.msra.mxu0 0.0
  %1440 = vmatprep.subr.mxu0 0.0
  %1441 = vmatpush1.msra.mxu0 0.0
  %1442 = vmatprep.subr.mxu0 0.0
  %1443 = vmatpush1.msra.mxu0 0.0
  %1444 = vmatprep.subr.mxu0 0.0
  %1445 = vmatpush1.msra.mxu0 0.0
  %1446 = vmatprep.subr.mxu0 0.0
  %1447 = vmatpush1.msra.mxu0 0.0
  %1448 = vmatprep.subr.mxu0 0.0
  %1449 = vmatpush1.msra.mxu0 0.0
  %1450 = vmatprep.subr.mxu0 0.0
  %1451 = vmatpush1.msra.mxu0 0.0
  %1452 = vmatprep.subr.mxu0 0.0
  %1453 = vmatpush1.msra.mxu0 0.0
  %1454 = vmatprep.subr.mxu0 0.0
  %1455 = vmatpush1.msra.mxu0 0.0
  %1456 = vmatprep.subr.mxu0 0.0
  %1457 = vmatpush1.msra.mxu0 0.0
  %1458 = vmatprep.subr.mxu0 0.0
  %1459 = vmatpush1.msra.mxu0 0.0
  %1460 = vmatprep.mubr.f32.mxu0 0.0
  %1461 = vmatmul.mubr.f32.gmra.mrb[0].mxu0 %v1391
  %v1462 = vpop.f32.mrb[0].mxu0
  %v1463 = vadd.f32 0.0, %v1462
  %v1464 = vpop.f32.mrb[0].mxu0
  %1465 = vmatprep.mubr.f32.mxu0 0.0
  %1466 = vmatmul.mubr.f32.gmra.mrb[0].mxu0 %v1394
  %v1467 = vpop.f32.mrb[0].mxu0
  %v1468 = vadd.f32 0.0, %v1467
  %v1469 = vpop.f32.mrb[0].mxu0
  %1470 = vdwg.mxu0
  %s1471 = scalar_lea.vmem %s5, 24
  %v1472 = vld [vmem:[%s1471] sm:$0xff]
  %v1474 = vsel %vm427, %v1463, 0
  %v1477 = vsel %vm427, %v1468, 0
  %1479 = vmatprep.subr.mxu0 0.0
  %1480 = vmatpush1.msra.mxu0 %v1472
  %1481 = vmatprep.subr.mxu0 0.0
  %1482 = vmatpush1.msra.mxu0 0.0
  %1483 = vmatprep.subr.mxu0 0.0
  %1484 = vmatpush1.msra.mxu0 0.0
  %1485 = vmatprep.subr.mxu0 0.0
  %1486 = vmatpush1.msra.mxu0 0.0
  %1487 = vmatprep.subr.mxu0 0.0
  %1488 = vmatpush1.msra.mxu0 0.0
  %1489 = vmatprep.subr.mxu0 0.0
  %1490 = vmatpush1.msra.mxu0 0.0
  %1491 = vmatprep.subr.mxu0 0.0
  %1492 = vmatpush1.msra.mxu0 0.0
  %1493 = vmatprep.subr.mxu0 0.0
  %1494 = vmatpush1.msra.mxu0 0.0
  %1495 = vmatprep.subr.mxu0 0.0
  %1496 = vmatpush1.msra.mxu0 0.0
  %1497 = vmatprep.subr.mxu0 0.0
  %1498 = vmatpush1.msra.mxu0 0.0
  %1499 = vmatprep.subr.mxu0 0.0
  %1500 = vmatpush1.msra.mxu0 0.0
  %1501 = vmatprep.subr.mxu0 0.0
  %1502 = vmatpush1.msra.mxu0 0.0
  %1503 = vmatprep.subr.mxu0 0.0
  %1504 = vmatpush1.msra.mxu0 0.0
  %1505 = vmatprep.subr.mxu0 0.0
  %1506 = vmatpush1.msra.mxu0 0.0
  %1507 = vmatprep.subr.mxu0 0.0
  %1508 = vmatpush1.msra.mxu0 0.0
  %1509 = vmatprep.subr.mxu0 0.0
  %1510 = vmatpush1.msra.mxu0 0.0
  %1511 = vmatprep.subr.mxu0 0.0
  %1512 = vmatpush1.msra.mxu0 0.0
  %1513 = vmatprep.subr.mxu0 0.0
  %1514 = vmatpush1.msra.mxu0 0.0
  %1515 = vmatprep.subr.mxu0 0.0
  %1516 = vmatpush1.msra.mxu0 0.0
  %1517 = vmatprep.subr.mxu0 0.0
  %1518 = vmatpush1.msra.mxu0 0.0
  %1519 = vmatprep.subr.mxu0 0.0
  %1520 = vmatpush1.msra.mxu0 0.0
  %1521 = vmatprep.subr.mxu0 0.0
  %1522 = vmatpush1.msra.mxu0 0.0
  %1523 = vmatprep.subr.mxu0 0.0
  %1524 = vmatpush1.msra.mxu0 0.0
  %1525 = vmatprep.subr.mxu0 0.0
  %1526 = vmatpush1.msra.mxu0 0.0
  %1527 = vmatprep.subr.mxu0 0.0
  %1528 = vmatpush1.msra.mxu0 0.0
  %1529 = vmatprep.subr.mxu0 0.0
  %1530 = vmatpush1.msra.mxu0 0.0
  %1531 = vmatprep.subr.mxu0 0.0
  %1532 = vmatpush1.msra.mxu0 0.0
  %1533 = vmatprep.subr.mxu0 0.0
  %1534 = vmatpush1.msra.mxu0 0.0
  %1535 = vmatprep.subr.mxu0 0.0
  %1536 = vmatpush1.msra.mxu0 0.0
  %1537 = vmatprep.subr.mxu0 0.0
  %1538 = vmatpush1.msra.mxu0 0.0
  %1539 = vmatprep.subr.mxu0 0.0
  %1540 = vmatpush1.msra.mxu0 0.0
  %1541 = vmatprep.subr.mxu0 0.0
  %1542 = vmatpush1.msra.mxu0 0.0
  %1543 = vmatprep.mubr.f32.mxu0 0.0
  %1544 = vmatmul.mubr.f32.gmra.mrb[0].mxu0 %v1474
  %v1545 = vpop.f32.mrb[0].mxu0
  %v1546 = vadd.f32 0.0, %v1545
  %v1547 = vpop.f32.mrb[0].mxu0
  %1548 = vmatprep.mubr.f32.mxu0 0.0
  %1549 = vmatmul.mubr.f32.gmra.mrb[0].mxu0 %v1477
  %v1550 = vpop.f32.mrb[0].mxu0
  %v1551 = vadd.f32 0.0, %v1550
  %v1552 = vpop.f32.mrb[0].mxu0
  %1553 = vdwg.mxu0
  %v1554 = vadd.f32 %v1269, %v1546
  %v1555 = vadd.f32 %v1270, %v1551
  %v1556 = vadd.f32 %v270, %v1554
  %v1557 = vadd.f32 %v271, %v1555
  %v1558 = vld [vmem:[%s2 + $0x2] sm:$0x1]
  %v1559 = vlaneseq
  %v1560 = vshrl.u32 %v1559, 7
  %v1561 = vsub.s32 0, %v1560
  %v1562 = vrot.slane %v1558, %v1561
  %v1563 = vadd.f32 %v1556, %v1562
  %v1564 = vadd.f32 %v1557, %v1562
  %v1565 = vsel %vm74, %v1563, 0.0
  %1566 = vadd.xlane.f32.xlu0 %v1565
  %v1567 = vpop.xlane.xlu0 %1566
  %v1568 = vsel %vm74, %v1564, 0.0
  %1569 = vadd.xlane.f32.xlu0 %v1568
  %v1570 = vpop.xlane.xlu0 %1569
  %v1571 = vmul.f32 %v1567, %v237
  %v1572 = vmul.f32 %v1570, %v237
  %v1573 = vsub.f32 %v1563, %v1571
  %v1574 = vsub.f32 %v1564, %v1572
  %v1575 = vmul.f32 %v1573, %v1573
  %v1576 = vmul.f32 %v1574, %v1574
  %v1577 = vsel %vm74, %v1575, 0.0
  %1578 = vadd.xlane.f32.xlu0 %v1577
  %v1579 = vpop.xlane.xlu0 %1578
  %v1580 = vsel %vm74, %v1576, 0.0
  %1581 = vadd.xlane.f32.xlu0 %v1580
  %v1582 = vpop.xlane.xlu0 %1581
  %v1583 = vmul.f32 %v1579, %v237
  %v1584 = vmul.f32 %v1582, %v237
  %v1585 = vadd.f32 %v1583, 1e-05
  %v1586 = vadd.f32 %v1584, 1e-05
  %v1587 = vrsqrt.pop %v1585
  %v1588 = vrsqrt.pop %v1586
  %v1589 = vmul.f32 %v1573, %v1587
  %v1590 = vmul.f32 %v1574, %v1588
  %v1591 = vld [vmem:[%s6] sm:$0xff]
  %v1592 = vld [vmem:[%s6 + $0x8] sm:$0xff]
  %v1593 = vld [vmem:[%s6 + $0x10] sm:$0xff]
  %v1594 = vld [vmem:[%s6 + $0x18] sm:$0xff]
  %v1595 = vld [vmem:[%s3 + $0x2] sm:$0x1]
  %v1596 = vlaneseq
  %v1597 = vshrl.u32 %v1596, 7
  %v1598 = vsub.s32 0, %v1597
  %v1599 = vrot.slane %v1595, %v1598
  %v1601 = vsel %vm74, %v1589, 0
  %v1604 = vsel %vm74, %v1590, 0
  %1606 = vmatprep.subr.mxu0 0.0
  %1607 = vmatpush1.msra.mxu0 %v1591
  %1608 = vmatprep.subr.mxu0 0.0
  %1609 = vmatpush1.msra.mxu0 %v1592
  %1610 = vmatprep.subr.mxu0 0.0
  %1611 = vmatpush1.msra.mxu0 %v1593
  %1612 = vmatprep.subr.mxu0 0.0
  %1613 = vmatpush1.msra.mxu0 %v1594
  %1614 = vmatprep.subr.mxu0 0.0
  %1615 = vmatpush1.msra.mxu0 0.0
  %1616 = vmatprep.subr.mxu0 0.0
  %1617 = vmatpush1.msra.mxu0 0.0
  %1618 = vmatprep.subr.mxu0 0.0
  %1619 = vmatpush1.msra.mxu0 0.0
  %1620 = vmatprep.subr.mxu0 0.0
  %1621 = vmatpush1.msra.mxu0 0.0
  %1622 = vmatprep.subr.mxu0 0.0
  %1623 = vmatpush1.msra.mxu0 0.0
  %1624 = vmatprep.subr.mxu0 0.0
  %1625 = vmatpush1.msra.mxu0 0.0
  %1626 = vmatprep.subr.mxu0 0.0
  %1627 = vmatpush1.msra.mxu0 0.0
  %1628 = vmatprep.subr.mxu0 0.0
  %1629 = vmatpush1.msra.mxu0 0.0
  %1630 = vmatprep.subr.mxu0 0.0
  %1631 = vmatpush1.msra.mxu0 0.0
  %1632 = vmatprep.subr.mxu0 0.0
  %1633 = vmatpush1.msra.mxu0 0.0
  %1634 = vmatprep.subr.mxu0 0.0
  %1635 = vmatpush1.msra.mxu0 0.0
  %1636 = vmatprep.subr.mxu0 0.0
  %1637 = vmatpush1.msra.mxu0 0.0
  %1638 = vmatprep.subr.mxu0 0.0
  %1639 = vmatpush1.msra.mxu0 0.0
  %1640 = vmatprep.subr.mxu0 0.0
  %1641 = vmatpush1.msra.mxu0 0.0
  %1642 = vmatprep.subr.mxu0 0.0
  %1643 = vmatpush1.msra.mxu0 0.0
  %1644 = vmatprep.subr.mxu0 0.0
  %1645 = vmatpush1.msra.mxu0 0.0
  %1646 = vmatprep.subr.mxu0 0.0
  %1647 = vmatpush1.msra.mxu0 0.0
  %1648 = vmatprep.subr.mxu0 0.0
  %1649 = vmatpush1.msra.mxu0 0.0
  %1650 = vmatprep.subr.mxu0 0.0
  %1651 = vmatpush1.msra.mxu0 0.0
  %1652 = vmatprep.subr.mxu0 0.0
  %1653 = vmatpush1.msra.mxu0 0.0
  %1654 = vmatprep.subr.mxu0 0.0
  %1655 = vmatpush1.msra.mxu0 0.0
  %1656 = vmatprep.subr.mxu0 0.0
  %1657 = vmatpush1.msra.mxu0 0.0
  %1658 = vmatprep.subr.mxu0 0.0
  %1659 = vmatpush1.msra.mxu0 0.0
  %1660 = vmatprep.subr.mxu0 0.0
  %1661 = vmatpush1.msra.mxu0 0.0
  %1662 = vmatprep.subr.mxu0 0.0
  %1663 = vmatpush1.msra.mxu0 0.0
  %1664 = vmatprep.subr.mxu0 0.0
  %1665 = vmatpush1.msra.mxu0 0.0
  %1666 = vmatprep.subr.mxu0 0.0
  %1667 = vmatpush1.msra.mxu0 0.0
  %1668 = vmatprep.subr.mxu0 0.0
  %1669 = vmatpush1.msra.mxu0 0.0
  %1670 = vmatprep.mubr.f32.mxu0 0.0
  %1671 = vmatmul.mubr.f32.gmra.mrb[0].mxu0 %v1601
  %v1672 = vpop.f32.mrb[0].mxu0
  %v1673 = vadd.f32 %v1599, %v1672
  %v1674 = vpop.f32.mrb[0].mxu0
  %1675 = vmatprep.mubr.f32.mxu0 0.0
  %1676 = vmatmul.mubr.f32.gmra.mrb[0].mxu0 %v1604
  %v1677 = vpop.f32.mrb[0].mxu0
  %v1678 = vadd.f32 %v1599, %v1677
  %v1679 = vpop.f32.mrb[0].mxu0
  %1680 = vdwg.mxu0
  %v1681 = vmul.f32 %v1673, %v1673
  %v1682 = vmul.f32 %v1678, %v1678
  %v1683 = vmul.f32 %v1673, %v1681
  %v1684 = vmul.f32 %v1678, %v1682
  %v1685 = vmul.f32 %v1683, 0.044715
  %v1686 = vmul.f32 %v1684, 0.044715
  %v1687 = vadd.f32 %v1673, %v1685
  %v1688 = vadd.f32 %v1678, %v1686
  %v1689 = vmul.f32 %v1687, 0.7978846
  %v1690 = vmul.f32 %v1688, 0.7978846
  %v1691 = vtanh.pop %v1689
  %v1692 = vtanh.pop %v1690
  %v1693 = vadd.f32 %v1691, 1.0
  %v1694 = vadd.f32 %v1692, 1.0
  %v1695 = vmul.f32 %v1693, 0.5
  %v1696 = vmul.f32 %v1694, 0.5
  %v1697 = vmul.f32 %v1673, %v1695
  %v1698 = vmul.f32 %v1678, %v1696
  %v1699 = vld [vmem:[%s7] sm:$0xff]
  %v1700 = vld [vmem:[%s7 + $0x8] sm:$0xff]
  %v1701 = vld [vmem:[%s7 + $0x10] sm:$0xff]
  %v1702 = vld [vmem:[%s7 + $0x18] sm:$0xff]
  %v1703 = vld [vmem:[%s7 + $0x20] sm:$0xff]
  %v1704 = vld [vmem:[%s7 + $0x28] sm:$0xff]
  %v1705 = vld [vmem:[%s7 + $0x30] sm:$0xff]
  %v1706 = vld [vmem:[%s7 + $0x38] sm:$0xff]
  %v1707 = vld [vmem:[%s7 + $0x40] sm:$0xff]
  %v1708 = vld [vmem:[%s7 + $0x48] sm:$0xff]
  %v1709 = vld [vmem:[%s7 + $0x50] sm:$0xff]
  %v1710 = vld [vmem:[%s7 + $0x58] sm:$0xff]
  %v1711 = vld [vmem:[%s7 + $0x60] sm:$0xff]
  %v1712 = vld [vmem:[%s7 + $0x68] sm:$0xff]
  %v1713 = vld [vmem:[%s7 + $0x70] sm:$0xff]
  %v1714 = vld [vmem:[%s7 + $0x78] sm:$0xff]
  %1715 = vmatprep.subr.mxu0 0.0
  %1716 = vmatpush1.msra.mxu0 %v1699
  %1717 = vmatprep.subr.mxu0 0.0
  %1718 = vmatpush1.msra.mxu0 %v1700
  %1719 = vmatprep.subr.mxu0 0.0
  %1720 = vmatpush1.msra.mxu0 %v1701
  %1721 = vmatprep.subr.mxu0 0.0
  %1722 = vmatpush1.msra.mxu0 %v1702
  %1723 = vmatprep.subr.mxu0 0.0
  %1724 = vmatpush1.msra.mxu0 %v1703
  %1725 = vmatprep.subr.mxu0 0.0
  %1726 = vmatpush1.msra.mxu0 %v1704
  %1727 = vmatprep.subr.mxu0 0.0
  %1728 = vmatpush1.msra.mxu0 %v1705
  %1729 = vmatprep.subr.mxu0 0.0
  %1730 = vmatpush1.msra.mxu0 %v1706
  %1731 = vmatprep.subr.mxu0 0.0
  %1732 = vmatpush1.msra.mxu0 %v1707
  %1733 = vmatprep.subr.mxu0 0.0
  %1734 = vmatpush1.msra.mxu0 %v1708
  %1735 = vmatprep.subr.mxu0 0.0
  %1736 = vmatpush1.msra.mxu0 %v1709
  %1737 = vmatprep.subr.mxu0 0.0
  %1738 = vmatpush1.msra.mxu0 %v1710
  %1739 = vmatprep.subr.mxu0 0.0
  %1740 = vmatpush1.msra.mxu0 %v1711
  %1741 = vmatprep.subr.mxu0 0.0
  %1742 = vmatpush1.msra.mxu0 %v1712
  %1743 = vmatprep.subr.mxu0 0.0
  %1744 = vmatpush1.msra.mxu0 %v1713
  %1745 = vmatprep.subr.mxu0 0.0
  %1746 = vmatpush1.msra.mxu0 %v1714
  %1747 = vmatprep.subr.mxu0 0.0
  %1748 = vmatpush1.msra.mxu0 0.0
  %1749 = vmatprep.subr.mxu0 0.0
  %1750 = vmatpush1.msra.mxu0 0.0
  %1751 = vmatprep.subr.mxu0 0.0
  %1752 = vmatpush1.msra.mxu0 0.0
  %1753 = vmatprep.subr.mxu0 0.0
  %1754 = vmatpush1.msra.mxu0 0.0
  %1755 = vmatprep.subr.mxu0 0.0
  %1756 = vmatpush1.msra.mxu0 0.0
  %1757 = vmatprep.subr.mxu0 0.0
  %1758 = vmatpush1.msra.mxu0 0.0
  %1759 = vmatprep.subr.mxu0 0.0
  %1760 = vmatpush1.msra.mxu0 0.0
  %1761 = vmatprep.subr.mxu0 0.0
  %1762 = vmatpush1.msra.mxu0 0.0
  %1763 = vmatprep.subr.mxu0 0.0
  %1764 = vmatpush1.msra.mxu0 0.0
  %1765 = vmatprep.subr.mxu0 0.0
  %1766 = vmatpush1.msra.mxu0 0.0
  %1767 = vmatprep.subr.mxu0 0.0
  %1768 = vmatpush1.msra.mxu0 0.0
  %1769 = vmatprep.subr.mxu0 0.0
  %1770 = vmatpush1.msra.mxu0 0.0
  %1771 = vmatprep.subr.mxu0 0.0
  %1772 = vmatpush1.msra.mxu0 0.0
  %1773 = vmatprep.subr.mxu0 0.0
  %1774 = vmatpush1.msra.mxu0 0.0
  %1775 = vmatprep.subr.mxu0 0.0
  %1776 = vmatpush1.msra.mxu0 0.0
  %1777 = vmatprep.subr.mxu0 0.0
  %1778 = vmatpush1.msra.mxu0 0.0
  %1779 = vmatprep.mubr.f32.mxu0 0.0
  %1780 = vmatmul.mubr.f32.gmra.mrb[0].mxu0 %v1697
  %v1781 = vpop.f32.mrb[0].mxu0
  %v1782 = vadd.f32 0.0, %v1781
  %v1783 = vpop.f32.mrb[0].mxu0
  %1784 = vmatprep.mubr.f32.mxu0 0.0
  %1785 = vmatmul.mubr.f32.gmra.mrb[0].mxu0 %v1698
  %v1786 = vpop.f32.mrb[0].mxu0
  %v1787 = vadd.f32 0.0, %v1786
  %v1788 = vpop.f32.mrb[0].mxu0
  %1789 = vdwg.mxu0
  %v1790 = vadd.f32 %v1563, %v1782
  %v1791 = vadd.f32 %v1564, %v1787
  %v1792 = vld [vmem:[%s2 + $0x4] sm:$0x1]
  %v1793 = vlaneseq
  %v1794 = vshrl.u32 %v1793, 7
  %v1795 = vsub.s32 0, %v1794
  %v1796 = vrot.slane %v1792, %v1795
  %v1797 = vadd.f32 %v1790, %v1796
  %v1798 = vadd.f32 %v1791, %v1796
  %v1799 = vsel %vm74, %v1797, 0.0
  %1800 = vadd.xlane.f32.xlu0 %v1799
  %v1801 = vpop.xlane.xlu0 %1800
  %v1802 = vsel %vm74, %v1798, 0.0
  %1803 = vadd.xlane.f32.xlu0 %v1802
  %v1804 = vpop.xlane.xlu0 %1803
  %v1805 = vmul.f32 %v1801, %v237
  %v1806 = vmul.f32 %v1804, %v237
  %v1807 = vsub.f32 %v1797, %v1805
  %v1808 = vsub.f32 %v1798, %v1806
  %v1809 = vmul.f32 %v1807, %v1807
  %v1810 = vmul.f32 %v1808, %v1808
  %v1811 = vsel %vm74, %v1809, 0.0
  %1812 = vadd.xlane.f32.xlu0 %v1811
  %v1813 = vpop.xlane.xlu0 %1812
  %v1814 = vsel %vm74, %v1810, 0.0
  %1815 = vadd.xlane.f32.xlu0 %v1814
  %v1816 = vpop.xlane.xlu0 %1815
  %v1817 = vmul.f32 %v1813, %v237
  %v1818 = vmul.f32 %v1816, %v237
  %v1819 = vadd.f32 %v1817, 1e-05
  %v1820 = vadd.f32 %v1818, 1e-05
  %v1821 = vrsqrt.pop %v1819
  %v1822 = vrsqrt.pop %v1820
  %v1823 = vmul.f32 %v1807, %v1821
  %v1824 = vmul.f32 %v1808, %v1822
  %s1825 = scalar_lea.vmem %s4, 32
  %v1826 = vld [vmem:[%s1825] sm:$0xff]
  %v1827 = vld [vmem:[%s1825 + $0x8] sm:$0xff]
  %v1828 = vld [vmem:[%s1825 + $0x10] sm:$0xff]
  %v1829 = vld [vmem:[%s1825 + $0x18] sm:$0xff]
  %v1830 = vld [vmem:[%s3 + $0x1] sm:$0x1]
  %v1831 = vlaneseq
  %v1832 = vshrl.u32 %v1831, 7
  %v1833 = vsub.s32 0, %v1832
  %v1834 = vrot.slane %v1830, %v1833
  %v1836 = vsel %vm74, %v1823, 0
  %v1839 = vsel %vm74, %v1824, 0
  %1841 = vmatprep.subr.mxu0 0.0
  %1842 = vmatpush1.msra.mxu0 %v1826
  %1843 = vmatprep.subr.mxu0 0.0
  %1844 = vmatpush1.msra.mxu0 %v1827
  %1845 = vmatprep.subr.mxu0 0.0
  %1846 = vmatpush1.msra.mxu0 %v1828
  %1847 = vmatprep.subr.mxu0 0.0
  %1848 = vmatpush1.msra.mxu0 %v1829
  %1849 = vmatprep.subr.mxu0 0.0
  %1850 = vmatpush1.msra.mxu0 0.0
  %1851 = vmatprep.subr.mxu0 0.0
  %1852 = vmatpush1.msra.mxu0 0.0
  %1853 = vmatprep.subr.mxu0 0.0
  %1854 = vmatpush1.msra.mxu0 0.0
  %1855 = vmatprep.subr.mxu0 0.0
  %1856 = vmatpush1.msra.mxu0 0.0
  %1857 = vmatprep.subr.mxu0 0.0
  %1858 = vmatpush1.msra.mxu0 0.0
  %1859 = vmatprep.subr.mxu0 0.0
  %1860 = vmatpush1.msra.mxu0 0.0
  %1861 = vmatprep.subr.mxu0 0.0
  %1862 = vmatpush1.msra.mxu0 0.0
  %1863 = vmatprep.subr.mxu0 0.0
  %1864 = vmatpush1.msra.mxu0 0.0
  %1865 = vmatprep.subr.mxu0 0.0
  %1866 = vmatpush1.msra.mxu0 0.0
  %1867 = vmatprep.subr.mxu0 0.0
  %1868 = vmatpush1.msra.mxu0 0.0
  %1869 = vmatprep.subr.mxu0 0.0
  %1870 = vmatpush1.msra.mxu0 0.0
  %1871 = vmatprep.subr.mxu0 0.0
  %1872 = vmatpush1.msra.mxu0 0.0
  %1873 = vmatprep.subr.mxu0 0.0
  %1874 = vmatpush1.msra.mxu0 0.0
  %1875 = vmatprep.subr.mxu0 0.0
  %1876 = vmatpush1.msra.mxu0 0.0
  %1877 = vmatprep.subr.mxu0 0.0
  %1878 = vmatpush1.msra.mxu0 0.0
  %1879 = vmatprep.subr.mxu0 0.0
  %1880 = vmatpush1.msra.mxu0 0.0
  %1881 = vmatprep.subr.mxu0 0.0
  %1882 = vmatpush1.msra.mxu0 0.0
  %1883 = vmatprep.subr.mxu0 0.0
  %1884 = vmatpush1.msra.mxu0 0.0
  %1885 = vmatprep.subr.mxu0 0.0
  %1886 = vmatpush1.msra.mxu0 0.0
  %1887 = vmatprep.subr.mxu0 0.0
  %1888 = vmatpush1.msra.mxu0 0.0
  %1889 = vmatprep.subr.mxu0 0.0
  %1890 = vmatpush1.msra.mxu0 0.0
  %1891 = vmatprep.subr.mxu0 0.0
  %1892 = vmatpush1.msra.mxu0 0.0
  %1893 = vmatprep.subr.mxu0 0.0
  %1894 = vmatpush1.msra.mxu0 0.0
  %1895 = vmatprep.subr.mxu0 0.0
  %1896 = vmatpush1.msra.mxu0 0.0
  %1897 = vmatprep.subr.mxu0 0.0
  %1898 = vmatpush1.msra.mxu0 0.0
  %1899 = vmatprep.subr.mxu0 0.0
  %1900 = vmatpush1.msra.mxu0 0.0
  %1901 = vmatprep.subr.mxu0 0.0
  %1902 = vmatpush1.msra.mxu0 0.0
  %1903 = vmatprep.subr.mxu0 0.0
  %1904 = vmatpush1.msra.mxu0 0.0
  %1905 = vmatprep.mubr.f32.mxu0 0.0
  %1906 = vmatmul.mubr.f32.gmra.mrb[0].mxu0 %v1836
  %v1907 = vpop.f32.mrb[0].mxu0
  %v1908 = vadd.f32 %v1834, %v1907
  %v1909 = vpop.f32.mrb[0].mxu0
  %1910 = vmatprep.mubr.f32.mxu0 0.0
  %1911 = vmatmul.mubr.f32.gmra.mrb[0].mxu0 %v1839
  %v1912 = vpop.f32.mrb[0].mxu0
  %v1913 = vadd.f32 %v1834, %v1912
  %v1914 = vpop.f32.mrb[0].mxu0
  %1915 = vdwg.mxu0
  %1918 = vrot.lane.b32.xlu0 %v1908, 96
  %v1919 = vpop.permute.xlu0 %1918
  %1920 = vrot.lane.b32.xlu0 %v1913, 96
  %v1921 = vpop.permute.xlu0 %1920
  %v1922 = vsel %vm427, %v1908, 0
  %v1924 = vsel %vm427, %v1913, 0
  %v1926 = vsel %vm427, %v1919, 0
  %v1928 = vsel %vm427, %v1921, 0
  %1930 = vmatprep.subr.mxu0 0.0
  %1931 = vmatpush1.xpose.msra.mxu0 %v1926
  %1932 = vmatprep.subr.mxu0 0.0
  %1933 = vmatpush1.xpose.msra.mxu0 %v1928
  %1934 = vmatprep.subr.mxu0 0.0
  %1935 = vmatpush1.xpose.msra.mxu0 0.0
  %1936 = vmatprep.subr.mxu0 0.0
  %1937 = vmatpush1.xpose.msra.mxu0 0.0
  %1938 = vmatprep.subr.mxu0 0.0
  %1939 = vmatpush1.xpose.msra.mxu0 0.0
  %1940 = vmatprep.subr.mxu0 0.0
  %1941 = vmatpush1.xpose.msra.mxu0 0.0
  %1942 = vmatprep.subr.mxu0 0.0
  %1943 = vmatpush1.xpose.msra.mxu0 0.0
  %1944 = vmatprep.subr.mxu0 0.0
  %1945 = vmatpush1.xpose.msra.mxu0 0.0
  %1946 = vmatprep.subr.mxu0 0.0
  %1947 = vmatpush1.xpose.msra.mxu0 0.0
  %1948 = vmatprep.subr.mxu0 0.0
  %1949 = vmatpush1.xpose.msra.mxu0 0.0
  %1950 = vmatprep.subr.mxu0 0.0
  %1951 = vmatpush1.xpose.msra.mxu0 0.0
  %1952 = vmatprep.subr.mxu0 0.0
  %1953 = vmatpush1.xpose.msra.mxu0 0.0
  %1954 = vmatprep.subr.mxu0 0.0
  %1955 = vmatpush1.xpose.msra.mxu0 0.0
  %1956 = vmatprep.subr.mxu0 0.0
  %1957 = vmatpush1.xpose.msra.mxu0 0.0
  %1958 = vmatprep.subr.mxu0 0.0
  %1959 = vmatpush1.xpose.msra.mxu0 0.0
  %1960 = vmatprep.subr.mxu0 0.0
  %1961 = vmatpush1.xpose.msra.mxu0 0.0
  %1962 = vmatprep.subr.mxu0 0.0
  %1963 = vmatpush1.xpose.msra.mxu0 0.0
  %1964 = vmatprep.subr.mxu0 0.0
  %1965 = vmatpush1.xpose.msra.mxu0 0.0
  %1966 = vmatprep.subr.mxu0 0.0
  %1967 = vmatpush1.xpose.msra.mxu0 0.0
  %1968 = vmatprep.subr.mxu0 0.0
  %1969 = vmatpush1.xpose.msra.mxu0 0.0
  %1970 = vmatprep.subr.mxu0 0.0
  %1971 = vmatpush1.xpose.msra.mxu0 0.0
  %1972 = vmatprep.subr.mxu0 0.0
  %1973 = vmatpush1.xpose.msra.mxu0 0.0
  %1974 = vmatprep.subr.mxu0 0.0
  %1975 = vmatpush1.xpose.msra.mxu0 0.0
  %1976 = vmatprep.subr.mxu0 0.0
  %1977 = vmatpush1.xpose.msra.mxu0 0.0
  %1978 = vmatprep.subr.mxu0 0.0
  %1979 = vmatpush1.xpose.msra.mxu0 0.0
  %1980 = vmatprep.subr.mxu0 0.0
  %1981 = vmatpush1.xpose.msra.mxu0 0.0
  %1982 = vmatprep.subr.mxu0 0.0
  %1983 = vmatpush1.xpose.msra.mxu0 0.0
  %1984 = vmatprep.subr.mxu0 0.0
  %1985 = vmatpush1.xpose.msra.mxu0 0.0
  %1986 = vmatprep.subr.mxu0 0.0
  %1987 = vmatpush1.xpose.msra.mxu0 0.0
  %1988 = vmatprep.subr.mxu0 0.0
  %1989 = vmatpush1.xpose.msra.mxu0 0.0
  %1990 = vmatprep.subr.mxu0 0.0
  %1991 = vmatpush1.xpose.msra.mxu0 0.0
  %1992 = vmatprep.subr.mxu0 0.0
  %1993 = vmatpush1.xpose.msra.mxu0 0.0
  %1994 = vmatprep.mubr.f32.mxu0 0.0
  %1995 = vmatmul.mubr.f32.gmra.mrb[0].mxu0 %v1922
  %v1996 = vpop.f32.mrb[0].mxu0
  %v1997 = vadd.f32 %v303, %v1996
  %v1998 = vpop.f32.mrb[0].mxu0
  %1999 = vmatprep.mubr.f32.mxu0 0.0
  %2000 = vmatmul.mubr.f32.gmra.mrb[0].mxu0 %v1924
  %v2001 = vpop.f32.mrb[0].mxu0
  %v2002 = vadd.f32 %v304, %v2001
  %v2003 = vpop.f32.mrb[0].mxu0
  %2004 = vdwg.mxu0
  %v2005 = vsel %vm511, %v1997, -inf
  %2006 = vmax.xlane.f32.xlu0 %v2005
  %v2007 = vpop.xlane.xlu0 %2006
  %v2008 = vsel %vm511, %v2002, -inf
  %2009 = vmax.xlane.f32.xlu0 %v2008
  %v2010 = vpop.xlane.xlu0 %2009
  %v2011 = vsub.f32 %v1997, %v2007
  %v2012 = vsub.f32 %v2002, %v2010
  %v2013 = vmul.f32 %v2011, 1.442695
  %v2014 = vpow.pop %v2013
  %v2015 = vmul.f32 %v2012, 1.442695
  %v2016 = vpow.pop %v2015
  %v2017 = vsel %vm511, %v2014, 0.0
  %2018 = vadd.xlane.f32.xlu0 %v2017
  %v2019 = vpop.xlane.xlu0 %2018
  %v2020 = vsel %vm511, %v2016, 0.0
  %2021 = vadd.xlane.f32.xlu0 %v2020
  %v2022 = vpop.xlane.xlu0 %2021
  %v2023 = vrcp.pop %v2019
  %v2024 = vmul.f32 %v2014, %v2023
  %v2025 = vrcp.pop %v2022
  %v2026 = vmul.f32 %v2016, %v2025
  %2027 = vrot.lane.b32.xlu0 %v1908, 64
  %v2028 = vpop.permute.xlu0 %2027
  %2029 = vrot.lane.b32.xlu0 %v1913, 64
  %v2030 = vpop.permute.xlu0 %2029
  %v2034 = vsel %vm511, %v2024, 0
  %v2037 = vsel %vm511, %v2026, 0
  %2039 = vmatprep.subr.mxu0 0.0
  %2040 = vmatpush1.msra.mxu0 %v2028
  %2041 = vmatprep.subr.mxu0 0.0
  %2042 = vmatpush1.msra.mxu0 %v2030
  %2043 = vmatprep.subr.mxu0 0.0
  %2044 = vmatpush1.msra.mxu0 0.0
  %2045 = vmatprep.subr.mxu0 0.0
  %2046 = vmatpush1.msra.mxu0 0.0
  %2047 = vmatprep.subr.mxu0 0.0
  %2048 = vmatpush1.msra.mxu0 0.0
  %2049 = vmatprep.subr.mxu0 0.0
  %2050 = vmatpush1.msra.mxu0 0.0
  %2051 = vmatprep.subr.mxu0 0.0
  %2052 = vmatpush1.msra.mxu0 0.0
  %2053 = vmatprep.subr.mxu0 0.0
  %2054 = vmatpush1.msra.mxu0 0.0
  %2055 = vmatprep.subr.mxu0 0.0
  %2056 = vmatpush1.msra.mxu0 0.0
  %2057 = vmatprep.subr.mxu0 0.0
  %2058 = vmatpush1.msra.mxu0 0.0
  %2059 = vmatprep.subr.mxu0 0.0
  %2060 = vmatpush1.msra.mxu0 0.0
  %2061 = vmatprep.subr.mxu0 0.0
  %2062 = vmatpush1.msra.mxu0 0.0
  %2063 = vmatprep.subr.mxu0 0.0
  %2064 = vmatpush1.msra.mxu0 0.0
  %2065 = vmatprep.subr.mxu0 0.0
  %2066 = vmatpush1.msra.mxu0 0.0
  %2067 = vmatprep.subr.mxu0 0.0
  %2068 = vmatpush1.msra.mxu0 0.0
  %2069 = vmatprep.subr.mxu0 0.0
  %2070 = vmatpush1.msra.mxu0 0.0
  %2071 = vmatprep.subr.mxu0 0.0
  %2072 = vmatpush1.msra.mxu0 0.0
  %2073 = vmatprep.subr.mxu0 0.0
  %2074 = vmatpush1.msra.mxu0 0.0
  %2075 = vmatprep.subr.mxu0 0.0
  %2076 = vmatpush1.msra.mxu0 0.0
  %2077 = vmatprep.subr.mxu0 0.0
  %2078 = vmatpush1.msra.mxu0 0.0
  %2079 = vmatprep.subr.mxu0 0.0
  %2080 = vmatpush1.msra.mxu0 0.0
  %2081 = vmatprep.subr.mxu0 0.0
  %2082 = vmatpush1.msra.mxu0 0.0
  %2083 = vmatprep.subr.mxu0 0.0
  %2084 = vmatpush1.msra.mxu0 0.0
  %2085 = vmatprep.subr.mxu0 0.0
  %2086 = vmatpush1.msra.mxu0 0.0
  %2087 = vmatprep.subr.mxu0 0.0
  %2088 = vmatpush1.msra.mxu0 0.0
  %2089 = vmatprep.subr.mxu0 0.0
  %2090 = vmatpush1.msra.mxu0 0.0
  %2091 = vmatprep.subr.mxu0 0.0
  %2092 = vmatpush1.msra.mxu0 0.0
  %2093 = vmatprep.subr.mxu0 0.0
  %2094 = vmatpush1.msra.mxu0 0.0
  %2095 = vmatprep.subr.mxu0 0.0
  %2096 = vmatpush1.msra.mxu0 0.0
  %2097 = vmatprep.subr.mxu0 0.0
  %2098 = vmatpush1.msra.mxu0 0.0
  %2099 = vmatprep.subr.mxu0 0.0
  %2100 = vmatpush1.msra.mxu0 0.0
  %2101 = vmatprep.subr.mxu0 0.0
  %2102 = vmatpush1.msra.mxu0 0.0
  %2103 = vmatprep.mubr.f32.mxu0 0.0
  %2104 = vmatmul.mubr.f32.gmra.mrb[0].mxu0 %v2034
  %v2105 = vpop.f32.mrb[0].mxu0
  %v2106 = vadd.f32 0.0, %v2105
  %v2107 = vpop.f32.mrb[0].mxu0
  %2108 = vmatprep.mubr.f32.mxu0 0.0
  %2109 = vmatmul.mubr.f32.gmra.mrb[0].mxu0 %v2037
  %v2110 = vpop.f32.mrb[0].mxu0
  %v2111 = vadd.f32 0.0, %v2110
  %v2112 = vpop.f32.mrb[0].mxu0
  %2113 = vdwg.mxu0
  %s2114 = scalar_lea.vmem %s5, 32
  %v2115 = vld [vmem:[%s2114] sm:$0xff]
  %2116 = vrot.lane.b32.xlu0 %v1908, 120
  %v2117 = vpop.permute.xlu0 %2116
  %2118 = vrot.lane.b32.xlu0 %v1913, 120
  %v2119 = vpop.permute.xlu0 %2118
  %2120 = vrot.lane.b32.xlu0 %v1908, 88
  %v2121 = vpop.permute.xlu0 %2120
  %2122 = vrot.lane.b32.xlu0 %v1913, 88
  %v2123 = vpop.permute.xlu0 %2122
  %v2124 = vsel %vm427, %v2117, 0
  %v2126 = vsel %vm427, %v2119, 0
  %v2128 = vsel %vm427, %v2121, 0
  %v2130 = vsel %vm427, %v2123, 0
  %2132 = vmatprep.subr.mxu0 0.0
  %2133 = vmatpush1.xpose.msra.mxu0 %v2128
  %2134 = vmatprep.subr.mxu0 0.0
  %2135 = vmatpush1.xpose.msra.mxu0 %v2130
  %2136 = vmatprep.subr.mxu0 0.0
  %2137 = vmatpush1.xpose.msra.mxu0 0.0
  %2138 = vmatprep.subr.mxu0 0.0
  %2139 = vmatpush1.xpose.msra.mxu0 0.0
  %2140 = vmatprep.subr.mxu0 0.0
  %2141 = vmatpush1.xpose.msra.mxu0 0.0
  %2142 = vmatprep.subr.mxu0 0.0
  %2143 = vmatpush1.xpose.msra.mxu0 0.0
  %2144 = vmatprep.subr.mxu0 0.0
  %2145 = vmatpush1.xpose.msra.mxu0 0.0
  %2146 = vmatprep.subr.mxu0 0.0
  %2147 = vmatpush1.xpose.msra.mxu0 0.0
  %2148 = vmatprep.subr.mxu0 0.0
  %2149 = vmatpush1.xpose.msra.mxu0 0.0
  %2150 = vmatprep.subr.mxu0 0.0
  %2151 = vmatpush1.xpose.msra.mxu0 0.0
  %2152 = vmatprep.subr.mxu0 0.0
  %2153 = vmatpush1.xpose.msra.mxu0 0.0
  %2154 = vmatprep.subr.mxu0 0.0
  %2155 = vmatpush1.xpose.msra.mxu0 0.0
  %2156 = vmatprep.subr.mxu0 0.0
  %2157 = vmatpush1.xpose.msra.mxu0 0.0
  %2158 = vmatprep.subr.mxu0 0.0
  %2159 = vmatpush1.xpose.msra.mxu0 0.0
  %2160 = vmatprep.subr.mxu0 0.0
  %2161 = vmatpush1.xpose.msra.mxu0 0.0
  %2162 = vmatprep.subr.mxu0 0.0
  %2163 = vmatpush1.xpose.msra.mxu0 0.0
  %2164 = vmatprep.subr.mxu0 0.0
  %2165 = vmatpush1.xpose.msra.mxu0 0.0
  %2166 = vmatprep.subr.mxu0 0.0
  %2167 = vmatpush1.xpose.msra.mxu0 0.0
  %2168 = vmatprep.subr.mxu0 0.0
  %2169 = vmatpush1.xpose.msra.mxu0 0.0
  %2170 = vmatprep.subr.mxu0 0.0
  %2171 = vmatpush1.xpose.msra.mxu0 0.0
  %2172 = vmatprep.subr.mxu0 0.0
  %2173 = vmatpush1.xpose.msra.mxu0 0.0
  %2174 = vmatprep.subr.mxu0 0.0
  %2175 = vmatpush1.xpose.msra.mxu0 0.0
  %2176 = vmatprep.subr.mxu0 0.0
  %2177 = vmatpush1.xpose.msra.mxu0 0.0
  %2178 = vmatprep.subr.mxu0 0.0
  %2179 = vmatpush1.xpose.msra.mxu0 0.0
  %2180 = vmatprep.subr.mxu0 0.0
  %2181 = vmatpush1.xpose.msra.mxu0 0.0
  %2182 = vmatprep.subr.mxu0 0.0
  %2183 = vmatpush1.xpose.msra.mxu0 0.0
  %2184 = vmatprep.subr.mxu0 0.0
  %2185 = vmatpush1.xpose.msra.mxu0 0.0
  %2186 = vmatprep.subr.mxu0 0.0
  %2187 = vmatpush1.xpose.msra.mxu0 0.0
  %2188 = vmatprep.subr.mxu0 0.0
  %2189 = vmatpush1.xpose.msra.mxu0 0.0
  %2190 = vmatprep.subr.mxu0 0.0
  %2191 = vmatpush1.xpose.msra.mxu0 0.0
  %2192 = vmatprep.subr.mxu0 0.0
  %2193 = vmatpush1.xpose.msra.mxu0 0.0
  %2194 = vmatprep.subr.mxu0 0.0
  %2195 = vmatpush1.xpose.msra.mxu0 0.0
  %2196 = vmatprep.mubr.f32.mxu0 0.0
  %2197 = vmatmul.mubr.f32.gmra.mrb[0].mxu0 %v2124
  %v2198 = vpop.f32.mrb[0].mxu0
  %v2199 = vadd.f32 %v303, %v2198
  %v2200 = vpop.f32.mrb[0].mxu0
  %2201 = vmatprep.mubr.f32.mxu0 0.0
  %2202 = vmatmul.mubr.f32.gmra.mrb[0].mxu0 %v2126
  %v2203 = vpop.f32.mrb[0].mxu0
  %v2204 = vadd.f32 %v304, %v2203
  %v2205 = vpop.f32.mrb[0].mxu0
  %2206 = vdwg.mxu0
  %v2207 = vsel %vm511, %v2199, -inf
  %2208 = vmax.xlane.f32.xlu0 %v2207
  %v2209 = vpop.xlane.xlu0 %2208
  %v2210 = vsel %vm511, %v2204, -inf
  %2211 = vmax.xlane.f32.xlu0 %v2210
  %v2212 = vpop.xlane.xlu0 %2211
  %v2213 = vsub.f32 %v2199, %v2209
  %v2214 = vsub.f32 %v2204, %v2212
  %v2215 = vmul.f32 %v2213, 1.442695
  %v2216 = vpow.pop %v2215
  %v2217 = vmul.f32 %v2214, 1.442695
  %v2218 = vpow.pop %v2217
  %v2219 = vsel %vm511, %v2216, 0.0
  %2220 = vadd.xlane.f32.xlu0 %v2219
  %v2221 = vpop.xlane.xlu0 %2220
  %v2222 = vsel %vm511, %v2218, 0.0
  %2223 = vadd.xlane.f32.xlu0 %v2222
  %v2224 = vpop.xlane.xlu0 %2223
  %v2225 = vrcp.pop %v2221
  %v2226 = vmul.f32 %v2216, %v2225
  %v2227 = vrcp.pop %v2224
  %v2228 = vmul.f32 %v2218, %v2227
  %2229 = vrot.lane.b32.xlu0 %v1908, 56
  %v2230 = vpop.permute.xlu0 %2229
  %2231 = vrot.lane.b32.xlu0 %v1913, 56
  %v2232 = vpop.permute.xlu0 %2231
  %v2236 = vsel %vm511, %v2226, 0
  %v2239 = vsel %vm511, %v2228, 0
  %2241 = vmatprep.subr.mxu0 0.0
  %2242 = vmatpush1.msra.mxu0 %v2230
  %2243 = vmatprep.subr.mxu0 0.0
  %2244 = vmatpush1.msra.mxu0 %v2232
  %2245 = vmatprep.subr.mxu0 0.0
  %2246 = vmatpush1.msra.mxu0 0.0
  %2247 = vmatprep.subr.mxu0 0.0
  %2248 = vmatpush1.msra.mxu0 0.0
  %2249 = vmatprep.subr.mxu0 0.0
  %2250 = vmatpush1.msra.mxu0 0.0
  %2251 = vmatprep.subr.mxu0 0.0
  %2252 = vmatpush1.msra.mxu0 0.0
  %2253 = vmatprep.subr.mxu0 0.0
  %2254 = vmatpush1.msra.mxu0 0.0
  %2255 = vmatprep.subr.mxu0 0.0
  %2256 = vmatpush1.msra.mxu0 0.0
  %2257 = vmatprep.subr.mxu0 0.0
  %2258 = vmatpush1.msra.mxu0 0.0
  %2259 = vmatprep.subr.mxu0 0.0
  %2260 = vmatpush1.msra.mxu0 0.0
  %2261 = vmatprep.subr.mxu0 0.0
  %2262 = vmatpush1.msra.mxu0 0.0
  %2263 = vmatprep.subr.mxu0 0.0
  %2264 = vmatpush1.msra.mxu0 0.0
  %2265 = vmatprep.subr.mxu0 0.0
  %2266 = vmatpush1.msra.mxu0 0.0
  %2267 = vmatprep.subr.mxu0 0.0
  %2268 = vmatpush1.msra.mxu0 0.0
  %2269 = vmatprep.subr.mxu0 0.0
  %2270 = vmatpush1.msra.mxu0 0.0
  %2271 = vmatprep.subr.mxu0 0.0
  %2272 = vmatpush1.msra.mxu0 0.0
  %2273 = vmatprep.subr.mxu0 0.0
  %2274 = vmatpush1.msra.mxu0 0.0
  %2275 = vmatprep.subr.mxu0 0.0
  %2276 = vmatpush1.msra.mxu0 0.0
  %2277 = vmatprep.subr.mxu0 0.0
  %2278 = vmatpush1.msra.mxu0 0.0
  %2279 = vmatprep.subr.mxu0 0.0
  %2280 = vmatpush1.msra.mxu0 0.0
  %2281 = vmatprep.subr.mxu0 0.0
  %2282 = vmatpush1.msra.mxu0 0.0
  %2283 = vmatprep.subr.mxu0 0.0
  %2284 = vmatpush1.msra.mxu0 0.0
  %2285 = vmatprep.subr.mxu0 0.0
  %2286 = vmatpush1.msra.mxu0 0.0
  %2287 = vmatprep.subr.mxu0 0.0
  %2288 = vmatpush1.msra.mxu0 0.0
  %2289 = vmatprep.subr.mxu0 0.0
  %2290 = vmatpush1.msra.mxu0 0.0
  %2291 = vmatprep.subr.mxu0 0.0
  %2292 = vmatpush1.msra.mxu0 0.0
  %2293 = vmatprep.subr.mxu0 0.0
  %2294 = vmatpush1.msra.mxu0 0.0
  %2295 = vmatprep.subr.mxu0 0.0
  %2296 = vmatpush1.msra.mxu0 0.0
  %2297 = vmatprep.subr.mxu0 0.0
  %2298 = vmatpush1.msra.mxu0 0.0
  %2299 = vmatprep.subr.mxu0 0.0
  %2300 = vmatpush1.msra.mxu0 0.0
  %2301 = vmatprep.subr.mxu0 0.0
  %2302 = vmatpush1.msra.mxu0 0.0
  %2303 = vmatprep.subr.mxu0 0.0
  %2304 = vmatpush1.msra.mxu0 0.0
  %2305 = vmatprep.mubr.f32.mxu0 0.0
  %2306 = vmatmul.mubr.f32.gmra.mrb[0].mxu0 %v2236
  %v2307 = vpop.f32.mrb[0].mxu0
  %v2308 = vadd.f32 0.0, %v2307
  %v2309 = vpop.f32.mrb[0].mxu0
  %2310 = vmatprep.mubr.f32.mxu0 0.0
  %2311 = vmatmul.mubr.f32.gmra.mrb[0].mxu0 %v2239
  %v2312 = vpop.f32.mrb[0].mxu0
  %v2313 = vadd.f32 0.0, %v2312
  %v2314 = vpop.f32.mrb[0].mxu0
  %2315 = vdwg.mxu0
  %s2316 = scalar_lea.vmem %s5, 40
  %v2317 = vld [vmem:[%s2316] sm:$0xff]
  %v2319 = vsel %vm427, %v2308, 0
  %v2322 = vsel %vm427, %v2313, 0
  %2324 = vmatprep.subr.mxu0 0.0
  %2325 = vmatpush1.msra.mxu0 %v2317
  %2326 = vmatprep.subr.mxu0 0.0
  %2327 = vmatpush1.msra.mxu0 0.0
  %2328 = vmatprep.subr.mxu0 0.0
  %2329 = vmatpush1.msra.mxu0 0.0
  %2330 = vmatprep.subr.mxu0 0.0
  %2331 = vmatpush1.msra.mxu0 0.0
  %2332 = vmatprep.subr.mxu0 0.0
  %2333 = vmatpush1.msra.mxu0 0.0
  %2334 = vmatprep.subr.mxu0 0.0
  %2335 = vmatpush1.msra.mxu0 0.0
  %2336 = vmatprep.subr.mxu0 0.0
  %2337 = vmatpush1.msra.mxu0 0.0
  %2338 = vmatprep.subr.mxu0 0.0
  %2339 = vmatpush1.msra.mxu0 0.0
  %2340 = vmatprep.subr.mxu0 0.0
  %2341 = vmatpush1.msra.mxu0 0.0
  %2342 = vmatprep.subr.mxu0 0.0
  %2343 = vmatpush1.msra.mxu0 0.0
  %2344 = vmatprep.subr.mxu0 0.0
  %2345 = vmatpush1.msra.mxu0 0.0
  %2346 = vmatprep.subr.mxu0 0.0
  %2347 = vmatpush1.msra.mxu0 0.0
  %2348 = vmatprep.subr.mxu0 0.0
  %2349 = vmatpush1.msra.mxu0 0.0
  %2350 = vmatprep.subr.mxu0 0.0
  %2351 = vmatpush1.msra.mxu0 0.0
  %2352 = vmatprep.subr.mxu0 0.0
  %2353 = vmatpush1.msra.mxu0 0.0
  %2354 = vmatprep.subr.mxu0 0.0
  %2355 = vmatpush1.msra.mxu0 0.0
  %2356 = vmatprep.subr.mxu0 0.0
  %2357 = vmatpush1.msra.mxu0 0.0
  %2358 = vmatprep.subr.mxu0 0.0
  %2359 = vmatpush1.msra.mxu0 0.0
  %2360 = vmatprep.subr.mxu0 0.0
  %2361 = vmatpush1.msra.mxu0 0.0
  %2362 = vmatprep.subr.mxu0 0.0
  %2363 = vmatpush1.msra.mxu0 0.0
  %2364 = vmatprep.subr.mxu0 0.0
  %2365 = vmatpush1.msra.mxu0 0.0
  %2366 = vmatprep.subr.mxu0 0.0
  %2367 = vmatpush1.msra.mxu0 0.0
  %2368 = vmatprep.subr.mxu0 0.0
  %2369 = vmatpush1.msra.mxu0 0.0
  %2370 = vmatprep.subr.mxu0 0.0
  %2371 = vmatpush1.msra.mxu0 0.0
  %2372 = vmatprep.subr.mxu0 0.0
  %2373 = vmatpush1.msra.mxu0 0.0
  %2374 = vmatprep.subr.mxu0 0.0
  %2375 = vmatpush1.msra.mxu0 0.0
  %2376 = vmatprep.subr.mxu0 0.0
  %2377 = vmatpush1.msra.mxu0 0.0
  %2378 = vmatprep.subr.mxu0 0.0
  %2379 = vmatpush1.msra.mxu0 0.0
  %2380 = vmatprep.subr.mxu0 0.0
  %2381 = vmatpush1.msra.mxu0 0.0
  %2382 = vmatprep.subr.mxu0 0.0
  %2383 = vmatpush1.msra.mxu0 0.0
  %2384 = vmatprep.subr.mxu0 0.0
  %2385 = vmatpush1.msra.mxu0 0.0
  %2386 = vmatprep.subr.mxu0 0.0
  %2387 = vmatpush1.msra.mxu0 0.0
  %2388 = vmatprep.mubr.f32.mxu0 0.0
  %2389 = vmatmul.mubr.f32.gmra.mrb[0].mxu0 %v2319
  %v2390 = vpop.f32.mrb[0].mxu0
  %v2391 = vadd.f32 0.0, %v2390
  %v2392 = vpop.f32.mrb[0].mxu0
  %2393 = vmatprep.mubr.f32.mxu0 0.0
  %2394 = vmatmul.mubr.f32.gmra.mrb[0].mxu0 %v2322
  %v2395 = vpop.f32.mrb[0].mxu0
  %v2396 = vadd.f32 0.0, %v2395
  %v2397 = vpop.f32.mrb[0].mxu0
  %2398 = vdwg.mxu0
  %v2400 = vsel %vm427, %v2106, 0
  %v2403 = vsel %vm427, %v2111, 0
  %2405 = vmatprep.subr.mxu0 0.0
  %2406 = vmatpush1.msra.mxu0 %v2115
  %2407 = vmatprep.subr.mxu0 0.0
  %2408 = vmatpush1.msra.mxu0 0.0
  %2409 = vmatprep.subr.mxu0 0.0
  %2410 = vmatpush1.msra.mxu0 0.0
  %2411 = vmatprep.subr.mxu0 0.0
  %2412 = vmatpush1.msra.mxu0 0.0
  %2413 = vmatprep.subr.mxu0 0.0
  %2414 = vmatpush1.msra.mxu0 0.0
  %2415 = vmatprep.subr.mxu0 0.0
  %2416 = vmatpush1.msra.mxu0 0.0
  %2417 = vmatprep.subr.mxu0 0.0
  %2418 = vmatpush1.msra.mxu0 0.0
  %2419 = vmatprep.subr.mxu0 0.0
  %2420 = vmatpush1.msra.mxu0 0.0
  %2421 = vmatprep.subr.mxu0 0.0
  %2422 = vmatpush1.msra.mxu0 0.0
  %2423 = vmatprep.subr.mxu0 0.0
  %2424 = vmatpush1.msra.mxu0 0.0
  %2425 = vmatprep.subr.mxu0 0.0
  %2426 = vmatpush1.msra.mxu0 0.0
  %2427 = vmatprep.subr.mxu0 0.0
  %2428 = vmatpush1.msra.mxu0 0.0
  %2429 = vmatprep.subr.mxu0 0.0
  %2430 = vmatpush1.msra.mxu0 0.0
  %2431 = vmatprep.subr.mxu0 0.0
  %2432 = vmatpush1.msra.mxu0 0.0
  %2433 = vmatprep.subr.mxu0 0.0
  %2434 = vmatpush1.msra.mxu0 0.0
  %2435 = vmatprep.subr.mxu0 0.0
  %2436 = vmatpush1.msra.mxu0 0.0
  %2437 = vmatprep.subr.mxu0 0.0
  %2438 = vmatpush1.msra.mxu0 0.0
  %2439 = vmatprep.subr.mxu0 0.0
  %2440 = vmatpush1.msra.mxu0 0.0
  %2441 = vmatprep.subr.mxu0 0.0
  %2442 = vmatpush1.msra.mxu0 0.0
  %2443 = vmatprep.subr.mxu0 0.0
  %2444 = vmatpush1.msra.mxu0 0.0
  %2445 = vmatprep.subr.mxu0 0.0
  %2446 = vmatpush1.msra.mxu0 0.0
  %2447 = vmatprep.subr.mxu0 0.0
  %2448 = vmatpush1.msra.mxu0 0.0
  %2449 = vmatprep.subr.mxu0 0.0
  %2450 = vmatpush1.msra.mxu0 0.0
  %2451 = vmatprep.subr.mxu0 0.0
  %2452 = vmatpush1.msra.mxu0 0.0
  %2453 = vmatprep.subr.mxu0 0.0
  %2454 = vmatpush1.msra.mxu0 0.0
  %2455 = vmatprep.subr.mxu0 0.0
  %2456 = vmatpush1.msra.mxu0 0.0
  %2457 = vmatprep.subr.mxu0 0.0
  %2458 = vmatpush1.msra.mxu0 0.0
  %2459 = vmatprep.subr.mxu0 0.0
  %2460 = vmatpush1.msra.mxu0 0.0
  %2461 = vmatprep.subr.mxu0 0.0
  %2462 = vmatpush1.msra.mxu0 0.0
  %2463 = vmatprep.subr.mxu0 0.0
  %2464 = vmatpush1.msra.mxu0 0.0
  %2465 = vmatprep.subr.mxu0 0.0
  %2466 = vmatpush1.msra.mxu0 0.0
  %2467 = vmatprep.subr.mxu0 0.0
  %2468 = vmatpush1.msra.mxu0 0.0
  %2469 = vmatprep.mubr.f32.mxu0 0.0
  %2470 = vmatmul.mubr.f32.gmra.mrb[0].mxu0 %v2400
  %v2471 = vpop.f32.mrb[0].mxu0
  %v2472 = vadd.f32 %v2391, %v2471
  %v2473 = vpop.f32.mrb[0].mxu0
  %2474 = vmatprep.mubr.f32.mxu0 0.0
  %2475 = vmatmul.mubr.f32.gmra.mrb[0].mxu0 %v2403
  %v2476 = vpop.f32.mrb[0].mxu0
  %v2477 = vadd.f32 %v2396, %v2476
  %v2478 = vpop.f32.mrb[0].mxu0
  %2479 = vdwg.mxu0
  %2480 = vrot.lane.b32.xlu0 %v1908, 112
  %v2481 = vpop.permute.xlu0 %2480
  %2482 = vrot.lane.b32.xlu0 %v1913, 112
  %v2483 = vpop.permute.xlu0 %2482
  %2484 = vrot.lane.b32.xlu0 %v1908, 80
  %v2485 = vpop.permute.xlu0 %2484
  %2486 = vrot.lane.b32.xlu0 %v1913, 80
  %v2487 = vpop.permute.xlu0 %2486
  %v2488 = vsel %vm427, %v2481, 0
  %v2490 = vsel %vm427, %v2483, 0
  %v2492 = vsel %vm427, %v2485, 0
  %v2494 = vsel %vm427, %v2487, 0
  %2496 = vmatprep.subr.mxu0 0.0
  %2497 = vmatpush1.xpose.msra.mxu0 %v2492
  %2498 = vmatprep.subr.mxu0 0.0
  %2499 = vmatpush1.xpose.msra.mxu0 %v2494
  %2500 = vmatprep.subr.mxu0 0.0
  %2501 = vmatpush1.xpose.msra.mxu0 0.0
  %2502 = vmatprep.subr.mxu0 0.0
  %2503 = vmatpush1.xpose.msra.mxu0 0.0
  %2504 = vmatprep.subr.mxu0 0.0
  %2505 = vmatpush1.xpose.msra.mxu0 0.0
  %2506 = vmatprep.subr.mxu0 0.0
  %2507 = vmatpush1.xpose.msra.mxu0 0.0
  %2508 = vmatprep.subr.mxu0 0.0
  %2509 = vmatpush1.xpose.msra.mxu0 0.0
  %2510 = vmatprep.subr.mxu0 0.0
  %2511 = vmatpush1.xpose.msra.mxu0 0.0
  %2512 = vmatprep.subr.mxu0 0.0
  %2513 = vmatpush1.xpose.msra.mxu0 0.0
  %2514 = vmatprep.subr.mxu0 0.0
  %2515 = vmatpush1.xpose.msra.mxu0 0.0
  %2516 = vmatprep.subr.mxu0 0.0
  %2517 = vmatpush1.xpose.msra.mxu0 0.0
  %2518 = vmatprep.subr.mxu0 0.0
  %2519 = vmatpush1.xpose.msra.mxu0 0.0
  %2520 = vmatprep.subr.mxu0 0.0
  %2521 = vmatpush1.xpose.msra.mxu0 0.0
  %2522 = vmatprep.subr.mxu0 0.0
  %2523 = vmatpush1.xpose.msra.mxu0 0.0
  %2524 = vmatprep.subr.mxu0 0.0
  %2525 = vmatpush1.xpose.msra.mxu0 0.0
  %2526 = vmatprep.subr.mxu0 0.0
  %2527 = vmatpush1.xpose.msra.mxu0 0.0
  %2528 = vmatprep.subr.mxu0 0.0
  %2529 = vmatpush1.xpose.msra.mxu0 0.0
  %2530 = vmatprep.subr.mxu0 0.0
  %2531 = vmatpush1.xpose.msra.mxu0 0.0
  %2532 = vmatprep.subr.mxu0 0.0
  %2533 = vmatpush1.xpose.msra.mxu0 0.0
  %2534 = vmatprep.subr.mxu0 0.0
  %2535 = vmatpush1.xpose.msra.mxu0 0.0
  %2536 = vmatprep.subr.mxu0 0.0
  %2537 = vmatpush1.xpose.msra.mxu0 0.0
  %2538 = vmatprep.subr.mxu0 0.0
  %2539 = vmatpush1.xpose.msra.mxu0 0.0
  %2540 = vmatprep.subr.mxu0 0.0
  %2541 = vmatpush1.xpose.msra.mxu0 0.0
  %2542 = vmatprep.subr.mxu0 0.0
  %2543 = vmatpush1.xpose.msra.mxu0 0.0
  %2544 = vmatprep.subr.mxu0 0.0
  %2545 = vmatpush1.xpose.msra.mxu0 0.0
  %2546 = vmatprep.subr.mxu0 0.0
  %2547 = vmatpush1.xpose.msra.mxu0 0.0
  %2548 = vmatprep.subr.mxu0 0.0
  %2549 = vmatpush1.xpose.msra.mxu0 0.0
  %2550 = vmatprep.subr.mxu0 0.0
  %2551 = vmatpush1.xpose.msra.mxu0 0.0
  %2552 = vmatprep.subr.mxu0 0.0
  %2553 = vmatpush1.xpose.msra.mxu0 0.0
  %2554 = vmatprep.subr.mxu0 0.0
  %2555 = vmatpush1.xpose.msra.mxu0 0.0
  %2556 = vmatprep.subr.mxu0 0.0
  %2557 = vmatpush1.xpose.msra.mxu0 0.0
  %2558 = vmatprep.subr.mxu0 0.0
  %2559 = vmatpush1.xpose.msra.mxu0 0.0
  %2560 = vmatprep.mubr.f32.mxu0 0.0
  %2561 = vmatmul.mubr.f32.gmra.mrb[0].mxu0 %v2488
  %v2562 = vpop.f32.mrb[0].mxu0
  %v2563 = vadd.f32 %v303, %v2562
  %v2564 = vpop.f32.mrb[0].mxu0
  %2565 = vmatprep.mubr.f32.mxu0 0.0
  %2566 = vmatmul.mubr.f32.gmra.mrb[0].mxu0 %v2490
  %v2567 = vpop.f32.mrb[0].mxu0
  %v2568 = vadd.f32 %v304, %v2567
  %v2569 = vpop.f32.mrb[0].mxu0
  %2570 = vdwg.mxu0
  %v2571 = vsel %vm511, %v2563, -inf
  %2572 = vmax.xlane.f32.xlu0 %v2571
  %v2573 = vpop.xlane.xlu0 %2572
  %v2574 = vsel %vm511, %v2568, -inf
  %2575 = vmax.xlane.f32.xlu0 %v2574
  %v2576 = vpop.xlane.xlu0 %2575
  %v2577 = vsub.f32 %v2563, %v2573
  %v2578 = vsub.f32 %v2568, %v2576
  %v2579 = vmul.f32 %v2577, 1.442695
  %v2580 = vpow.pop %v2579
  %v2581 = vmul.f32 %v2578, 1.442695
  %v2582 = vpow.pop %v2581
  %v2583 = vsel %vm511, %v2580, 0.0
  %2584 = vadd.xlane.f32.xlu0 %v2583
  %v2585 = vpop.xlane.xlu0 %2584
  %v2586 = vsel %vm511, %v2582, 0.0
  %2587 = vadd.xlane.f32.xlu0 %v2586
  %v2588 = vpop.xlane.xlu0 %2587
  %v2589 = vrcp.pop %v2585
  %v2590 = vmul.f32 %v2580, %v2589
  %v2591 = vrcp.pop %v2588
  %v2592 = vmul.f32 %v2582, %v2591
  %2593 = vrot.lane.b32.xlu0 %v1908, 48
  %v2594 = vpop.permute.xlu0 %2593
  %2595 = vrot.lane.b32.xlu0 %v1913, 48
  %v2596 = vpop.permute.xlu0 %2595
  %v2600 = vsel %vm511, %v2590, 0
  %v2603 = vsel %vm511, %v2592, 0
  %2605 = vmatprep.subr.mxu0 0.0
  %2606 = vmatpush1.msra.mxu0 %v2594
  %2607 = vmatprep.subr.mxu0 0.0
  %2608 = vmatpush1.msra.mxu0 %v2596
  %2609 = vmatprep.subr.mxu0 0.0
  %2610 = vmatpush1.msra.mxu0 0.0
  %2611 = vmatprep.subr.mxu0 0.0
  %2612 = vmatpush1.msra.mxu0 0.0
  %2613 = vmatprep.subr.mxu0 0.0
  %2614 = vmatpush1.msra.mxu0 0.0
  %2615 = vmatprep.subr.mxu0 0.0
  %2616 = vmatpush1.msra.mxu0 0.0
  %2617 = vmatprep.subr.mxu0 0.0
  %2618 = vmatpush1.msra.mxu0 0.0
  %2619 = vmatprep.subr.mxu0 0.0
  %2620 = vmatpush1.msra.mxu0 0.0
  %2621 = vmatprep.subr.mxu0 0.0
  %2622 = vmatpush1.msra.mxu0 0.0
  %2623 = vmatprep.subr.mxu0 0.0
  %2624 = vmatpush1.msra.mxu0 0.0
  %2625 = vmatprep.subr.mxu0 0.0
  %2626 = vmatpush1.msra.mxu0 0.0
  %2627 = vmatprep.subr.mxu0 0.0
  %2628 = vmatpush1.msra.mxu0 0.0
  %2629 = vmatprep.subr.mxu0 0.0
  %2630 = vmatpush1.msra.mxu0 0.0
  %2631 = vmatprep.subr.mxu0 0.0
  %2632 = vmatpush1.msra.mxu0 0.0
  %2633 = vmatprep.subr.mxu0 0.0
  %2634 = vmatpush1.msra.mxu0 0.0
  %2635 = vmatprep.subr.mxu0 0.0
  %2636 = vmatpush1.msra.mxu0 0.0
  %2637 = vmatprep.subr.mxu0 0.0
  %2638 = vmatpush1.msra.mxu0 0.0
  %2639 = vmatprep.subr.mxu0 0.0
  %2640 = vmatpush1.msra.mxu0 0.0
  %2641 = vmatprep.subr.mxu0 0.0
  %2642 = vmatpush1.msra.mxu0 0.0
  %2643 = vmatprep.subr.mxu0 0.0
  %2644 = vmatpush1.msra.mxu0 0.0
  %2645 = vmatprep.subr.mxu0 0.0
  %2646 = vmatpush1.msra.mxu0 0.0
  %2647 = vmatprep.subr.mxu0 0.0
  %2648 = vmatpush1.msra.mxu0 0.0
  %2649 = vmatprep.subr.mxu0 0.0
  %2650 = vmatpush1.msra.mxu0 0.0
  %2651 = vmatprep.subr.mxu0 0.0
  %2652 = vmatpush1.msra.mxu0 0.0
  %2653 = vmatprep.subr.mxu0 0.0
  %2654 = vmatpush1.msra.mxu0 0.0
  %2655 = vmatprep.subr.mxu0 0.0
  %2656 = vmatpush1.msra.mxu0 0.0
  %2657 = vmatprep.subr.mxu0 0.0
  %2658 = vmatpush1.msra.mxu0 0.0
  %2659 = vmatprep.subr.mxu0 0.0
  %2660 = vmatpush1.msra.mxu0 0.0
  %2661 = vmatprep.subr.mxu0 0.0
  %2662 = vmatpush1.msra.mxu0 0.0
  %2663 = vmatprep.subr.mxu0 0.0
  %2664 = vmatpush1.msra.mxu0 0.0
  %2665 = vmatprep.subr.mxu0 0.0
  %2666 = vmatpush1.msra.mxu0 0.0
  %2667 = vmatprep.subr.mxu0 0.0
  %2668 = vmatpush1.msra.mxu0 0.0
  %2669 = vmatprep.mubr.f32.mxu0 0.0
  %2670 = vmatmul.mubr.f32.gmra.mrb[0].mxu0 %v2600
  %v2671 = vpop.f32.mrb[0].mxu0
  %v2672 = vadd.f32 0.0, %v2671
  %v2673 = vpop.f32.mrb[0].mxu0
  %2674 = vmatprep.mubr.f32.mxu0 0.0
  %2675 = vmatmul.mubr.f32.gmra.mrb[0].mxu0 %v2603
  %v2676 = vpop.f32.mrb[0].mxu0
  %v2677 = vadd.f32 0.0, %v2676
  %v2678 = vpop.f32.mrb[0].mxu0
  %2679 = vdwg.mxu0
  %s2680 = scalar_lea.vmem %s5, 48
  %v2681 = vld [vmem:[%s2680] sm:$0xff]
  %v2683 = vsel %vm427, %v2672, 0
  %v2686 = vsel %vm427, %v2677, 0
  %2688 = vmatprep.subr.mxu0 0.0
  %2689 = vmatpush1.msra.mxu0 %v2681
  %2690 = vmatprep.subr.mxu0 0.0
  %2691 = vmatpush1.msra.mxu0 0.0
  %2692 = vmatprep.subr.mxu0 0.0
  %2693 = vmatpush1.msra.mxu0 0.0
  %2694 = vmatprep.subr.mxu0 0.0
  %2695 = vmatpush1.msra.mxu0 0.0
  %2696 = vmatprep.subr.mxu0 0.0
  %2697 = vmatpush1.msra.mxu0 0.0
  %2698 = vmatprep.subr.mxu0 0.0
  %2699 = vmatpush1.msra.mxu0 0.0
  %2700 = vmatprep.subr.mxu0 0.0
  %2701 = vmatpush1.msra.mxu0 0.0
  %2702 = vmatprep.subr.mxu0 0.0
  %2703 = vmatpush1.msra.mxu0 0.0
  %2704 = vmatprep.subr.mxu0 0.0
  %2705 = vmatpush1.msra.mxu0 0.0
  %2706 = vmatprep.subr.mxu0 0.0
  %2707 = vmatpush1.msra.mxu0 0.0
  %2708 = vmatprep.subr.mxu0 0.0
  %2709 = vmatpush1.msra.mxu0 0.0
  %2710 = vmatprep.subr.mxu0 0.0
  %2711 = vmatpush1.msra.mxu0 0.0
  %2712 = vmatprep.subr.mxu0 0.0
  %2713 = vmatpush1.msra.mxu0 0.0
  %2714 = vmatprep.subr.mxu0 0.0
  %2715 = vmatpush1.msra.mxu0 0.0
  %2716 = vmatprep.subr.mxu0 0.0
  %2717 = vmatpush1.msra.mxu0 0.0
  %2718 = vmatprep.subr.mxu0 0.0
  %2719 = vmatpush1.msra.mxu0 0.0
  %2720 = vmatprep.subr.mxu0 0.0
  %2721 = vmatpush1.msra.mxu0 0.0
  %2722 = vmatprep.subr.mxu0 0.0
  %2723 = vmatpush1.msra.mxu0 0.0
  %2724 = vmatprep.subr.mxu0 0.0
  %2725 = vmatpush1.msra.mxu0 0.0
  %2726 = vmatprep.subr.mxu0 0.0
  %2727 = vmatpush1.msra.mxu0 0.0
  %2728 = vmatprep.subr.mxu0 0.0
  %2729 = vmatpush1.msra.mxu0 0.0
  %2730 = vmatprep.subr.mxu0 0.0
  %2731 = vmatpush1.msra.mxu0 0.0
  %2732 = vmatprep.subr.mxu0 0.0
  %2733 = vmatpush1.msra.mxu0 0.0
  %2734 = vmatprep.subr.mxu0 0.0
  %2735 = vmatpush1.msra.mxu0 0.0
  %2736 = vmatprep.subr.mxu0 0.0
  %2737 = vmatpush1.msra.mxu0 0.0
  %2738 = vmatprep.subr.mxu0 0.0
  %2739 = vmatpush1.msra.mxu0 0.0
  %2740 = vmatprep.subr.mxu0 0.0
  %2741 = vmatpush1.msra.mxu0 0.0
  %2742 = vmatprep.subr.mxu0 0.0
  %2743 = vmatpush1.msra.mxu0 0.0
  %2744 = vmatprep.subr.mxu0 0.0
  %2745 = vmatpush1.msra.mxu0 0.0
  %2746 = vmatprep.subr.mxu0 0.0
  %2747 = vmatpush1.msra.mxu0 0.0
  %2748 = vmatprep.subr.mxu0 0.0
  %2749 = vmatpush1.msra.mxu0 0.0
  %2750 = vmatprep.subr.mxu0 0.0
  %2751 = vmatpush1.msra.mxu0 0.0
  %2752 = vmatprep.mubr.f32.mxu0 0.0
  %2753 = vmatmul.mubr.f32.gmra.mrb[0].mxu0 %v2683
  %v2754 = vpop.f32.mrb[0].mxu0
  %v2755 = vadd.f32 0.0, %v2754
  %v2756 = vpop.f32.mrb[0].mxu0
  %2757 = vmatprep.mubr.f32.mxu0 0.0
  %2758 = vmatmul.mubr.f32.gmra.mrb[0].mxu0 %v2686
  %v2759 = vpop.f32.mrb[0].mxu0
  %v2760 = vadd.f32 0.0, %v2759
  %v2761 = vpop.f32.mrb[0].mxu0
  %2762 = vdwg.mxu0
  %v2763 = vadd.f32 %v2472, %v2755
  %v2764 = vadd.f32 %v2477, %v2760
  %2765 = vrot.lane.b32.xlu0 %v1908, 104
  %v2766 = vpop.permute.xlu0 %2765
  %2767 = vrot.lane.b32.xlu0 %v1913, 104
  %v2768 = vpop.permute.xlu0 %2767
  %2769 = vrot.lane.b32.xlu0 %v1908, 72
  %v2770 = vpop.permute.xlu0 %2769
  %2771 = vrot.lane.b32.xlu0 %v1913, 72
  %v2772 = vpop.permute.xlu0 %2771
  %v2773 = vsel %vm427, %v2766, 0
  %v2775 = vsel %vm427, %v2768, 0
  %v2777 = vsel %vm427, %v2770, 0
  %v2779 = vsel %vm427, %v2772, 0
  %2781 = vmatprep.subr.mxu0 0.0
  %2782 = vmatpush1.xpose.msra.mxu0 %v2777
  %2783 = vmatprep.subr.mxu0 0.0
  %2784 = vmatpush1.xpose.msra.mxu0 %v2779
  %2785 = vmatprep.subr.mxu0 0.0
  %2786 = vmatpush1.xpose.msra.mxu0 0.0
  %2787 = vmatprep.subr.mxu0 0.0
  %2788 = vmatpush1.xpose.msra.mxu0 0.0
  %2789 = vmatprep.subr.mxu0 0.0
  %2790 = vmatpush1.xpose.msra.mxu0 0.0
  %2791 = vmatprep.subr.mxu0 0.0
  %2792 = vmatpush1.xpose.msra.mxu0 0.0
  %2793 = vmatprep.subr.mxu0 0.0
  %2794 = vmatpush1.xpose.msra.mxu0 0.0
  %2795 = vmatprep.subr.mxu0 0.0
  %2796 = vmatpush1.xpose.msra.mxu0 0.0
  %2797 = vmatprep.subr.mxu0 0.0
  %2798 = vmatpush1.xpose.msra.mxu0 0.0
  %2799 = vmatprep.subr.mxu0 0.0
  %2800 = vmatpush1.xpose.msra.mxu0 0.0
  %2801 = vmatprep.subr.mxu0 0.0
  %2802 = vmatpush1.xpose.msra.mxu0 0.0
  %2803 = vmatprep.subr.mxu0 0.0
  %2804 = vmatpush1.xpose.msra.mxu0 0.0
  %2805 = vmatprep.subr.mxu0 0.0
  %2806 = vmatpush1.xpose.msra.mxu0 0.0
  %2807 = vmatprep.subr.mxu0 0.0
  %2808 = vmatpush1.xpose.msra.mxu0 0.0
  %2809 = vmatprep.subr.mxu0 0.0
  %2810 = vmatpush1.xpose.msra.mxu0 0.0
  %2811 = vmatprep.subr.mxu0 0.0
  %2812 = vmatpush1.xpose.msra.mxu0 0.0
  %2813 = vmatprep.subr.mxu0 0.0
  %2814 = vmatpush1.xpose.msra.mxu0 0.0
  %2815 = vmatprep.subr.mxu0 0.0
  %2816 = vmatpush1.xpose.msra.mxu0 0.0
  %2817 = vmatprep.subr.mxu0 0.0
  %2818 = vmatpush1.xpose.msra.mxu0 0.0
  %2819 = vmatprep.subr.mxu0 0.0
  %2820 = vmatpush1.xpose.msra.mxu0 0.0
  %2821 = vmatprep.subr.mxu0 0.0
  %2822 = vmatpush1.xpose.msra.mxu0 0.0
  %2823 = vmatprep.subr.mxu0 0.0
  %2824 = vmatpush1.xpose.msra.mxu0 0.0
  %2825 = vmatprep.subr.mxu0 0.0
  %2826 = vmatpush1.xpose.msra.mxu0 0.0
  %2827 = vmatprep.subr.mxu0 0.0
  %2828 = vmatpush1.xpose.msra.mxu0 0.0
  %2829 = vmatprep.subr.mxu0 0.0
  %2830 = vmatpush1.xpose.msra.mxu0 0.0
  %2831 = vmatprep.subr.mxu0 0.0
  %2832 = vmatpush1.xpose.msra.mxu0 0.0
  %2833 = vmatprep.subr.mxu0 0.0
  %2834 = vmatpush1.xpose.msra.mxu0 0.0
  %2835 = vmatprep.subr.mxu0 0.0
  %2836 = vmatpush1.xpose.msra.mxu0 0.0
  %2837 = vmatprep.subr.mxu0 0.0
  %2838 = vmatpush1.xpose.msra.mxu0 0.0
  %2839 = vmatprep.subr.mxu0 0.0
  %2840 = vmatpush1.xpose.msra.mxu0 0.0
  %2841 = vmatprep.subr.mxu0 0.0
  %2842 = vmatpush1.xpose.msra.mxu0 0.0
  %2843 = vmatprep.subr.mxu0 0.0
  %2844 = vmatpush1.xpose.msra.mxu0 0.0
  %2845 = vmatprep.mubr.f32.mxu0 0.0
  %2846 = vmatmul.mubr.f32.gmra.mrb[0].mxu0 %v2773
  %v2847 = vpop.f32.mrb[0].mxu0
  %v2848 = vadd.f32 %v303, %v2847
  %v2849 = vpop.f32.mrb[0].mxu0
  %2850 = vmatprep.mubr.f32.mxu0 0.0
  %2851 = vmatmul.mubr.f32.gmra.mrb[0].mxu0 %v2775
  %v2852 = vpop.f32.mrb[0].mxu0
  %v2853 = vadd.f32 %v304, %v2852
  %v2854 = vpop.f32.mrb[0].mxu0
  %2855 = vdwg.mxu0
  %v2856 = vsel %vm511, %v2848, -inf
  %2857 = vmax.xlane.f32.xlu0 %v2856
  %v2858 = vpop.xlane.xlu0 %2857
  %v2859 = vsel %vm511, %v2853, -inf
  %2860 = vmax.xlane.f32.xlu0 %v2859
  %v2861 = vpop.xlane.xlu0 %2860
  %v2862 = vsub.f32 %v2848, %v2858
  %v2863 = vsub.f32 %v2853, %v2861
  %v2864 = vmul.f32 %v2862, 1.442695
  %v2865 = vpow.pop %v2864
  %v2866 = vmul.f32 %v2863, 1.442695
  %v2867 = vpow.pop %v2866
  %v2868 = vsel %vm511, %v2865, 0.0
  %2869 = vadd.xlane.f32.xlu0 %v2868
  %v2870 = vpop.xlane.xlu0 %2869
  %v2871 = vsel %vm511, %v2867, 0.0
  %2872 = vadd.xlane.f32.xlu0 %v2871
  %v2873 = vpop.xlane.xlu0 %2872
  %v2874 = vrcp.pop %v2870
  %v2875 = vmul.f32 %v2865, %v2874
  %v2876 = vrcp.pop %v2873
  %v2877 = vmul.f32 %v2867, %v2876
  %2878 = vrot.lane.b32.xlu0 %v1908, 40
  %v2879 = vpop.permute.xlu0 %2878
  %2880 = vrot.lane.b32.xlu0 %v1913, 40
  %v2881 = vpop.permute.xlu0 %2880
  %v2885 = vsel %vm511, %v2875, 0
  %v2888 = vsel %vm511, %v2877, 0
  %2890 = vmatprep.subr.mxu0 0.0
  %2891 = vmatpush1.msra.mxu0 %v2879
  %2892 = vmatprep.subr.mxu0 0.0
  %2893 = vmatpush1.msra.mxu0 %v2881
  %2894 = vmatprep.subr.mxu0 0.0
  %2895 = vmatpush1.msra.mxu0 0.0
  %2896 = vmatprep.subr.mxu0 0.0
  %2897 = vmatpush1.msra.mxu0 0.0
  %2898 = vmatprep.subr.mxu0 0.0
  %2899 = vmatpush1.msra.mxu0 0.0
  %2900 = vmatprep.subr.mxu0 0.0
  %2901 = vmatpush1.msra.mxu0 0.0
  %2902 = vmatprep.subr.mxu0 0.0
  %2903 = vmatpush1.msra.mxu0 0.0
  %2904 = vmatprep.subr.mxu0 0.0
  %2905 = vmatpush1.msra.mxu0 0.0
  %2906 = vmatprep.subr.mxu0 0.0
  %2907 = vmatpush1.msra.mxu0 0.0
  %2908 = vmatprep.subr.mxu0 0.0
  %2909 = vmatpush1.msra.mxu0 0.0
  %2910 = vmatprep.subr.mxu0 0.0
  %2911 = vmatpush1.msra.mxu0 0.0
  %2912 = vmatprep.subr.mxu0 0.0
  %2913 = vmatpush1.msra.mxu0 0.0
  %2914 = vmatprep.subr.mxu0 0.0
  %2915 = vmatpush1.msra.mxu0 0.0
  %2916 = vmatprep.subr.mxu0 0.0
  %2917 = vmatpush1.msra.mxu0 0.0
  %2918 = vmatprep.subr.mxu0 0.0
  %2919 = vmatpush1.msra.mxu0 0.0
  %2920 = vmatprep.subr.mxu0 0.0
  %2921 = vmatpush1.msra.mxu0 0.0
  %2922 = vmatprep.subr.mxu0 0.0
  %2923 = vmatpush1.msra.mxu0 0.0
  %2924 = vmatprep.subr.mxu0 0.0
  %2925 = vmatpush1.msra.mxu0 0.0
  %2926 = vmatprep.subr.mxu0 0.0
  %2927 = vmatpush1.msra.mxu0 0.0
  %2928 = vmatprep.subr.mxu0 0.0
  %2929 = vmatpush1.msra.mxu0 0.0
  %2930 = vmatprep.subr.mxu0 0.0
  %2931 = vmatpush1.msra.mxu0 0.0
  %2932 = vmatprep.subr.mxu0 0.0
  %2933 = vmatpush1.msra.mxu0 0.0
  %2934 = vmatprep.subr.mxu0 0.0
  %2935 = vmatpush1.msra.mxu0 0.0
  %2936 = vmatprep.subr.mxu0 0.0
  %2937 = vmatpush1.msra.mxu0 0.0
  %2938 = vmatprep.subr.mxu0 0.0
  %2939 = vmatpush1.msra.mxu0 0.0
  %2940 = vmatprep.subr.mxu0 0.0
  %2941 = vmatpush1.msra.mxu0 0.0
  %2942 = vmatprep.subr.mxu0 0.0
  %2943 = vmatpush1.msra.mxu0 0.0
  %2944 = vmatprep.subr.mxu0 0.0
  %2945 = vmatpush1.msra.mxu0 0.0
  %2946 = vmatprep.subr.mxu0 0.0
  %2947 = vmatpush1.msra.mxu0 0.0
  %2948 = vmatprep.subr.mxu0 0.0
  %2949 = vmatpush1.msra.mxu0 0.0
  %2950 = vmatprep.subr.mxu0 0.0
  %2951 = vmatpush1.msra.mxu0 0.0
  %2952 = vmatprep.subr.mxu0 0.0
  %2953 = vmatpush1.msra.mxu0 0.0
  %2954 = vmatprep.mubr.f32.mxu0 0.0
  %2955 = vmatmul.mubr.f32.gmra.mrb[0].mxu0 %v2885
  %v2956 = vpop.f32.mrb[0].mxu0
  %v2957 = vadd.f32 0.0, %v2956
  %v2958 = vpop.f32.mrb[0].mxu0
  %2959 = vmatprep.mubr.f32.mxu0 0.0
  %2960 = vmatmul.mubr.f32.gmra.mrb[0].mxu0 %v2888
  %v2961 = vpop.f32.mrb[0].mxu0
  %v2962 = vadd.f32 0.0, %v2961
  %v2963 = vpop.f32.mrb[0].mxu0
  %2964 = vdwg.mxu0
  %s2965 = scalar_lea.vmem %s5, 56
  %v2966 = vld [vmem:[%s2965] sm:$0xff]
  %v2968 = vsel %vm427, %v2957, 0
  %v2971 = vsel %vm427, %v2962, 0
  %2973 = vmatprep.subr.mxu0 0.0
  %2974 = vmatpush1.msra.mxu0 %v2966
  %2975 = vmatprep.subr.mxu0 0.0
  %2976 = vmatpush1.msra.mxu0 0.0
  %2977 = vmatprep.subr.mxu0 0.0
  %2978 = vmatpush1.msra.mxu0 0.0
  %2979 = vmatprep.subr.mxu0 0.0
  %2980 = vmatpush1.msra.mxu0 0.0
  %2981 = vmatprep.subr.mxu0 0.0
  %2982 = vmatpush1.msra.mxu0 0.0
  %2983 = vmatprep.subr.mxu0 0.0
  %2984 = vmatpush1.msra.mxu0 0.0
  %2985 = vmatprep.subr.mxu0 0.0
  %2986 = vmatpush1.msra.mxu0 0.0
  %2987 = vmatprep.subr.mxu0 0.0
  %2988 = vmatpush1.msra.mxu0 0.0
  %2989 = vmatprep.subr.mxu0 0.0
  %2990 = vmatpush1.msra.mxu0 0.0
  %2991 = vmatprep.subr.mxu0 0.0
  %2992 = vmatpush1.msra.mxu0 0.0
  %2993 = vmatprep.subr.mxu0 0.0
  %2994 = vmatpush1.msra.mxu0 0.0
  %2995 = vmatprep.subr.mxu0 0.0
  %2996 = vmatpush1.msra.mxu0 0.0
  %2997 = vmatprep.subr.mxu0 0.0
  %2998 = vmatpush1.msra.mxu0 0.0
  %2999 = vmatprep.subr.mxu0 0.0
  %3000 = vmatpush1.msra.mxu0 0.0
  %3001 = vmatprep.subr.mxu0 0.0
  %3002 = vmatpush1.msra.mxu0 0.0
  %3003 = vmatprep.subr.mxu0 0.0
  %3004 = vmatpush1.msra.mxu0 0.0
  %3005 = vmatprep.subr.mxu0 0.0
  %3006 = vmatpush1.msra.mxu0 0.0
  %3007 = vmatprep.subr.mxu0 0.0
  %3008 = vmatpush1.msra.mxu0 0.0
  %3009 = vmatprep.subr.mxu0 0.0
  %3010 = vmatpush1.msra.mxu0 0.0
  %3011 = vmatprep.subr.mxu0 0.0
  %3012 = vmatpush1.msra.mxu0 0.0
  %3013 = vmatprep.subr.mxu0 0.0
  %3014 = vmatpush1.msra.mxu0 0.0
  %3015 = vmatprep.subr.mxu0 0.0
  %3016 = vmatpush1.msra.mxu0 0.0
  %3017 = vmatprep.subr.mxu0 0.0
  %3018 = vmatpush1.msra.mxu0 0.0
  %3019 = vmatprep.subr.mxu0 0.0
  %3020 = vmatpush1.msra.mxu0 0.0
  %3021 = vmatprep.subr.mxu0 0.0
  %3022 = vmatpush1.msra.mxu0 0.0
  %3023 = vmatprep.subr.mxu0 0.0
  %3024 = vmatpush1.msra.mxu0 0.0
  %3025 = vmatprep.subr.mxu0 0.0
  %3026 = vmatpush1.msra.mxu0 0.0
  %3027 = vmatprep.subr.mxu0 0.0
  %3028 = vmatpush1.msra.mxu0 0.0
  %3029 = vmatprep.subr.mxu0 0.0
  %3030 = vmatpush1.msra.mxu0 0.0
  %3031 = vmatprep.subr.mxu0 0.0
  %3032 = vmatpush1.msra.mxu0 0.0
  %3033 = vmatprep.subr.mxu0 0.0
  %3034 = vmatpush1.msra.mxu0 0.0
  %3035 = vmatprep.subr.mxu0 0.0
  %3036 = vmatpush1.msra.mxu0 0.0
  %3037 = vmatprep.mubr.f32.mxu0 0.0
  %3038 = vmatmul.mubr.f32.gmra.mrb[0].mxu0 %v2968
  %v3039 = vpop.f32.mrb[0].mxu0
  %v3040 = vadd.f32 0.0, %v3039
  %v3041 = vpop.f32.mrb[0].mxu0
  %3042 = vmatprep.mubr.f32.mxu0 0.0
  %3043 = vmatmul.mubr.f32.gmra.mrb[0].mxu0 %v2971
  %v3044 = vpop.f32.mrb[0].mxu0
  %v3045 = vadd.f32 0.0, %v3044
  %v3046 = vpop.f32.mrb[0].mxu0
  %3047 = vdwg.mxu0
  %v3048 = vadd.f32 %v2763, %v3040
  %v3049 = vadd.f32 %v2764, %v3045
  %v3050 = vadd.f32 %v1797, %v3048
  %v3051 = vadd.f32 %v1798, %v3049
  %v3052 = vld [vmem:[%s2 + $0x3] sm:$0x1]
  %v3053 = vlaneseq
  %v3054 = vshrl.u32 %v3053, 7
  %v3055 = vsub.s32 0, %v3054
  %v3056 = vrot.slane %v3052, %v3055
  %v3057 = vadd.f32 %v3050, %v3056
  %v3058 = vadd.f32 %v3051, %v3056
  %v3059 = vsel %vm74, %v3057, 0.0
  %3060 = vadd.xlane.f32.xlu0 %v3059
  %v3061 = vpop.xlane.xlu0 %3060
  %v3062 = vsel %vm74, %v3058, 0.0
  %3063 = vadd.xlane.f32.xlu0 %v3062
  %v3064 = vpop.xlane.xlu0 %3063
  %v3065 = vmul.f32 %v3061, %v237
  %v3066 = vmul.f32 %v3064, %v237
  %v3067 = vsub.f32 %v3057, %v3065
  %v3068 = vsub.f32 %v3058, %v3066
  %v3069 = vmul.f32 %v3067, %v3067
  %v3070 = vmul.f32 %v3068, %v3068
  %v3071 = vsel %vm74, %v3069, 0.0
  %3072 = vadd.xlane.f32.xlu0 %v3071
  %v3073 = vpop.xlane.xlu0 %3072
  %v3074 = vsel %vm74, %v3070, 0.0
  %3075 = vadd.xlane.f32.xlu0 %v3074
  %v3076 = vpop.xlane.xlu0 %3075
  %v3077 = vmul.f32 %v3073, %v237
  %v3078 = vmul.f32 %v3076, %v237
  %v3079 = vadd.f32 %v3077, 1e-05
  %v3080 = vadd.f32 %v3078, 1e-05
  %v3081 = vrsqrt.pop %v3079
  %v3082 = vrsqrt.pop %v3080
  %v3083 = vmul.f32 %v3067, %v3081
  %v3084 = vmul.f32 %v3068, %v3082
  %s3085 = scalar_lea.vmem %s6, 32
  %v3086 = vld [vmem:[%s3085] sm:$0xff]
  %v3087 = vld [vmem:[%s3085 + $0x8] sm:$0xff]
  %v3088 = vld [vmem:[%s3085 + $0x10] sm:$0xff]
  %v3089 = vld [vmem:[%s3085 + $0x18] sm:$0xff]
  %v3090 = vld [vmem:[%s3 + $0x3] sm:$0x1]
  %v3091 = vlaneseq
  %v3092 = vshrl.u32 %v3091, 7
  %v3093 = vsub.s32 0, %v3092
  %v3094 = vrot.slane %v3090, %v3093
  %v3096 = vsel %vm74, %v3083, 0
  %v3099 = vsel %vm74, %v3084, 0
  %3101 = vmatprep.subr.mxu0 0.0
  %3102 = vmatpush1.msra.mxu0 %v3086
  %3103 = vmatprep.subr.mxu0 0.0
  %3104 = vmatpush1.msra.mxu0 %v3087
  %3105 = vmatprep.subr.mxu0 0.0
  %3106 = vmatpush1.msra.mxu0 %v3088
  %3107 = vmatprep.subr.mxu0 0.0
  %3108 = vmatpush1.msra.mxu0 %v3089
  %3109 = vmatprep.subr.mxu0 0.0
  %3110 = vmatpush1.msra.mxu0 0.0
  %3111 = vmatprep.subr.mxu0 0.0
  %3112 = vmatpush1.msra.mxu0 0.0
  %3113 = vmatprep.subr.mxu0 0.0
  %3114 = vmatpush1.msra.mxu0 0.0
  %3115 = vmatprep.subr.mxu0 0.0
  %3116 = vmatpush1.msra.mxu0 0.0
  %3117 = vmatprep.subr.mxu0 0.0
  %3118 = vmatpush1.msra.mxu0 0.0
  %3119 = vmatprep.subr.mxu0 0.0
  %3120 = vmatpush1.msra.mxu0 0.0
  %3121 = vmatprep.subr.mxu0 0.0
  %3122 = vmatpush1.msra.mxu0 0.0
  %3123 = vmatprep.subr.mxu0 0.0
  %3124 = vmatpush1.msra.mxu0 0.0
  %3125 = vmatprep.subr.mxu0 0.0
  %3126 = vmatpush1.msra.mxu0 0.0
  %3127 = vmatprep.subr.mxu0 0.0
  %3128 = vmatpush1.msra.mxu0 0.0
  %3129 = vmatprep.subr.mxu0 0.0
  %3130 = vmatpush1.msra.mxu0 0.0
  %3131 = vmatprep.subr.mxu0 0.0
  %3132 = vmatpush1.msra.mxu0 0.0
  %3133 = vmatprep.subr.mxu0 0.0
  %3134 = vmatpush1.msra.mxu0 0.0
  %3135 = vmatprep.subr.mxu0 0.0
  %3136 = vmatpush1.msra.mxu0 0.0
  %3137 = vmatprep.subr.mxu0 0.0
  %3138 = vmatpush1.msra.mxu0 0.0
  %3139 = vmatprep.subr.mxu0 0.0
  %3140 = vmatpush1.msra.mxu0 0.0
  %3141 = vmatprep.subr.mxu0 0.0
  %3142 = vmatpush1.msra.mxu0 0.0
  %3143 = vmatprep.subr.mxu0 0.0
  %3144 = vmatpush1.msra.mxu0 0.0
  %3145 = vmatprep.subr.mxu0 0.0
  %3146 = vmatpush1.msra.mxu0 0.0
  %3147 = vmatprep.subr.mxu0 0.0
  %3148 = vmatpush1.msra.mxu0 0.0
  %3149 = vmatprep.subr.mxu0 0.0
  %3150 = vmatpush1.msra.mxu0 0.0
  %3151 = vmatprep.subr.mxu0 0.0
  %3152 = vmatpush1.msra.mxu0 0.0
  %3153 = vmatprep.subr.mxu0 0.0
  %3154 = vmatpush1.msra.mxu0 0.0
  %3155 = vmatprep.subr.mxu0 0.0
  %3156 = vmatpush1.msra.mxu0 0.0
  %3157 = vmatprep.subr.mxu0 0.0
  %3158 = vmatpush1.msra.mxu0 0.0
  %3159 = vmatprep.subr.mxu0 0.0
  %3160 = vmatpush1.msra.mxu0 0.0
  %3161 = vmatprep.subr.mxu0 0.0
  %3162 = vmatpush1.msra.mxu0 0.0
  %3163 = vmatprep.subr.mxu0 0.0
  %3164 = vmatpush1.msra.mxu0 0.0
  %3165 = vmatprep.mubr.f32.mxu0 0.0
  %3166 = vmatmul.mubr.f32.gmra.mrb[0].mxu0 %v3096
  %v3167 = vpop.f32.mrb[0].mxu0
  %v3168 = vadd.f32 %v3094, %v3167
  %v3169 = vpop.f32.mrb[0].mxu0
  %3170 = vmatprep.mubr.f32.mxu0 0.0
  %3171 = vmatmul.mubr.f32.gmra.mrb[0].mxu0 %v3099
  %v3172 = vpop.f32.mrb[0].mxu0
  %v3173 = vadd.f32 %v3094, %v3172
  %v3174 = vpop.f32.mrb[0].mxu0
  %3175 = vdwg.mxu0
  %v3176 = vmul.f32 %v3168, %v3168
  %v3177 = vmul.f32 %v3173, %v3173
  %v3178 = vmul.f32 %v3168, %v3176
  %v3179 = vmul.f32 %v3173, %v3177
  %v3180 = vmul.f32 %v3178, 0.044715
  %v3181 = vmul.f32 %v3179, 0.044715
  %v3182 = vadd.f32 %v3168, %v3180
  %v3183 = vadd.f32 %v3173, %v3181
  %v3184 = vmul.f32 %v3182, 0.7978846
  %v3185 = vmul.f32 %v3183, 0.7978846
  %v3186 = vtanh.pop %v3184
  %v3187 = vtanh.pop %v3185
  %v3188 = vadd.f32 %v3186, 1.0
  %v3189 = vadd.f32 %v3187, 1.0
  %v3190 = vmul.f32 %v3188, 0.5
  %v3191 = vmul.f32 %v3189, 0.5
  %v3192 = vmul.f32 %v3168, %v3190
  %v3193 = vmul.f32 %v3173, %v3191
  %s3194 = scalar_lea.vmem %s7, 128
  %v3195 = vld [vmem:[%s3194] sm:$0xff]
  %v3196 = vld [vmem:[%s3194 + $0x8] sm:$0xff]
  %v3197 = vld [vmem:[%s3194 + $0x10] sm:$0xff]
  %v3198 = vld [vmem:[%s3194 + $0x18] sm:$0xff]
  %v3199 = vld [vmem:[%s3194 + $0x20] sm:$0xff]
  %v3200 = vld [vmem:[%s3194 + $0x28] sm:$0xff]
  %v3201 = vld [vmem:[%s3194 + $0x30] sm:$0xff]
  %v3202 = vld [vmem:[%s3194 + $0x38] sm:$0xff]
  %v3203 = vld [vmem:[%s3194 + $0x40] sm:$0xff]
  %v3204 = vld [vmem:[%s3194 + $0x48] sm:$0xff]
  %v3205 = vld [vmem:[%s3194 + $0x50] sm:$0xff]
  %v3206 = vld [vmem:[%s3194 + $0x58] sm:$0xff]
  %v3207 = vld [vmem:[%s3194 + $0x60] sm:$0xff]
  %v3208 = vld [vmem:[%s3194 + $0x68] sm:$0xff]
  %v3209 = vld [vmem:[%s3194 + $0x70] sm:$0xff]
  %v3210 = vld [vmem:[%s3194 + $0x78] sm:$0xff]
  %3211 = vmatprep.subr.mxu0 0.0
  %3212 = vmatpush1.msra.mxu0 %v3195
  %3213 = vmatprep.subr.mxu0 0.0
  %3214 = vmatpush1.msra.mxu0 %v3196
  %3215 = vmatprep.subr.mxu0 0.0
  %3216 = vmatpush1.msra.mxu0 %v3197
  %3217 = vmatprep.subr.mxu0 0.0
  %3218 = vmatpush1.msra.mxu0 %v3198
  %3219 = vmatprep.subr.mxu0 0.0
  %3220 = vmatpush1.msra.mxu0 %v3199
  %3221 = vmatprep.subr.mxu0 0.0
  %3222 = vmatpush1.msra.mxu0 %v3200
  %3223 = vmatprep.subr.mxu0 0.0
  %3224 = vmatpush1.msra.mxu0 %v3201
  %3225 = vmatprep.subr.mxu0 0.0
  %3226 = vmatpush1.msra.mxu0 %v3202
  %3227 = vmatprep.subr.mxu0 0.0
  %3228 = vmatpush1.msra.mxu0 %v3203
  %3229 = vmatprep.subr.mxu0 0.0
  %3230 = vmatpush1.msra.mxu0 %v3204
  %3231 = vmatprep.subr.mxu0 0.0
  %3232 = vmatpush1.msra.mxu0 %v3205
  %3233 = vmatprep.subr.mxu0 0.0
  %3234 = vmatpush1.msra.mxu0 %v3206
  %3235 = vmatprep.subr.mxu0 0.0
  %3236 = vmatpush1.msra.mxu0 %v3207
  %3237 = vmatprep.subr.mxu0 0.0
  %3238 = vmatpush1.msra.mxu0 %v3208
  %3239 = vmatprep.subr.mxu0 0.0
  %3240 = vmatpush1.msra.mxu0 %v3209
  %3241 = vmatprep.subr.mxu0 0.0
  %3242 = vmatpush1.msra.mxu0 %v3210
  %3243 = vmatprep.subr.mxu0 0.0
  %3244 = vmatpush1.msra.mxu0 0.0
  %3245 = vmatprep.subr.mxu0 0.0
  %3246 = vmatpush1.msra.mxu0 0.0
  %3247 = vmatprep.subr.mxu0 0.0
  %3248 = vmatpush1.msra.mxu0 0.0
  %3249 = vmatprep.subr.mxu0 0.0
  %3250 = vmatpush1.msra.mxu0 0.0
  %3251 = vmatprep.subr.mxu0 0.0
  %3252 = vmatpush1.msra.mxu0 0.0
  %3253 = vmatprep.subr.mxu0 0.0
  %3254 = vmatpush1.msra.mxu0 0.0
  %3255 = vmatprep.subr.mxu0 0.0
  %3256 = vmatpush1.msra.mxu0 0.0
  %3257 = vmatprep.subr.mxu0 0.0
  %3258 = vmatpush1.msra.mxu0 0.0
  %3259 = vmatprep.subr.mxu0 0.0
  %3260 = vmatpush1.msra.mxu0 0.0
  %3261 = vmatprep.subr.mxu0 0.0
  %3262 = vmatpush1.msra.mxu0 0.0
  %3263 = vmatprep.subr.mxu0 0.0
  %3264 = vmatpush1.msra.mxu0 0.0
  %3265 = vmatprep.subr.mxu0 0.0
  %3266 = vmatpush1.msra.mxu0 0.0
  %3267 = vmatprep.subr.mxu0 0.0
  %3268 = vmatpush1.msra.mxu0 0.0
  %3269 = vmatprep.subr.mxu0 0.0
  %3270 = vmatpush1.msra.mxu0 0.0
  %3271 = vmatprep.subr.mxu0 0.0
  %3272 = vmatpush1.msra.mxu0 0.0
  %3273 = vmatprep.subr.mxu0 0.0
  %3274 = vmatpush1.msra.mxu0 0.0
  %3275 = vmatprep.mubr.f32.mxu0 0.0
  %3276 = vmatmul.mubr.f32.gmra.mrb[0].mxu0 %v3192
  %v3277 = vpop.f32.mrb[0].mxu0
  %v3278 = vadd.f32 0.0, %v3277
  %v3279 = vpop.f32.mrb[0].mxu0
  %3280 = vmatprep.mubr.f32.mxu0 0.0
  %3281 = vmatmul.mubr.f32.gmra.mrb[0].mxu0 %v3193
  %v3282 = vpop.f32.mrb[0].mxu0
  %v3283 = vadd.f32 0.0, %v3282
  %v3284 = vpop.f32.mrb[0].mxu0
  %3285 = vdwg.mxu0
  %v3286 = vadd.f32 %v3057, %v3278
  %v3287 = vadd.f32 %v3058, %v3283
  %v3288 = vld [vmem:[%s2 + $0x5] sm:$0x1]
  %v3289 = vlaneseq
  %v3290 = vshrl.u32 %v3289, 7
  %v3291 = vsub.s32 0, %v3290
  %v3292 = vrot.slane %v3288, %v3291
  %v3293 = vadd.f32 %v3286, %v3292
  %v3294 = vadd.f32 %v3287, %v3292
  %v3295 = vsel %vm74, %v3293, 0.0
  %3296 = vadd.xlane.f32.xlu0 %v3295
  %v3297 = vpop.xlane.xlu0 %3296
  %v3298 = vsel %vm74, %v3294, 0.0
  %3299 = vadd.xlane.f32.xlu0 %v3298
  %v3300 = vpop.xlane.xlu0 %3299
  %v3301 = vmul.f32 %v3297, %v237
  %v3302 = vmul.f32 %v3300, %v237
  %v3303 = vsub.f32 %v3293, %v3301
  %v3304 = vsub.f32 %v3294, %v3302
  %v3305 = vmul.f32 %v3303, %v3303
  %v3306 = vmul.f32 %v3304, %v3304
  %v3307 = vsel %vm74, %v3305, 0.0
  %3308 = vadd.xlane.f32.xlu0 %v3307
  %v3309 = vpop.xlane.xlu0 %3308
  %v3310 = vsel %vm74, %v3306, 0.0
  %3311 = vadd.xlane.f32.xlu0 %v3310
  %v3312 = vpop.xlane.xlu0 %3311
  %v3313 = vmul.f32 %v3309, %v237
  %v3314 = vmul.f32 %v3312, %v237
  %v3315 = vadd.f32 %v3313, 1e-05
  %v3316 = vadd.f32 %v3314, 1e-05
  %v3317 = vrsqrt.pop %v3315
  %v3318 = vrsqrt.pop %v3316
  %v3319 = vmul.f32 %v3303, %v3317
  %v3320 = vmul.f32 %v3304, %v3318
  %v3321 = vld [vmem:[%s8] sm:$0xff]
  %v3322 = vld [vmem:[%s8 + $0x8] sm:$0xff]
  %v3323 = vld [vmem:[%s8 + $0x10] sm:$0xff]
  %v3324 = vld [vmem:[%s8 + $0x18] sm:$0xff]
  %v3325 = vld [vmem:[%s3 + $0x4] sm:$0x1]
  %v3326 = vlaneseq
  %v3327 = vshrl.u32 %v3326, 7
  %v3328 = vsub.s32 0, %v3327
  %v3329 = vrot.slane %v3325, %v3328
  %v3331 = vsel %vm74, %v3319, 0
  %v3334 = vsel %vm74, %v3320, 0
  %3336 = vmatprep.subr.mxu0 0.0
  %3337 = vmatpush1.msra.mxu0 %v3321
  %3338 = vmatprep.subr.mxu0 0.0
  %3339 = vmatpush1.msra.mxu0 %v3322
  %3340 = vmatprep.subr.mxu0 0.0
  %3341 = vmatpush1.msra.mxu0 %v3323
  %3342 = vmatprep.subr.mxu0 0.0
  %3343 = vmatpush1.msra.mxu0 %v3324
  %3344 = vmatprep.subr.mxu0 0.0
  %3345 = vmatpush1.msra.mxu0 0.0
  %3346 = vmatprep.subr.mxu0 0.0
  %3347 = vmatpush1.msra.mxu0 0.0
  %3348 = vmatprep.subr.mxu0 0.0
  %3349 = vmatpush1.msra.mxu0 0.0
  %3350 = vmatprep.subr.mxu0 0.0
  %3351 = vmatpush1.msra.mxu0 0.0
  %3352 = vmatprep.subr.mxu0 0.0
  %3353 = vmatpush1.msra.mxu0 0.0
  %3354 = vmatprep.subr.mxu0 0.0
  %3355 = vmatpush1.msra.mxu0 0.0
  %3356 = vmatprep.subr.mxu0 0.0
  %3357 = vmatpush1.msra.mxu0 0.0
  %3358 = vmatprep.subr.mxu0 0.0
  %3359 = vmatpush1.msra.mxu0 0.0
  %3360 = vmatprep.subr.mxu0 0.0
  %3361 = vmatpush1.msra.mxu0 0.0
  %3362 = vmatprep.subr.mxu0 0.0
  %3363 = vmatpush1.msra.mxu0 0.0
  %3364 = vmatprep.subr.mxu0 0.0
  %3365 = vmatpush1.msra.mxu0 0.0
  %3366 = vmatprep.subr.mxu0 0.0
  %3367 = vmatpush1.msra.mxu0 0.0
  %3368 = vmatprep.subr.mxu0 0.0
  %3369 = vmatpush1.msra.mxu0 0.0
  %3370 = vmatprep.subr.mxu0 0.0
  %3371 = vmatpush1.msra.mxu0 0.0
  %3372 = vmatprep.subr.mxu0 0.0
  %3373 = vmatpush1.msra.mxu0 0.0
  %3374 = vmatprep.subr.mxu0 0.0
  %3375 = vmatpush1.msra.mxu0 0.0
  %3376 = vmatprep.subr.mxu0 0.0
  %3377 = vmatpush1.msra.mxu0 0.0
  %3378 = vmatprep.subr.mxu0 0.0
  %3379 = vmatpush1.msra.mxu0 0.0
  %3380 = vmatprep.subr.mxu0 0.0
  %3381 = vmatpush1.msra.mxu0 0.0
  %3382 = vmatprep.subr.mxu0 0.0
  %3383 = vmatpush1.msra.mxu0 0.0
  %3384 = vmatprep.subr.mxu0 0.0
  %3385 = vmatpush1.msra.mxu0 0.0
  %3386 = vmatprep.subr.mxu0 0.0
  %3387 = vmatpush1.msra.mxu0 0.0
  %3388 = vmatprep.subr.mxu0 0.0
  %3389 = vmatpush1.msra.mxu0 0.0
  %3390 = vmatprep.subr.mxu0 0.0
  %3391 = vmatpush1.msra.mxu0 0.0
  %3392 = vmatprep.subr.mxu0 0.0
  %3393 = vmatpush1.msra.mxu0 0.0
  %3394 = vmatprep.subr.mxu0 0.0
  %3395 = vmatpush1.msra.mxu0 0.0
  %3396 = vmatprep.subr.mxu0 0.0
  %3397 = vmatpush1.msra.mxu0 0.0
  %3398 = vmatprep.subr.mxu0 0.0
  %3399 = vmatpush1.msra.mxu0 0.0
  %3400 = vmatprep.mubr.f32.mxu0 0.0
  %3401 = vmatmul.mubr.f32.gmra.mrb[0].mxu0 %v3331
  %v3402 = vpop.f32.mrb[0].mxu0
  %v3403 = vadd.f32 %v3329, %v3402
  %v3404 = vpop.f32.mrb[0].mxu0
  %3405 = vmatprep.mubr.f32.mxu0 0.0
  %3406 = vmatmul.mubr.f32.gmra.mrb[0].mxu0 %v3334
  %v3407 = vpop.f32.mrb[0].mxu0
  %v3408 = vadd.f32 %v3329, %v3407
  %v3409 = vpop.f32.mrb[0].mxu0
  %3410 = vdwg.mxu0
  %3411 = vst [vmem:[%s9] sm:$0xff] %v3403
  %3412 = vst [vmem:[%s9 + $0x8] sm:$0xff] %v3408
  // Predicated region
  $region38: #{multitask_forward.1} parent=0 // pred_check
    _
  $region39: #{multitask_forward.1} parent=0 // pred_check_branch
    %3414 = sbr.rel (0) target = $region41
  $region40: #{multitask_forward.1} parent=0 // pred_region
    _
  $region41: #{multitask_forward.1} parent=0 // pred_fallthru
    _
  // Predicated region
  $region42: #{multitask_forward.1} parent=0 // pred_check
    _
  $region43: #{multitask_forward.1} parent=0 // pred_check_branch
    %3416 = sbr.rel (0) target = $region45
  $region44: #{multitask_forward.1} parent=0 // pred_region
    _
  $region45: #{multitask_forward.1} parent=0 // pred_fallthru
    _

</llo_original>
